<compile_context>
chip_gen: v7x
topology: tpu7x:2x2x1
jax: 0.10.0
libtpu: 0.0.40
codegen_flags: <defaults>
</compile_context>

<pallas_src>
from math import ceil

import jax
import jax.numpy as jnp
from jax import lax
from jax.experimental import pallas as pl
from jax.experimental.pallas import tpu as pltpu

EPS = 1e-15                      # same EPS as torch_geometric.dense_diff_pool
_VMEM_LIMIT = 48 * 1024 * 1024   # raise scoped VMEM cap (v5e default is 16 MiB)
_TN = (((0,), (0,)), ((), ()))   # contract dim 0 of lhs with dim 0 of rhs (A^T B)


# ----------------------------------------------------------------------------
# Kernel helpers
# ----------------------------------------------------------------------------
def _conv_relu(adj, x, wr_ref, br_ref, wt_ref):
    """relu(DenseGraphConv(x, adj)) for one graph, aggr='add'.

    out = relu( (adj @ x) @ W_rel + b_rel + x @ W_root )
    """
    agg = jnp.dot(adj, x, preferred_element_type=jnp.float32)
    y = jnp.dot(agg, wr_ref[...], preferred_element_type=jnp.float32) + br_ref[...]
    y = y + jnp.dot(x, wt_ref[...], preferred_element_type=jnp.float32)
    return jnp.maximum(y, 0.0)


# ----------------------------------------------------------------------------
# Fused stage kernel: pool GNN + embed GNN + dense_diff_pool (one graph / step)
# ----------------------------------------------------------------------------
def _stage_kernel(x_ref, adj_ref,
                  # pool GNN (lin=True); lin weight pre-split by the wrapper
                  pwr1, pbr1, pwt1, pwr2, pbr2, pwt2, pwr3, pbr3, pwt3,
                  pwl1, pwl2, pwl3, pbl,
                  # embed GNN (lin=False)
                  ewr1, ebr1, ewt1, ewr2, ebr2, ewt2, ewr3, ebr3, ewt3,
                  # outputs
                  xo1_ref, xo2_ref, xo3_ref, ao_ref, link_ref, ent_ref):
    x0 = x_ref[0]          # (N, Fin)
    adj = adj_ref[0]       # (N, N)

    # ---- pool GNN: s = relu(Linear(cat(h1,h2,h3))) accumulated incrementally
    h1 = _conv_relu(adj, x0, pwr1, pbr1, pwt1)
    y = jnp.dot(h1, pwl1[...], preferred_element_type=jnp.float32) + pbl[...]
    h2 = _conv_relu(adj, h1, pwr2, pbr2, pwt2)
    y = y + jnp.dot(h2, pwl2[...], preferred_element_type=jnp.float32)
    h3 = _conv_relu(adj, h2, pwr3, pbr3, pwt3)
    y = y + jnp.dot(h3, pwl3[...], preferred_element_type=jnp.float32)
    s = jnp.maximum(y, 0.0)                                   # (N, C)

    # ---- softmax over clusters (max-stabilized, exact division)
    s = s - jnp.max(s, axis=-1, keepdims=True)
    e = jnp.exp(s)
    p = e / jnp.sum(e, axis=-1, keepdims=True)                # (N, C)

    # ---- embed GNN
    g1 = _conv_relu(adj, x0, ewr1, ebr1, ewt1)                # (N, H)
    g2 = _conv_relu(adj, g1, ewr2, ebr2, ewt2)                # (N, H)
    g3 = _conv_relu(adj, g2, ewr3, ebr3, ewt3)                # (N, Fo)

    # ---- dense_diff_pool: x_out = p^T @ cat(g1,g2,g3)  (written as 3 blocks,
    #      concatenated outside on the tiny pooled tensor)
    xo1_ref[0] = lax.dot_general(p, g1, _TN,
                                 preferred_element_type=jnp.float32).astype(xo1_ref.dtype)
    xo2_ref[0] = lax.dot_general(p, g2, _TN,
                                 preferred_element_type=jnp.float32).astype(xo2_ref.dtype)
    xo3_ref[0] = lax.dot_general(p, g3, _TN,
                                 preferred_element_type=jnp.float32).astype(xo3_ref.dtype)

    # adj_out = p^T @ adj @ p  (no explicit transpose; contract node dim of p)
    pta = lax.dot_general(p, adj, _TN, preferred_element_type=jnp.float32)   # (C, N)
    ao = jnp.dot(pta, p, preferred_element_type=jnp.float32)                 # (C, C)
    ao_ref[0] = ao.astype(ao_ref.dtype)

    # link loss without materializing the NxN diff:
    #   ||adj - p p^T||^2 = sum(adj^2) - 2*tr(p^T adj p) + ||p^T p||^2
    ptp = lax.dot_general(p, p, _TN, preferred_element_type=jnp.float32)     # (C, C)
    C = ao.shape[0]
    row = lax.broadcasted_iota(jnp.int32, (C, C), 0)
    col = lax.broadcasted_iota(jnp.int32, (C, C), 1)
    tr_ao = jnp.sum(jnp.where(row == col, ao, 0.0), keepdims=True)           # (1, 1)
    adj_sq = jnp.sum(adj * adj, keepdims=True)                               # (1, 1)
    ptp_sq = jnp.sum(ptp * ptp, keepdims=True)                               # (1, 1)
    link_ref[0] = adj_sq - 2.0 * tr_ao + ptp_sq

    # entropy partial:  sum_n -p log(p + eps)
    ent_ref[0] = jnp.sum(-p * jnp.log(p + EPS), keepdims=True)


# ----------------------------------------------------------------------------
# Fused final kernel: gnn3_embed + node-sum readout (one graph per grid step)
# ----------------------------------------------------------------------------
def _final_kernel(x_ref, adj_ref,
                  ewr1, ebr1, ewt1, ewr2, ebr2, ewt2, ewr3, ebr3, ewt3,
                  o1_ref, o2_ref, o3_ref):
    x0 = x_ref[0]
    adj = adj_ref[0]
    g1 = _conv_relu(adj, x0, ewr1, ebr1, ewt1)
    g2 = _conv_relu(adj, g1, ewr2, ebr2, ewt2)
    g3 = _conv_relu(adj, g2, ewr3, ebr3, ewt3)
    # readout sum over the node axis (sum of concat == concat of sums)
    o1_ref[0] = jnp.sum(g1, axis=0, keepdims=True).astype(o1_ref.dtype)
    o2_ref[0] = jnp.sum(g2, axis=0, keepdims=True).astype(o2_ref.dtype)
    o3_ref[0] = jnp.sum(g3, axis=0, keepdims=True).astype(o3_ref.dtype)


# ----------------------------------------------------------------------------
# Wrappers (pallas_call plumbing)
# ----------------------------------------------------------------------------
def _pool_weight_list(params):
    hidden = params['w_rel1'].shape[1]
    wl = params['lin_w']                     # (2*hidden + out_ch, lin_out)
    return [params['w_rel1'], params['b_rel1'], params['w_root1'],
            params['w_rel2'], params['b_rel2'], params['w_root2'],
            params['w_rel3'], params['b_rel3'], params['w_root3'],
            wl[:hidden], wl[hidden:2 * hidden], wl[2 * hidden:], params['lin_b']]


def _embed_weight_list(params):
    return [params['w_rel1'], params['b_rel1'], params['w_root1'],
            params['w_rel2'], params['b_rel2'], params['w_root2'],
            params['w_rel3'], params['b_rel3'], params['w_root3']]


def diffpool_stage(x, adj, pool_params, embed_params):
    """One pooling stage: s = pool_gnn(x, adj); xe = embed_gnn(x, adj);
    x_out, adj_out, link, ent = dense_diff_pool(xe, adj, s)."""
    B, N, Fin = x.shape
    H = embed_params['w_rel1'].shape[1]
    Fo = embed_params['w_rel3'].shape[1]
    C = pool_params['lin_w'].shape[1]        # number of clusters

    weights = _pool_weight_list(pool_params) + _embed_weight_list(embed_params)

    out_shape = (jax.ShapeDtypeStruct((B, C, H), jnp.float32),
                 jax.ShapeDtypeStruct((B, C, H), jnp.float32),
                 jax.ShapeDtypeStruct((B, C, Fo), jnp.float32),
                 jax.ShapeDtypeStruct((B, C, C), jnp.float32),
                 jax.ShapeDtypeStruct((B, 1, 1), jnp.float32),
                 jax.ShapeDtypeStruct((B, 1, 1), jnp.float32))
    out_specs = (pl.BlockSpec((1, C, H), lambda b: (b, 0, 0)),
                 pl.BlockSpec((1, C, H), lambda b: (b, 0, 0)),
                 pl.BlockSpec((1, C, Fo), lambda b: (b, 0, 0)),
                 pl.BlockSpec((1, C, C), lambda b: (b, 0, 0)),
                 pl.BlockSpec((1, 1, 1), lambda b: (b, 0, 0)),
                 pl.BlockSpec((1, 1, 1), lambda b: (b, 0, 0)))
    in_specs = [pl.BlockSpec((1, N, Fin), lambda b: (b, 0, 0)),
                pl.BlockSpec((1, N, N), lambda b: (b, 0, 0))]
    in_specs += [pl.BlockSpec(w.shape, lambda b: (0, 0)) for w in weights]

    xo1, xo2, xo3, ao, link_sq, ent_sum = pl.pallas_call(
        _stage_kernel,
        out_shape=out_shape,
        grid=(B,),
        in_specs=in_specs,
        out_specs=out_specs,
        compiler_params=pltpu.CompilerParams(
            dimension_semantics=("parallel",),
            vmem_limit_bytes=_VMEM_LIMIT),
    )(x, adj, *weights)

    # tiny glue on the pooled (B, C, 3F) tensor only
    x_out = jnp.concatenate([xo1, xo2, xo3], axis=-1)
    # torch.norm(adj - s s^T, p=2) over (B,N,N) / adj.numel()
    link_loss = jnp.sqrt(jnp.maximum(jnp.sum(link_sq), 0.0)) / (B * N * N)
    # (-s log(s+eps)).sum(-1).mean() over (B, N)
    ent_loss = jnp.sum(ent_sum) / (B * N)
    return x_out, ao, link_loss, ent_loss


def final_embed_sum(x, adj, embed_params):
    """gnn3_embed followed by sum over the node axis, fused in one kernel."""
    B, N, Fin = x.shape
    H = embed_params['w_rel1'].shape[1]
    Fo = embed_params['w_rel3'].shape[1]
    weights = _embed_weight_list(embed_params)

    out_shape = (jax.ShapeDtypeStruct((B, 1, H), jnp.float32),
                 jax.ShapeDtypeStruct((B, 1, H), jnp.float32),
                 jax.ShapeDtypeStruct((B, 1, Fo), jnp.float32))
    out_specs = (pl.BlockSpec((1, 1, H), lambda b: (b, 0, 0)),
                 pl.BlockSpec((1, 1, H), lambda b: (b, 0, 0)),
                 pl.BlockSpec((1, 1, Fo), lambda b: (b, 0, 0)))
    in_specs = [pl.BlockSpec((1, N, Fin), lambda b: (b, 0, 0)),
                pl.BlockSpec((1, N, N), lambda b: (b, 0, 0))]
    in_specs += [pl.BlockSpec(w.shape, lambda b: (0, 0)) for w in weights]

    o1, o2, o3 = pl.pallas_call(
        _final_kernel,
        out_shape=out_shape,
        grid=(B,),
        in_specs=in_specs,
        out_specs=out_specs,
        compiler_params=pltpu.CompilerParams(
            dimension_semantics=("parallel",),
            vmem_limit_bytes=_VMEM_LIMIT),
    )(x, adj, *weights)
    return jnp.concatenate([o1, o2, o3], axis=-1).reshape(B, 2 * H + Fo)


# ----------------------------------------------------------------------------
# Deterministic parameter init (synthetic; mirrors module __init__ shapes)
# ----------------------------------------------------------------------------
def _linear_params(key, fan_in, fan_out):
    kw, kb = jax.random.split(key)
    bound = 1.0 / (fan_in ** 0.5)
    w = jax.random.uniform(kw, (fan_in, fan_out), jnp.float32, -bound, bound)
    b = jax.random.uniform(kb, (1, fan_out), jnp.float32, -bound, bound)
    return w, b


def init_gnn_params(key, in_ch, hidden, out_ch, lin=True):
    keys = jax.random.split(key, 7)
    p = {}
    w, b = _linear_params(keys[0], in_ch, hidden)
    p['w_rel1'], p['b_rel1'] = w, b
    p['w_root1'] = _linear_params(keys[1], in_ch, hidden)[0]      # lin_root: no bias
    w, b = _linear_params(keys[2], hidden, hidden)
    p['w_rel2'], p['b_rel2'] = w, b
    p['w_root2'] = _linear_params(keys[3], hidden, hidden)[0]
    w, b = _linear_params(keys[4], hidden, out_ch)
    p['w_rel3'], p['b_rel3'] = w, b
    p['w_root3'] = _linear_params(keys[5], hidden, out_ch)[0]
    if lin:
        w, b = _linear_params(keys[6], 2 * hidden + out_ch, out_ch)
        p['lin_w'], p['lin_b'] = w, b
    return p


class DiffPoolLayerPallas:
    """Pallas port of DiffPoolLayer with run_cfg['dp_norm']=='nonorm', aggr='add'."""

    def __init__(self, key, max_num_nodes, num_init_feats, aggr, run_cfg):
        assert run_cfg['dp_norm'] == 'nonorm'
        # TODO(synk): batchnorm / graphnorm / graphsizenorm GNN.bn variants are
        #             not implemented (unused in the 'nonorm' config).
        self.aggr = aggr
        F = num_init_feats
        n1 = max(1, ceil(run_cfg['dp_perc_retaining'] * max_num_nodes))
        n2 = max(1, ceil(run_cfg['dp_perc_retaining'] * n1))
        self.final_num_nodes = n2
        keys = jax.random.split(key, 5)
        self.gnn1_pool = init_gnn_params(keys[0], F, F, n1, lin=True)
        self.gnn1_embed = init_gnn_params(keys[1], F, F, F, lin=False)
        self.gnn2_pool = init_gnn_params(keys[2], 3 * F, F, n2, lin=True)
        self.gnn2_embed = init_gnn_params(keys[3], 3 * F, F, F, lin=False)
        self.gnn3_embed = init_gnn_params(keys[4], 3 * F, F, F, lin=False)
        # TODO(synk): aggr=='improved' final_mlp readout not implemented.

    def __call__(self, x, adj):
        # stage 1: pool + embed + diff-pool fused (adj read once from HBM)
        x2, adj2, l1, e1 = diffpool_stage(x, adj, self.gnn1_pool, self.gnn1_embed)
        # stage 2
        x3, adj3, l2, e2 = diffpool_stage(x2, adj2, self.gnn2_pool, self.gnn2_embed)
        # final embed + node-sum readout fused
        xf = final_embed_sum(x3, adj3, self.gnn3_embed)
        if self.aggr != 'add':
            xf = xf / x3.shape[1]                 # mean fallback
        return xf, l1 + l2, e1 + e2


# ----------------------------------------------------------------------------
if __name__ == "__main__":
    key = jax.random.PRNGKey(0)
    kx, ka, kp = jax.random.split(key, 3)

    B, N, F = 2, 16, 8
    run_cfg = {'dp_norm': 'nonorm', 'dp_perc_retaining': 0.25}

    x = jax.random.normal(kx, (B, N, F), dtype=jnp.float32)
    a = jax.random.uniform(ka, (B, N, N), dtype=jnp.float32)
    adj = (((a + jnp.swapaxes(a, 1, 2)) * 0.5) > 0.5).astype(jnp.float32)  # symmetric 0/1

    layer = DiffPoolLayerPallas(kp, max_num_nodes=N, num_init_feats=F,
                                aggr='add', run_cfg=run_cfg)
    out, link_loss, ent_loss = layer(x, adj)
    jax.block_until_ready((out, link_loss, ent_loss))

    assert out.shape == (B, 3 * F)
    print("KERNEL_OK")
</pallas_src>

<mosaic_0001>
module attributes {stable_mosaic.version = 11 : i64} {
  func.func @_stage_kernel(%arg0: i32, %arg1: memref<1x16x8xf32, #tpu.memory_space<vmem>>, %arg2: memref<1x16x16xf32, #tpu.memory_space<vmem>>, %arg3: memref<8x8xf32, #tpu.memory_space<vmem>>, %arg4: memref<1x8xf32, #tpu.memory_space<vmem>>, %arg5: memref<8x8xf32, #tpu.memory_space<vmem>>, %arg6: memref<8x8xf32, #tpu.memory_space<vmem>>, %arg7: memref<1x8xf32, #tpu.memory_space<vmem>>, %arg8: memref<8x8xf32, #tpu.memory_space<vmem>>, %arg9: memref<8x4xf32, #tpu.memory_space<vmem>>, %arg10: memref<1x4xf32, #tpu.memory_space<vmem>>, %arg11: memref<8x4xf32, #tpu.memory_space<vmem>>, %arg12: memref<8x4xf32, #tpu.memory_space<vmem>>, %arg13: memref<8x4xf32, #tpu.memory_space<vmem>>, %arg14: memref<4x4xf32, #tpu.memory_space<vmem>>, %arg15: memref<1x4xf32, #tpu.memory_space<vmem>>, %arg16: memref<8x8xf32, #tpu.memory_space<vmem>>, %arg17: memref<1x8xf32, #tpu.memory_space<vmem>>, %arg18: memref<8x8xf32, #tpu.memory_space<vmem>>, %arg19: memref<8x8xf32, #tpu.memory_space<vmem>>, %arg20: memref<1x8xf32, #tpu.memory_space<vmem>>, %arg21: memref<8x8xf32, #tpu.memory_space<vmem>>, %arg22: memref<8x8xf32, #tpu.memory_space<vmem>>, %arg23: memref<1x8xf32, #tpu.memory_space<vmem>>, %arg24: memref<8x8xf32, #tpu.memory_space<vmem>>, %arg25: memref<1x4x8xf32, #tpu.memory_space<vmem>>, %arg26: memref<1x4x8xf32, #tpu.memory_space<vmem>>, %arg27: memref<1x4x8xf32, #tpu.memory_space<vmem>>, %arg28: memref<1x4x4xf32, #tpu.memory_space<vmem>>, %arg29: memref<1x1x1xf32, #tpu.memory_space<vmem>>, %arg30: memref<1x1x1xf32, #tpu.memory_space<vmem>>) attributes {dimension_semantics = [#tpu.dimension_semantics<parallel>], iteration_bounds = array<i64: 2>, scalar_prefetch = 0 : i64, scratch_operands = 0 : i64, tpu.core_type = #tpu.core_type<tc>, window_params = [{transform_indices = @transform_0, window_bounds = array<i64: 1, 16, 8>}, {transform_indices = @transform_1, window_bounds = array<i64: 1, 16, 16>}, {pipeline_mode = #tpu.pipeline_mode<synchronous>, transform_indices = @transform_2, window_bounds = array<i64: 8, 8>}, {pipeline_mode = #tpu.pipeline_mode<synchronous>, transform_indices = @transform_3, window_bounds = array<i64: 1, 8>}, {pipeline_mode = #tpu.pipeline_mode<synchronous>, transform_indices = @transform_4, window_bounds = array<i64: 8, 8>}, {pipeline_mode = #tpu.pipeline_mode<synchronous>, transform_indices = @transform_5, window_bounds = array<i64: 8, 8>}, {pipeline_mode = #tpu.pipeline_mode<synchronous>, transform_indices = @transform_6, window_bounds = array<i64: 1, 8>}, {pipeline_mode = #tpu.pipeline_mode<synchronous>, transform_indices = @transform_7, window_bounds = array<i64: 8, 8>}, {pipeline_mode = #tpu.pipeline_mode<synchronous>, transform_indices = @transform_8, window_bounds = array<i64: 8, 4>}, {pipeline_mode = #tpu.pipeline_mode<synchronous>, transform_indices = @transform_9, window_bounds = array<i64: 1, 4>}, {pipeline_mode = #tpu.pipeline_mode<synchronous>, transform_indices = @transform_10, window_bounds = array<i64: 8, 4>}, {pipeline_mode = #tpu.pipeline_mode<synchronous>, transform_indices = @transform_11, window_bounds = array<i64: 8, 4>}, {pipeline_mode = #tpu.pipeline_mode<synchronous>, transform_indices = @transform_12, window_bounds = array<i64: 8, 4>}, {pipeline_mode = #tpu.pipeline_mode<synchronous>, transform_indices = @transform_13, window_bounds = array<i64: 4, 4>}, {pipeline_mode = #tpu.pipeline_mode<synchronous>, transform_indices = @transform_14, window_bounds = array<i64: 1, 4>}, {pipeline_mode = #tpu.pipeline_mode<synchronous>, transform_indices = @transform_15, window_bounds = array<i64: 8, 8>}, {pipeline_mode = #tpu.pipeline_mode<synchronous>, transform_indices = @transform_16, window_bounds = array<i64: 1, 8>}, {pipeline_mode = #tpu.pipeline_mode<synchronous>, transform_indices = @transform_17, window_bounds = array<i64: 8, 8>}, {pipeline_mode = #tpu.pipeline_mode<synchronous>, transform_indices = @transform_18, window_bounds = array<i64: 8, 8>}, {pipeline_mode = #tpu.pipeline_mode<synchronous>, transform_indices = @transform_19, window_bounds = array<i64: 1, 8>}, {pipeline_mode = #tpu.pipeline_mode<synchronous>, transform_indices = @transform_20, window_bounds = array<i64: 8, 8>}, {pipeline_mode = #tpu.pipeline_mode<synchronous>, transform_indices = @transform_21, window_bounds = array<i64: 8, 8>}, {pipeline_mode = #tpu.pipeline_mode<synchronous>, transform_indices = @transform_22, window_bounds = array<i64: 1, 8>}, {pipeline_mode = #tpu.pipeline_mode<synchronous>, transform_indices = @transform_23, window_bounds = array<i64: 8, 8>}, {transform_indices = @transform_24, window_bounds = array<i64: 1, 4, 8>}, {transform_indices = @transform_25, window_bounds = array<i64: 1, 4, 8>}, {transform_indices = @transform_26, window_bounds = array<i64: 1, 4, 8>}, {transform_indices = @transform_27, window_bounds = array<i64: 1, 4, 4>}, {transform_indices = @transform_28, window_bounds = array<i64: 1, 1, 1>}, {transform_indices = @transform_29, window_bounds = array<i64: 1, 1, 1>}]} {
    %c0 = arith.constant 0 : index
    %c0_0 = arith.constant 0 : index
    %c0_1 = arith.constant 0 : index
    %0 = vector.load %arg1[%c0, %c0_0, %c0_1] : memref<1x16x8xf32, #tpu.memory_space<vmem>>, vector<1x16x8xf32>
    %1 = vector.shape_cast %0 : vector<1x16x8xf32> to vector<16x8xf32>
    %c0_2 = arith.constant 0 : index
    %c0_3 = arith.constant 0 : index
    %c0_4 = arith.constant 0 : index
    %2 = vector.load %arg2[%c0_2, %c0_3, %c0_4] : memref<1x16x16xf32, #tpu.memory_space<vmem>>, vector<1x16x16xf32>
    %3 = vector.shape_cast %2 : vector<1x16x16xf32> to vector<16x16xf32>
    %cst = arith.constant dense<0.000000e+00> : vector<16x8xf32>
    %4 = tpu.matmul %3, %1, %cst {dimension_numbers = #tpu.dot_dimension_numbers<[1], [0], [0], [1], [0, 0, 1, 1], [], []>} : vector<16x16xf32>, vector<16x8xf32>, vector<16x8xf32> -> vector<16x8xf32>
    %c0_5 = arith.constant 0 : index
    %c0_6 = arith.constant 0 : index
    %5 = vector.load %arg3[%c0_5, %c0_6] : memref<8x8xf32, #tpu.memory_space<vmem>>, vector<8x8xf32>
    %cst_7 = arith.constant dense<0.000000e+00> : vector<16x8xf32>
    %6 = tpu.matmul %4, %5, %cst_7 {dimension_numbers = #tpu.dot_dimension_numbers<[1], [0], [0], [1], [0, 0, 1, 1], [], []>} : vector<16x8xf32>, vector<8x8xf32>, vector<16x8xf32> -> vector<16x8xf32>
    %c0_8 = arith.constant 0 : index
    %c0_9 = arith.constant 0 : index
    %7 = vector.load %arg4[%c0_8, %c0_9] : memref<1x8xf32, #tpu.memory_space<vmem>>, vector<1x8xf32>
    %8 = vector.broadcast %7 : vector<1x8xf32> to vector<16x8xf32>
    %9 = arith.addf %6, %8 : vector<16x8xf32>
    %c0_10 = arith.constant 0 : index
    %c0_11 = arith.constant 0 : index
    %10 = vector.load %arg5[%c0_10, %c0_11] : memref<8x8xf32, #tpu.memory_space<vmem>>, vector<8x8xf32>
    %cst_12 = arith.constant dense<0.000000e+00> : vector<16x8xf32>
    %11 = tpu.matmul %1, %10, %cst_12 {dimension_numbers = #tpu.dot_dimension_numbers<[1], [0], [0], [1], [0, 0, 1, 1], [], []>} : vector<16x8xf32>, vector<8x8xf32>, vector<16x8xf32> -> vector<16x8xf32>
    %12 = arith.addf %9, %11 : vector<16x8xf32>
    %cst_13 = arith.constant 0.000000e+00 : f32
    %13 = vector.broadcast %cst_13 : f32 to vector<16x8xf32>
    %14 = arith.maximumf %12, %13 : vector<16x8xf32>
    %c0_14 = arith.constant 0 : index
    %c0_15 = arith.constant 0 : index
    %15 = vector.load %arg12[%c0_14, %c0_15] : memref<8x4xf32, #tpu.memory_space<vmem>>, vector<8x4xf32>
    %cst_16 = arith.constant dense<0.000000e+00> : vector<16x4xf32>
    %16 = tpu.matmul %14, %15, %cst_16 {dimension_numbers = #tpu.dot_dimension_numbers<[1], [0], [0], [1], [0, 0, 1, 1], [], []>} : vector<16x8xf32>, vector<8x4xf32>, vector<16x4xf32> -> vector<16x4xf32>
    %c0_17 = arith.constant 0 : index
    %c0_18 = arith.constant 0 : index
    %17 = vector.load %arg15[%c0_17, %c0_18] : memref<1x4xf32, #tpu.memory_space<vmem>>, vector<1x4xf32>
    %18 = vector.broadcast %17 : vector<1x4xf32> to vector<16x4xf32>
    %19 = arith.addf %16, %18 : vector<16x4xf32>
    %cst_19 = arith.constant dense<0.000000e+00> : vector<16x8xf32>
    %20 = tpu.matmul %3, %14, %cst_19 {dimension_numbers = #tpu.dot_dimension_numbers<[1], [0], [0], [1], [0, 0, 1, 1], [], []>} : vector<16x16xf32>, vector<16x8xf32>, vector<16x8xf32> -> vector<16x8xf32>
    %c0_20 = arith.constant 0 : index
    %c0_21 = arith.constant 0 : index
    %21 = vector.load %arg6[%c0_20, %c0_21] : memref<8x8xf32, #tpu.memory_space<vmem>>, vector<8x8xf32>
    %cst_22 = arith.constant dense<0.000000e+00> : vector<16x8xf32>
    %22 = tpu.matmul %20, %21, %cst_22 {dimension_numbers = #tpu.dot_dimension_numbers<[1], [0], [0], [1], [0, 0, 1, 1], [], []>} : vector<16x8xf32>, vector<8x8xf32>, vector<16x8xf32> -> vector<16x8xf32>
    %c0_23 = arith.constant 0 : index
    %c0_24 = arith.constant 0 : index
    %23 = vector.load %arg7[%c0_23, %c0_24] : memref<1x8xf32, #tpu.memory_space<vmem>>, vector<1x8xf32>
    %24 = vector.broadcast %23 : vector<1x8xf32> to vector<16x8xf32>
    %25 = arith.addf %22, %24 : vector<16x8xf32>
    %c0_25 = arith.constant 0 : index
    %c0_26 = arith.constant 0 : index
    %26 = vector.load %arg8[%c0_25, %c0_26] : memref<8x8xf32, #tpu.memory_space<vmem>>, vector<8x8xf32>
    %cst_27 = arith.constant dense<0.000000e+00> : vector<16x8xf32>
    %27 = tpu.matmul %14, %26, %cst_27 {dimension_numbers = #tpu.dot_dimension_numbers<[1], [0], [0], [1], [0, 0, 1, 1], [], []>} : vector<16x8xf32>, vector<8x8xf32>, vector<16x8xf32> -> vector<16x8xf32>
    %28 = arith.addf %25, %27 : vector<16x8xf32>
    %cst_28 = arith.constant 0.000000e+00 : f32
    %29 = vector.broadcast %cst_28 : f32 to vector<16x8xf32>
    %30 = arith.maximumf %28, %29 : vector<16x8xf32>
    %c0_29 = arith.constant 0 : index
    %c0_30 = arith.constant 0 : index
    %31 = vector.load %arg13[%c0_29, %c0_30] : memref<8x4xf32, #tpu.memory_space<vmem>>, vector<8x4xf32>
    %cst_31 = arith.constant dense<0.000000e+00> : vector<16x4xf32>
    %32 = tpu.matmul %30, %31, %cst_31 {dimension_numbers = #tpu.dot_dimension_numbers<[1], [0], [0], [1], [0, 0, 1, 1], [], []>} : vector<16x8xf32>, vector<8x4xf32>, vector<16x4xf32> -> vector<16x4xf32>
    %33 = arith.addf %19, %32 : vector<16x4xf32>
    %cst_32 = arith.constant dense<0.000000e+00> : vector<16x8xf32>
    %34 = tpu.matmul %3, %30, %cst_32 {dimension_numbers = #tpu.dot_dimension_numbers<[1], [0], [0], [1], [0, 0, 1, 1], [], []>} : vector<16x16xf32>, vector<16x8xf32>, vector<16x8xf32> -> vector<16x8xf32>
    %c0_33 = arith.constant 0 : index
    %c0_34 = arith.constant 0 : index
    %35 = vector.load %arg9[%c0_33, %c0_34] : memref<8x4xf32, #tpu.memory_space<vmem>>, vector<8x4xf32>
    %cst_35 = arith.constant dense<0.000000e+00> : vector<16x4xf32>
    %36 = tpu.matmul %34, %35, %cst_35 {dimension_numbers = #tpu.dot_dimension_numbers<[1], [0], [0], [1], [0, 0, 1, 1], [], []>} : vector<16x8xf32>, vector<8x4xf32>, vector<16x4xf32> -> vector<16x4xf32>
    %c0_36 = arith.constant 0 : index
    %c0_37 = arith.constant 0 : index
    %37 = vector.load %arg10[%c0_36, %c0_37] : memref<1x4xf32, #tpu.memory_space<vmem>>, vector<1x4xf32>
    %38 = vector.broadcast %37 : vector<1x4xf32> to vector<16x4xf32>
    %39 = arith.addf %36, %38 : vector<16x4xf32>
    %c0_38 = arith.constant 0 : index
    %c0_39 = arith.constant 0 : index
    %40 = vector.load %arg11[%c0_38, %c0_39] : memref<8x4xf32, #tpu.memory_space<vmem>>, vector<8x4xf32>
    %cst_40 = arith.constant dense<0.000000e+00> : vector<16x4xf32>
    %41 = tpu.matmul %30, %40, %cst_40 {dimension_numbers = #tpu.dot_dimension_numbers<[1], [0], [0], [1], [0, 0, 1, 1], [], []>} : vector<16x8xf32>, vector<8x4xf32>, vector<16x4xf32> -> vector<16x4xf32>
    %42 = arith.addf %39, %41 : vector<16x4xf32>
    %cst_41 = arith.constant 0.000000e+00 : f32
    %43 = vector.broadcast %cst_41 : f32 to vector<16x4xf32>
    %44 = arith.maximumf %42, %43 : vector<16x4xf32>
    %c0_42 = arith.constant 0 : index
    %c0_43 = arith.constant 0 : index
    %45 = vector.load %arg14[%c0_42, %c0_43] : memref<4x4xf32, #tpu.memory_space<vmem>>, vector<4x4xf32>
    %cst_44 = arith.constant dense<0.000000e+00> : vector<16x4xf32>
    %46 = tpu.matmul %44, %45, %cst_44 {dimension_numbers = #tpu.dot_dimension_numbers<[1], [0], [0], [1], [0, 0, 1, 1], [], []>} : vector<16x4xf32>, vector<4x4xf32>, vector<16x4xf32> -> vector<16x4xf32>
    %47 = arith.addf %33, %46 : vector<16x4xf32>
    %cst_45 = arith.constant 0.000000e+00 : f32
    %48 = vector.broadcast %cst_45 : f32 to vector<16x4xf32>
    %49 = arith.maximumf %47, %48 : vector<16x4xf32>
    %cst_46 = arith.constant dense<0xFF800000> : vector<16xf32>
    %50 = vector.multi_reduction <maximumf>, %49, %cst_46 [1] : vector<16x4xf32> to vector<16xf32>
    %51 = vector.shape_cast %50 : vector<16xf32> to vector<16x1xf32>
    %52 = vector.broadcast %51 : vector<16x1xf32> to vector<16x4xf32>
    %53 = arith.subf %49, %52 : vector<16x4xf32>
    %54 = math.exp %53 : vector<16x4xf32>
    %cst_47 = arith.constant dense<0.000000e+00> : vector<16xf32>
    %55 = vector.multi_reduction <add>, %54, %cst_47 [1] : vector<16x4xf32> to vector<16xf32>
    %56 = vector.shape_cast %55 : vector<16xf32> to vector<16x1xf32>
    %57 = vector.broadcast %56 : vector<16x1xf32> to vector<16x4xf32>
    %58 = arith.divf %54, %57 : vector<16x4xf32>
    %cst_48 = arith.constant dense<0.000000e+00> : vector<16x8xf32>
    %59 = tpu.matmul %3, %1, %cst_48 {dimension_numbers = #tpu.dot_dimension_numbers<[1], [0], [0], [1], [0, 0, 1, 1], [], []>} : vector<16x16xf32>, vector<16x8xf32>, vector<16x8xf32> -> vector<16x8xf32>
    %c0_49 = arith.constant 0 : index
    %c0_50 = arith.constant 0 : index
    %60 = vector.load %arg16[%c0_49, %c0_50] : memref<8x8xf32, #tpu.memory_space<vmem>>, vector<8x8xf32>
    %cst_51 = arith.constant dense<0.000000e+00> : vector<16x8xf32>
    %61 = tpu.matmul %59, %60, %cst_51 {dimension_numbers = #tpu.dot_dimension_numbers<[1], [0], [0], [1], [0, 0, 1, 1], [], []>} : vector<16x8xf32>, vector<8x8xf32>, vector<16x8xf32> -> vector<16x8xf32>
    %c0_52 = arith.constant 0 : index
    %c0_53 = arith.constant 0 : index
    %62 = vector.load %arg17[%c0_52, %c0_53] : memref<1x8xf32, #tpu.memory_space<vmem>>, vector<1x8xf32>
    %63 = vector.broadcast %62 : vector<1x8xf32> to vector<16x8xf32>
    %64 = arith.addf %61, %63 : vector<16x8xf32>
    %c0_54 = arith.constant 0 : index
    %c0_55 = arith.constant 0 : index
    %65 = vector.load %arg18[%c0_54, %c0_55] : memref<8x8xf32, #tpu.memory_space<vmem>>, vector<8x8xf32>
    %cst_56 = arith.constant dense<0.000000e+00> : vector<16x8xf32>
    %66 = tpu.matmul %1, %65, %cst_56 {dimension_numbers = #tpu.dot_dimension_numbers<[1], [0], [0], [1], [0, 0, 1, 1], [], []>} : vector<16x8xf32>, vector<8x8xf32>, vector<16x8xf32> -> vector<16x8xf32>
    %67 = arith.addf %64, %66 : vector<16x8xf32>
    %cst_57 = arith.constant 0.000000e+00 : f32
    %68 = vector.broadcast %cst_57 : f32 to vector<16x8xf32>
    %69 = arith.maximumf %67, %68 : vector<16x8xf32>
    %cst_58 = arith.constant dense<0.000000e+00> : vector<16x8xf32>
    %70 = tpu.matmul %3, %69, %cst_58 {dimension_numbers = #tpu.dot_dimension_numbers<[1], [0], [0], [1], [0, 0, 1, 1], [], []>} : vector<16x16xf32>, vector<16x8xf32>, vector<16x8xf32> -> vector<16x8xf32>
    %c0_59 = arith.constant 0 : index
    %c0_60 = arith.constant 0 : index
    %71 = vector.load %arg19[%c0_59, %c0_60] : memref<8x8xf32, #tpu.memory_space<vmem>>, vector<8x8xf32>
    %cst_61 = arith.constant dense<0.000000e+00> : vector<16x8xf32>
    %72 = tpu.matmul %70, %71, %cst_61 {dimension_numbers = #tpu.dot_dimension_numbers<[1], [0], [0], [1], [0, 0, 1, 1], [], []>} : vector<16x8xf32>, vector<8x8xf32>, vector<16x8xf32> -> vector<16x8xf32>
    %c0_62 = arith.constant 0 : index
    %c0_63 = arith.constant 0 : index
    %73 = vector.load %arg20[%c0_62, %c0_63] : memref<1x8xf32, #tpu.memory_space<vmem>>, vector<1x8xf32>
    %74 = vector.broadcast %73 : vector<1x8xf32> to vector<16x8xf32>
    %75 = arith.addf %72, %74 : vector<16x8xf32>
    %c0_64 = arith.constant 0 : index
    %c0_65 = arith.constant 0 : index
    %76 = vector.load %arg21[%c0_64, %c0_65] : memref<8x8xf32, #tpu.memory_space<vmem>>, vector<8x8xf32>
    %cst_66 = arith.constant dense<0.000000e+00> : vector<16x8xf32>
    %77 = tpu.matmul %69, %76, %cst_66 {dimension_numbers = #tpu.dot_dimension_numbers<[1], [0], [0], [1], [0, 0, 1, 1], [], []>} : vector<16x8xf32>, vector<8x8xf32>, vector<16x8xf32> -> vector<16x8xf32>
    %78 = arith.addf %75, %77 : vector<16x8xf32>
    %cst_67 = arith.constant 0.000000e+00 : f32
    %79 = vector.broadcast %cst_67 : f32 to vector<16x8xf32>
    %80 = arith.maximumf %78, %79 : vector<16x8xf32>
    %cst_68 = arith.constant dense<0.000000e+00> : vector<16x8xf32>
    %81 = tpu.matmul %3, %80, %cst_68 {dimension_numbers = #tpu.dot_dimension_numbers<[1], [0], [0], [1], [0, 0, 1, 1], [], []>} : vector<16x16xf32>, vector<16x8xf32>, vector<16x8xf32> -> vector<16x8xf32>
    %c0_69 = arith.constant 0 : index
    %c0_70 = arith.constant 0 : index
    %82 = vector.load %arg22[%c0_69, %c0_70] : memref<8x8xf32, #tpu.memory_space<vmem>>, vector<8x8xf32>
    %cst_71 = arith.constant dense<0.000000e+00> : vector<16x8xf32>
    %83 = tpu.matmul %81, %82, %cst_71 {dimension_numbers = #tpu.dot_dimension_numbers<[1], [0], [0], [1], [0, 0, 1, 1], [], []>} : vector<16x8xf32>, vector<8x8xf32>, vector<16x8xf32> -> vector<16x8xf32>
    %c0_72 = arith.constant 0 : index
    %c0_73 = arith.constant 0 : index
    %84 = vector.load %arg23[%c0_72, %c0_73] : memref<1x8xf32, #tpu.memory_space<vmem>>, vector<1x8xf32>
    %85 = vector.broadcast %84 : vector<1x8xf32> to vector<16x8xf32>
    %86 = arith.addf %83, %85 : vector<16x8xf32>
    %c0_74 = arith.constant 0 : index
    %c0_75 = arith.constant 0 : index
    %87 = vector.load %arg24[%c0_74, %c0_75] : memref<8x8xf32, #tpu.memory_space<vmem>>, vector<8x8xf32>
    %cst_76 = arith.constant dense<0.000000e+00> : vector<16x8xf32>
    %88 = tpu.matmul %80, %87, %cst_76 {dimension_numbers = #tpu.dot_dimension_numbers<[1], [0], [0], [1], [0, 0, 1, 1], [], []>} : vector<16x8xf32>, vector<8x8xf32>, vector<16x8xf32> -> vector<16x8xf32>
    %89 = arith.addf %86, %88 : vector<16x8xf32>
    %cst_77 = arith.constant 0.000000e+00 : f32
    %90 = vector.broadcast %cst_77 : f32 to vector<16x8xf32>
    %91 = arith.maximumf %89, %90 : vector<16x8xf32>
    %cst_78 = arith.constant dense<0.000000e+00> : vector<4x8xf32>
    %92 = tpu.matmul %58, %69, %cst_78 {dimension_numbers = #tpu.dot_dimension_numbers<[0], [0], [1], [1], [0, 1, 1, 1], [], []>} : vector<16x4xf32>, vector<16x8xf32>, vector<4x8xf32> -> vector<4x8xf32>
    %c0_79 = arith.constant 0 : index
    %c0_80 = arith.constant 0 : index
    %c0_81 = arith.constant 0 : index
    %93 = vector.load %arg25[%c0_79, %c0_80, %c0_81] : memref<1x4x8xf32, #tpu.memory_space<vmem>>, vector<1x4x8xf32>
    %94 = vector.shape_cast %93 : vector<1x4x8xf32> to vector<4x8xf32>
    %95 = vector.shape_cast %92 : vector<4x8xf32> to vector<1x4x8xf32>
    tpu.vector_store %arg25[%c0_79, %c0_80, %c0_81], %95 {strides = array<i32>} : memref<1x4x8xf32, #tpu.memory_space<vmem>>, vector<1x4x8xf32>,
    %cst_82 = arith.constant dense<0.000000e+00> : vector<4x8xf32>
    %96 = tpu.matmul %58, %80, %cst_82 {dimension_numbers = #tpu.dot_dimension_numbers<[0], [0], [1], [1], [0, 1, 1, 1], [], []>} : vector<16x4xf32>, vector<16x8xf32>, vector<4x8xf32> -> vector<4x8xf32>
    %c0_83 = arith.constant 0 : index
    %c0_84 = arith.constant 0 : index
    %c0_85 = arith.constant 0 : index
    %97 = vector.load %arg26[%c0_83, %c0_84, %c0_85] : memref<1x4x8xf32, #tpu.memory_space<vmem>>, vector<1x4x8xf32>
    %98 = vector.shape_cast %97 : vector<1x4x8xf32> to vector<4x8xf32>
    %99 = vector.shape_cast %96 : vector<4x8xf32> to vector<1x4x8xf32>
    tpu.vector_store %arg26[%c0_83, %c0_84, %c0_85], %99 {strides = array<i32>} : memref<1x4x8xf32, #tpu.memory_space<vmem>>, vector<1x4x8xf32>,
    %cst_86 = arith.constant dense<0.000000e+00> : vector<4x8xf32>
    %100 = tpu.matmul %58, %91, %cst_86 {dimension_numbers = #tpu.dot_dimension_numbers<[0], [0], [1], [1], [0, 1, 1, 1], [], []>} : vector<16x4xf32>, vector<16x8xf32>, vector<4x8xf32> -> vector<4x8xf32>
    %c0_87 = arith.constant 0 : index
    %c0_88 = arith.constant 0 : index
    %c0_89 = arith.constant 0 : index
    %101 = vector.load %arg27[%c0_87, %c0_88, %c0_89] : memref<1x4x8xf32, #tpu.memory_space<vmem>>, vector<1x4x8xf32>
    %102 = vector.shape_cast %101 : vector<1x4x8xf32> to vector<4x8xf32>
    %103 = vector.shape_cast %100 : vector<4x8xf32> to vector<1x4x8xf32>
    tpu.vector_store %arg27[%c0_87, %c0_88, %c0_89], %103 {strides = array<i32>} : memref<1x4x8xf32, #tpu.memory_space<vmem>>, vector<1x4x8xf32>,
    %cst_90 = arith.constant dense<0.000000e+00> : vector<4x16xf32>
    %104 = tpu.matmul %58, %3, %cst_90 {dimension_numbers = #tpu.dot_dimension_numbers<[0], [0], [1], [1], [0, 1, 1, 1], [], []>} : vector<16x4xf32>, vector<16x16xf32>, vector<4x16xf32> -> vector<4x16xf32>
    %cst_91 = arith.constant dense<0.000000e+00> : vector<4x4xf32>
    %105 = tpu.matmul %104, %58, %cst_91 {dimension_numbers = #tpu.dot_dimension_numbers<[1], [0], [0], [1], [0, 0, 1, 1], [], []>} : vector<4x16xf32>, vector<16x4xf32>, vector<4x4xf32> -> vector<4x4xf32>
    %c0_92 = arith.constant 0 : index
    %c0_93 = arith.constant 0 : index
    %c0_94 = arith.constant 0 : index
    %106 = vector.load %arg28[%c0_92, %c0_93, %c0_94] : memref<1x4x4xf32, #tpu.memory_space<vmem>>, vector<1x4x4xf32>
    %107 = vector.shape_cast %106 : vector<1x4x4xf32> to vector<4x4xf32>
    %108 = vector.shape_cast %105 : vector<4x4xf32> to vector<1x4x4xf32>
    tpu.vector_store %arg28[%c0_92, %c0_93, %c0_94], %108 {strides = array<i32>} : memref<1x4x4xf32, #tpu.memory_space<vmem>>, vector<1x4x4xf32>,
    %cst_95 = arith.constant dense<0.000000e+00> : vector<4x4xf32>
    %109 = tpu.matmul %58, %58, %cst_95 {dimension_numbers = #tpu.dot_dimension_numbers<[0], [0], [1], [1], [0, 1, 1, 1], [], []>} : vector<16x4xf32>, vector<16x4xf32>, vector<4x4xf32> -> vector<4x4xf32>
    %110 = tpu.iota {dimensions = array<i32: 0>} : vector<4x4xi32>
    %111 = tpu.iota {dimensions = array<i32: 1>} : vector<4x4xi32>
    %112 = arith.cmpi eq, %110, %111 : vector<4x4xi32>
    %cst_96 = arith.constant 0.000000e+00 : f32
    %113 = vector.broadcast %cst_96 : f32 to vector<4x4xf32>
    %114 = arith.select %112, %105, %113 : vector<4x4xi1>, vector<4x4xf32>
    %115 = vector.shape_cast %114 : vector<4x4xf32> to vector<1x4x4xf32>
    %cst_97 = arith.constant dense<0.000000e+00> : vector<1xf32>
    %116 = vector.multi_reduction <add>, %115, %cst_97 [1, 2] : vector<1x4x4xf32> to vector<1xf32>
    %117 = vector.shape_cast %116 : vector<1xf32> to vector<1x1x1xf32>
    %118 = vector.extract %117[0, 0, 0] : f32 from vector<1x1x1xf32>
    %119 = vector.broadcast %118 : f32 to vector<1x1xf32>
    %120 = arith.mulf %3, %3 : vector<16x16xf32>
    %121 = vector.shape_cast %120 : vector<16x16xf32> to vector<1x16x16xf32>
    %cst_98 = arith.constant dense<0.000000e+00> : vector<1xf32>
    %122 = vector.multi_reduction <add>, %121, %cst_98 [1, 2] : vector<1x16x16xf32> to vector<1xf32>
    %123 = vector.shape_cast %122 : vector<1xf32> to vector<1x1x1xf32>
    %124 = vector.extract %123[0, 0, 0] : f32 from vector<1x1x1xf32>
    %125 = vector.broadcast %124 : f32 to vector<1x1xf32>
    %126 = arith.mulf %109, %109 : vector<4x4xf32>
    %127 = vector.shape_cast %126 : vector<4x4xf32> to vector<1x4x4xf32>
    %cst_99 = arith.constant dense<0.000000e+00> : vector<1xf32>
    %128 = vector.multi_reduction <add>, %127, %cst_99 [1, 2] : vector<1x4x4xf32> to vector<1xf32>
    %129 = vector.shape_cast %128 : vector<1xf32> to vector<1x1x1xf32>
    %130 = vector.extract %129[0, 0, 0] : f32 from vector<1x1x1xf32>
    %131 = vector.broadcast %130 : f32 to vector<1x1xf32>
    %cst_100 = arith.constant 2.000000e+00 : f32
    %132 = vector.broadcast %cst_100 : f32 to vector<1x1xf32>
    %133 = arith.mulf %132, %119 : vector<1x1xf32>
    %134 = arith.subf %125, %133 : vector<1x1xf32>
    %135 = arith.addf %134, %131 : vector<1x1xf32>
    %c0_101 = arith.constant 0 : index
    %c0_102 = arith.constant 0 : index
    %c0_103 = arith.constant 0 : index
    %136 = vector.load %arg29[%c0_101, %c0_102, %c0_103] : memref<1x1x1xf32, #tpu.memory_space<vmem>>, vector<1x1x1xf32>
    %137 = vector.shape_cast %136 : vector<1x1x1xf32> to vector<1x1xf32>
    %138 = vector.shape_cast %135 : vector<1x1xf32> to vector<1x1x1xf32>
    tpu.vector_store %arg29[%c0_101, %c0_102, %c0_103], %138 {strides = array<i32>} : memref<1x1x1xf32, #tpu.memory_space<vmem>>, vector<1x1x1xf32>,
    %cst_104 = arith.constant 0.000000e+00 : f32
    %139 = vector.broadcast %cst_104 : f32 to vector<16x4xf32>
    %140 = arith.subf %139, %58 : vector<16x4xf32>
    %cst_105 = arith.constant 1.000000e-15 : f32
    %141 = vector.broadcast %cst_105 : f32 to vector<16x4xf32>
    %142 = arith.addf %58, %141 : vector<16x4xf32>
    %143 = math.log %142 : vector<16x4xf32>
    %144 = arith.mulf %140, %143 : vector<16x4xf32>
    %145 = vector.shape_cast %144 : vector<16x4xf32> to vector<1x16x4xf32>
    %cst_106 = arith.constant dense<0.000000e+00> : vector<1xf32>
    %146 = vector.multi_reduction <add>, %145, %cst_106 [1, 2] : vector<1x16x4xf32> to vector<1xf32>
    %147 = vector.shape_cast %146 : vector<1xf32> to vector<1x1x1xf32>
    %148 = vector.extract %147[0, 0, 0] : f32 from vector<1x1x1xf32>
    %149 = vector.broadcast %148 : f32 to vector<1x1xf32>
    %c0_107 = arith.constant 0 : index
    %c0_108 = arith.constant 0 : index
    %c0_109 = arith.constant 0 : index
    %150 = vector.load %arg30[%c0_107, %c0_108, %c0_109] : memref<1x1x1xf32, #tpu.memory_space<vmem>>, vector<1x1x1xf32>
    %151 = vector.shape_cast %150 : vector<1x1x1xf32> to vector<1x1xf32>
    %152 = vector.shape_cast %149 : vector<1x1xf32> to vector<1x1x1xf32>
    tpu.vector_store %arg30[%c0_107, %c0_108, %c0_109], %152 {strides = array<i32>} : memref<1x1x1xf32, #tpu.memory_space<vmem>>, vector<1x1x1xf32>,
    return
  }
  func.func @transform_0(%arg0: i32) -> (i32, i32, i32) {
    %c0_i32 = arith.constant 0 : i32
    %c0_i32_0 = arith.constant 0 : i32
    %c0_i32_1 = arith.constant 0 : i32
    return %arg0, %c0_i32, %c0_i32_0 : i32, i32, i32
  }
  func.func @transform_1(%arg0: i32) -> (i32, i32, i32) {
    %c0_i32 = arith.constant 0 : i32
    %c0_i32_0 = arith.constant 0 : i32
    %c0_i32_1 = arith.constant 0 : i32
    return %arg0, %c0_i32, %c0_i32_0 : i32, i32, i32
  }
  func.func @transform_2(%arg0: i32) -> (i32, i32) {
    %c0_i32 = arith.constant 0 : i32
    %c0_i32_0 = arith.constant 0 : i32
    %c0_i32_1 = arith.constant 0 : i32
    return %c0_i32, %c0_i32_0 : i32, i32
  }
  func.func @transform_3(%arg0: i32) -> (i32, i32) {
    %c0_i32 = arith.constant 0 : i32
    %c0_i32_0 = arith.constant 0 : i32
    %c0_i32_1 = arith.constant 0 : i32
    return %c0_i32, %c0_i32_0 : i32, i32
  }
  func.func @transform_4(%arg0: i32) -> (i32, i32) {
    %c0_i32 = arith.constant 0 : i32
    %c0_i32_0 = arith.constant 0 : i32
    %c0_i32_1 = arith.constant 0 : i32
    return %c0_i32, %c0_i32_0 : i32, i32
  }
  func.func @transform_5(%arg0: i32) -> (i32, i32) {
    %c0_i32 = arith.constant 0 : i32
    %c0_i32_0 = arith.constant 0 : i32
    %c0_i32_1 = arith.constant 0 : i32
    return %c0_i32, %c0_i32_0 : i32, i32
  }
  func.func @transform_6(%arg0: i32) -> (i32, i32) {
    %c0_i32 = arith.constant 0 : i32
    %c0_i32_0 = arith.constant 0 : i32
    %c0_i32_1 = arith.constant 0 : i32
    return %c0_i32, %c0_i32_0 : i32, i32
  }
  func.func @transform_7(%arg0: i32) -> (i32, i32) {
    %c0_i32 = arith.constant 0 : i32
    %c0_i32_0 = arith.constant 0 : i32
    %c0_i32_1 = arith.constant 0 : i32
    return %c0_i32, %c0_i32_0 : i32, i32
  }
  func.func @transform_8(%arg0: i32) -> (i32, i32) {
    %c0_i32 = arith.constant 0 : i32
    %c0_i32_0 = arith.constant 0 : i32
    %c0_i32_1 = arith.constant 0 : i32
    return %c0_i32, %c0_i32_0 : i32, i32
  }
  func.func @transform_9(%arg0: i32) -> (i32, i32) {
    %c0_i32 = arith.constant 0 : i32
    %c0_i32_0 = arith.constant 0 : i32
    %c0_i32_1 = arith.constant 0 : i32
    return %c0_i32, %c0_i32_0 : i32, i32
  }
  func.func @transform_10(%arg0: i32) -> (i32, i32) {
    %c0_i32 = arith.constant 0 : i32
    %c0_i32_0 = arith.constant 0 : i32
    %c0_i32_1 = arith.constant 0 : i32
    return %c0_i32, %c0_i32_0 : i32, i32
  }
  func.func @transform_11(%arg0: i32) -> (i32, i32) {
    %c0_i32 = arith.constant 0 : i32
    %c0_i32_0 = arith.constant 0 : i32
    %c0_i32_1 = arith.constant 0 : i32
    return %c0_i32, %c0_i32_0 : i32, i32
  }
  func.func @transform_12(%arg0: i32) -> (i32, i32) {
    %c0_i32 = arith.constant 0 : i32
    %c0_i32_0 = arith.constant 0 : i32
    %c0_i32_1 = arith.constant 0 : i32
    return %c0_i32, %c0_i32_0 : i32, i32
  }
  func.func @transform_13(%arg0: i32) -> (i32, i32) {
    %c0_i32 = arith.constant 0 : i32
    %c0_i32_0 = arith.constant 0 : i32
    %c0_i32_1 = arith.constant 0 : i32
    return %c0_i32, %c0_i32_0 : i32, i32
  }
  func.func @transform_14(%arg0: i32) -> (i32, i32) {
    %c0_i32 = arith.constant 0 : i32
    %c0_i32_0 = arith.constant 0 : i32
    %c0_i32_1 = arith.constant 0 : i32
    return %c0_i32, %c0_i32_0 : i32, i32
  }
  func.func @transform_15(%arg0: i32) -> (i32, i32) {
    %c0_i32 = arith.constant 0 : i32
    %c0_i32_0 = arith.constant 0 : i32
    %c0_i32_1 = arith.constant 0 : i32
    return %c0_i32, %c0_i32_0 : i32, i32
  }
  func.func @transform_16(%arg0: i32) -> (i32, i32) {
    %c0_i32 = arith.constant 0 : i32
    %c0_i32_0 = arith.constant 0 : i32
    %c0_i32_1 = arith.constant 0 : i32
    return %c0_i32, %c0_i32_0 : i32, i32
  }
  func.func @transform_17(%arg0: i32) -> (i32, i32) {
    %c0_i32 = arith.constant 0 : i32
    %c0_i32_0 = arith.constant 0 : i32
    %c0_i32_1 = arith.constant 0 : i32
    return %c0_i32, %c0_i32_0 : i32, i32
  }
  func.func @transform_18(%arg0: i32) -> (i32, i32) {
    %c0_i32 = arith.constant 0 : i32
    %c0_i32_0 = arith.constant 0 : i32
    %c0_i32_1 = arith.constant 0 : i32
    return %c0_i32, %c0_i32_0 : i32, i32
  }
  func.func @transform_19(%arg0: i32) -> (i32, i32) {
    %c0_i32 = arith.constant 0 : i32
    %c0_i32_0 = arith.constant 0 : i32
    %c0_i32_1 = arith.constant 0 : i32
    return %c0_i32, %c0_i32_0 : i32, i32
  }
  func.func @transform_20(%arg0: i32) -> (i32, i32) {
    %c0_i32 = arith.constant 0 : i32
    %c0_i32_0 = arith.constant 0 : i32
    %c0_i32_1 = arith.constant 0 : i32
    return %c0_i32, %c0_i32_0 : i32, i32
  }
  func.func @transform_21(%arg0: i32) -> (i32, i32) {
    %c0_i32 = arith.constant 0 : i32
    %c0_i32_0 = arith.constant 0 : i32
    %c0_i32_1 = arith.constant 0 : i32
    return %c0_i32, %c0_i32_0 : i32, i32
  }
  func.func @transform_22(%arg0: i32) -> (i32, i32) {
    %c0_i32 = arith.constant 0 : i32
    %c0_i32_0 = arith.constant 0 : i32
    %c0_i32_1 = arith.constant 0 : i32
    return %c0_i32, %c0_i32_0 : i32, i32
  }
  func.func @transform_23(%arg0: i32) -> (i32, i32) {
    %c0_i32 = arith.constant 0 : i32
    %c0_i32_0 = arith.constant 0 : i32
    %c0_i32_1 = arith.constant 0 : i32
    return %c0_i32, %c0_i32_0 : i32, i32
  }
  func.func @transform_24(%arg0: i32) -> (i32, i32, i32) {
    %c0_i32 = arith.constant 0 : i32
    %c0_i32_0 = arith.constant 0 : i32
    %c0_i32_1 = arith.constant 0 : i32
    return %arg0, %c0_i32, %c0_i32_0 : i32, i32, i32
  }
  func.func @transform_25(%arg0: i32) -> (i32, i32, i32) {
    %c0_i32 = arith.constant 0 : i32
    %c0_i32_0 = arith.constant 0 : i32
    %c0_i32_1 = arith.constant 0 : i32
    return %arg0, %c0_i32, %c0_i32_0 : i32, i32, i32
  }
  func.func @transform_26(%arg0: i32) -> (i32, i32, i32) {
    %c0_i32 = arith.constant 0 : i32
    %c0_i32_0 = arith.constant 0 : i32
    %c0_i32_1 = arith.constant 0 : i32
    return %arg0, %c0_i32, %c0_i32_0 : i32, i32, i32
  }
  func.func @transform_27(%arg0: i32) -> (i32, i32, i32) {
    %c0_i32 = arith.constant 0 : i32
    %c0_i32_0 = arith.constant 0 : i32
    %c0_i32_1 = arith.constant 0 : i32
    return %arg0, %c0_i32, %c0_i32_0 : i32, i32, i32
  }
  func.func @transform_28(%arg0: i32) -> (i32, i32, i32) {
    %c0_i32 = arith.constant 0 : i32
    %c0_i32_0 = arith.constant 0 : i32
    %c0_i32_1 = arith.constant 0 : i32
    return %arg0, %c0_i32, %c0_i32_0 : i32, i32, i32
  }
  func.func @transform_29(%arg0: i32) -> (i32, i32, i32) {
    %c0_i32 = arith.constant 0 : i32
    %c0_i32_0 = arith.constant 0 : i32
    %c0_i32_1 = arith.constant 0 : i32
    return %arg0, %c0_i32, %c0_i32_0 : i32, i32, i32
  }
}

</mosaic_0001>

<llo_original>
// kernel: tpu_custom_call.1
$region0: #{tpu_custom_call.1}
  #allocation0 [shape = 'u32[]', space=smem, size = 0x4, offset = 0x4, fixed_abs, tag = 'smem constant byte address 0x4 - core index']
  #allocation1 [shape = 'u32[144,128]{1,0:T(1,128)}', space=vmem, size = 0x12000, scoped, tag = 'internal scratch']
  %s0 = inlined_call_operand.smem [shape: u32[30], index: -1, kind: input, shape index: {}]
  %s1 = sld [smem:[%s0]]
  %s2 = scalar_lea.smem %s0, 1
  %s3 = sld [smem:[%s2]]
  %s4 = scalar_lea.smem %s0, 2
  %s5 = sld [smem:[%s4]]
  %s6 = scalar_lea.smem %s0, 3
  %s7 = sld [smem:[%s6]]
  %s8 = scalar_lea.smem %s0, 4
  %s9 = sld [smem:[%s8]]
  %s10 = scalar_lea.smem %s0, 5
  %s11 = sld [smem:[%s10]]
  %s12 = scalar_lea.smem %s0, 6
  %s13 = sld [smem:[%s12]]
  %s14 = scalar_lea.smem %s0, 7
  %s15 = sld [smem:[%s14]]
  %s16 = scalar_lea.smem %s0, 8
  %s17 = sld [smem:[%s16]]
  %s18 = scalar_lea.smem %s0, 9
  %s19 = sld [smem:[%s18]]
  %s20 = scalar_lea.smem %s0, 10
  %s21 = sld [smem:[%s20]]
  %s22 = scalar_lea.smem %s0, 11
  %s23 = sld [smem:[%s22]]
  %s24 = scalar_lea.smem %s0, 12
  %s25 = sld [smem:[%s24]]
  %s26 = scalar_lea.smem %s0, 13
  %s27 = sld [smem:[%s26]]
  %s28 = scalar_lea.smem %s0, 14
  %s29 = sld [smem:[%s28]]
  %s30 = scalar_lea.smem %s0, 15
  %s31 = sld [smem:[%s30]]
  %s32 = scalar_lea.smem %s0, 16
  %s33 = sld [smem:[%s32]]
  %s34 = scalar_lea.smem %s0, 17
  %s35 = sld [smem:[%s34]]
  %s36 = scalar_lea.smem %s0, 18
  %s37 = sld [smem:[%s36]]
  %s38 = scalar_lea.smem %s0, 19
  %s39 = sld [smem:[%s38]]
  %s40 = scalar_lea.smem %s0, 20
  %s41 = sld [smem:[%s40]]
  %s42 = scalar_lea.smem %s0, 21
  %s43 = sld [smem:[%s42]]
  %s44 = scalar_lea.smem %s0, 22
  %s45 = sld [smem:[%s44]]
  %s46 = scalar_lea.smem %s0, 23
  %s47 = sld [smem:[%s46]]
  %s48 = scalar_lea.smem %s0, 24
  %s49 = sld [smem:[%s48]]
  %s50 = scalar_lea.smem %s0, 25
  %s51 = sld [smem:[%s50]]
  %s52 = scalar_lea.smem %s0, 26
  %s53 = sld [smem:[%s52]]
  %s54 = scalar_lea.smem %s0, 27
  %s55 = sld [smem:[%s54]]
  %s56 = scalar_lea.smem %s0, 28
  %s57 = sld [smem:[%s56]]
  %s58 = scalar_lea.smem %s0, 29
  %s59 = sld [smem:[%s58]]
  %60 = xla_tuple %s49, %s51, %s53, %s55, %s57, %s59
  %s61 = sld [smem:[#allocation0]]
  $region177: #{tpu_custom_call.1} parent=0
    _
  %s63 = ssub.s32 1, %s61
  %s64 = scalar_select 0, %s63, %s61
  $region1: #{tpu_custom_call.1} parent=0
    #allocation2 [shape = 'u8[512]{0}', space=vmem, size = 0x400, scoped, tag = 'input window, operand 6, single buffered']
    #allocation3 [shape = 's32[2]{0}', space=sflag, size = 0x8, scoped, tag = 'scoped memory for tpu_custom_call.1']
    #allocation4 [shape = 's32[2]{0}', space=sflag, size = 0x8, scoped, tag = 'scoped memory for tpu_custom_call.1']
    #allocation5 [shape = 'u8[512]{0}', space=vmem, size = 0x400, scoped, tag = 'input window, operand 9, single buffered']
    #allocation6 [shape = 's32[1]{0}', space=sflag, size = 0x4, scoped, tag = 'scoped memory for tpu_custom_call.1']
    #allocation7 [shape = 'u8[4096]{0}', space=vmem, size = 0x1000, scoped, tag = 'output window, operand 0']
    #allocation8 [shape = 'u8[4096]{0}', space=vmem, size = 0x1000, scoped, tag = 'output window, operand 1']
    #allocation9 [shape = 's32[2]{0}', space=sflag, size = 0x8, scoped, tag = 'scoped memory for tpu_custom_call.1']
    #allocation10 [shape = 'u8[4096]{0}', space=vmem, size = 0x1000, scoped, tag = 'output window, operand 2']
    #allocation11 [shape = 'u8[4096]{0}', space=vmem, size = 0x1000, scoped, tag = 'output window, operand 3']
    #allocation12 [shape = 's32[2]{0}', space=sflag, size = 0x8, scoped, tag = 'scoped memory for tpu_custom_call.1']
    %65 = vsyncpa [#allocation3], 0
    %66 = vsyncpa [#allocation6], 0
    %67 = vsyncpa [#allocation4], 0
    %s68 = scalar_lea.sflag [#allocation4], 1
    %69 = vsyncpa %s68, 0
    %70 = vsyncpa [#allocation9], 0
    %s71 = scalar_lea.sflag [#allocation9], 1
    %72 = vsyncpa %s71, 0
    %73 = vsyncpa [#allocation12], 0
    %s74 = scalar_lea.sflag [#allocation12], 1
    %75 = vsyncpa %s74, 0
    loop: start=0, step=1, limit=4
    $region2: #{tpu_custom_call.1} parent=1 // loop_pre_header
      _
    $region3: #{tpu_custom_call.1} parent=1 // loop_header
      %s77 = sphi 0, %s81
      %p78 = scmp.ge.s32.totalorder %s77, 4
      %s87 = sphi 0, %s89
      %s90 = sphi 0, %s87
      %s91 = sphi 0, %s90
      %s107 = sphi 0, %s91
      %s113 = sphi 0, %s115
      %s116 = sphi 0, %s113
      %s117 = sphi 0, %s116
      %s133 = sphi 0, %s117
      %s137 = sphi 0, %s137
      %s139 = sphi 0, %s137
      %s140 = sphi 0, %s139
      %s154 = sphi 0, %s140
      %s158 = sphi 0, %s158
      %s160 = sphi 0, %s158
      %s161 = sphi 0, %s160
      %s175 = sphi 0, %s161
      %s179 = sphi 0, %s179
      %s181 = sphi 0, %s179
      %s182 = sphi 0, %s181
      %s196 = sphi 0, %s182
      %s200 = sphi 0, %s200
      %s202 = sphi 0, %s200
      %s203 = sphi 0, %s202
      %s217 = sphi 0, %s203
      %s221 = sphi 0, %s221
      %s223 = sphi 0, %s221
      %s224 = sphi 0, %s223
      %s238 = sphi 0, %s224
      %s242 = sphi 0, %s242
      %s244 = sphi 0, %s242
      %s245 = sphi 0, %s244
      %s259 = sphi 0, %s245
      %s263 = sphi 0, %s263
      %s265 = sphi 0, %s263
      %s266 = sphi 0, %s265
      %s280 = sphi 0, %s266
      %s284 = sphi 0, %s284
      %s286 = sphi 0, %s284
      %s287 = sphi 0, %s286
      %s301 = sphi 0, %s287
      %s305 = sphi 0, %s305
      %s307 = sphi 0, %s305
      %s308 = sphi 0, %s307
      %s322 = sphi 0, %s308
      %s326 = sphi 0, %s326
      %s328 = sphi 0, %s326
      %s329 = sphi 0, %s328
      %s343 = sphi 0, %s329
      %s347 = sphi 0, %s347
      %s349 = sphi 0, %s347
      %s350 = sphi 0, %s349
      %s364 = sphi 0, %s350
      %s368 = sphi 0, %s368
      %s370 = sphi 0, %s368
      %s371 = sphi 0, %s370
      %s385 = sphi 0, %s371
      %s389 = sphi 0, %s389
      %s391 = sphi 0, %s389
      %s392 = sphi 0, %s391
      %s406 = sphi 0, %s392
      %s410 = sphi 0, %s410
      %s412 = sphi 0, %s410
      %s413 = sphi 0, %s412
      %s427 = sphi 0, %s413
      %s431 = sphi 0, %s431
      %s433 = sphi 0, %s431
      %s434 = sphi 0, %s433
      %s448 = sphi 0, %s434
      %s452 = sphi 0, %s452
      %s454 = sphi 0, %s452
      %s455 = sphi 0, %s454
      %s469 = sphi 0, %s455
      %s473 = sphi 0, %s473
      %s475 = sphi 0, %s473
      %s476 = sphi 0, %s475
      %s490 = sphi 0, %s476
      %s494 = sphi 0, %s494
      %s496 = sphi 0, %s494
      %s497 = sphi 0, %s496
      %s511 = sphi 0, %s497
      %s515 = sphi 0, %s515
      %s517 = sphi 0, %s515
      %s518 = sphi 0, %s517
      %s532 = sphi 0, %s518
      %s536 = sphi 0, %s536
      %s538 = sphi 0, %s536
      %s539 = sphi 0, %s538
      %s553 = sphi 0, %s539
      %s557 = sphi 0, %s557
      %s559 = sphi 0, %s557
      %s560 = sphi 0, %s559
      %s574 = sphi 0, %s560
      %s578 = sphi 0, %s578
      %s580 = sphi 0, %s578
      %s581 = sphi 0, %s580
      %s595 = sphi 0, %s581
      %s601 = sphi 0, %s603
      %s604 = sphi 0, %s601
      %s605 = sphi 0, %s604
      %s621 = sphi 0, %s605
      %s627 = sphi 0, %s629
      %s630 = sphi 0, %s627
      %s631 = sphi 0, %s630
      %s647 = sphi 0, %s631
      %s653 = sphi 0, %s655
      %s656 = sphi 0, %s653
      %s657 = sphi 0, %s656
      %s673 = sphi 0, %s657
      %s679 = sphi 0, %s681
      %s682 = sphi 0, %s679
      %s683 = sphi 0, %s682
      %s699 = sphi 0, %s683
      %s705 = sphi 0, %s707
      %s708 = sphi 0, %s705
      %s709 = sphi 0, %s708
      %s725 = sphi 0, %s709
      %s731 = sphi 0, %s733
      %s734 = sphi 0, %s731
      %s735 = sphi 0, %s734
      %s751 = sphi 0, %s735
    $region4: #{tpu_custom_call.1} parent=1 // loop_header_branch
      %80 = sbr.rel (%p78) target = $region8
    $region5: #{tpu_custom_call.1} parent=1 // loop_body
      %s82 = ssub.s32 %s77, 1
      %s83 = ssub.s32 %s77, 2
      %s84 = sadd.s32 %s77, 1
      %s85 = ssub.s32 %s77, %s84
      %p86 = scmp.eq.s32.totalorder %s85, 0
      %s88 = sadd.s32 %s87, 1
      %s89 = scalar_select %p86, %s87, %s88
      %p92 = pneg %p86
      %p93 = scmp.eq.s32.totalorder %s77, 1
      %p94 = por %p92, %p93
      %p95 = scmp.ne.s32.totalorder %s87, %s90
      %p96 = scmp.eq.s32.totalorder %s77, 0
      %p97 = por %p95, %p96
      %p98 = scmp.ne.s32.totalorder %s87, %s90
      %p99 = scmp.eq.s32.totalorder %s82, 1
      %p100 = por %p98, %p99
      %p101 = scmp.ne.s32.totalorder %s90, %s91
      %p102 = scmp.eq.s32.totalorder %s82, 0
      %p103 = por %p101, %p102
      %p104 = scmp.ne.s32.totalorder %s90, %s91
      %p105 = scmp.eq.s32.totalorder %s83, 1
      %p106 = por %p104, %p105
      %p108 = scmp.ne.s32.totalorder %s91, %s107
      %p109 = scmp.eq.s32.totalorder %s83, 0
      %p110 = por %p108, %p109
      %s111 = ssub.s32 %s77, %s84
      %p112 = scmp.eq.s32.totalorder %s111, 0
      %s114 = sadd.s32 %s113, 1
      %s115 = scalar_select %p112, %s113, %s114
      %p118 = pneg %p112
      %p119 = scmp.eq.s32.totalorder %s77, 1
      %p120 = por %p118, %p119
      %p121 = scmp.ne.s32.totalorder %s113, %s116
      %p122 = scmp.eq.s32.totalorder %s77, 0
      %p123 = por %p121, %p122
      %p124 = scmp.ne.s32.totalorder %s113, %s116
      %p125 = scmp.eq.s32.totalorder %s82, 1
      %p126 = por %p124, %p125
      %p127 = scmp.ne.s32.totalorder %s116, %s117
      %p128 = scmp.eq.s32.totalorder %s82, 0
      %p129 = por %p127, %p128
      %p130 = scmp.ne.s32.totalorder %s116, %s117
      %p131 = scmp.eq.s32.totalorder %s83, 1
      %p132 = por %p130, %p131
      %p134 = scmp.ne.s32.totalorder %s117, %s133
      %p135 = scmp.eq.s32.totalorder %s83, 0
      %p136 = por %p134, %p135
      %s138 = sadd.s32 %s137, 1
      %p141 = scmp.eq.s32.totalorder %s77, 1
      %p142 = scmp.ne.s32.totalorder %s137, %s139
      %p143 = scmp.eq.s32.totalorder %s77, 0
      %p144 = por %p142, %p143
      %p145 = scmp.ne.s32.totalorder %s137, %s139
      %p146 = scmp.eq.s32.totalorder %s82, 1
      %p147 = por %p145, %p146
      %p148 = scmp.ne.s32.totalorder %s139, %s140
      %p149 = scmp.eq.s32.totalorder %s82, 0
      %p150 = por %p148, %p149
      %p151 = scmp.ne.s32.totalorder %s139, %s140
      %p152 = scmp.eq.s32.totalorder %s83, 1
      %p153 = por %p151, %p152
      %p155 = scmp.ne.s32.totalorder %s140, %s154
      %p156 = scmp.eq.s32.totalorder %s83, 0
      %p157 = por %p155, %p156
      %s159 = sadd.s32 %s158, 1
      %p162 = scmp.eq.s32.totalorder %s77, 1
      %p163 = scmp.ne.s32.totalorder %s158, %s160
      %p164 = scmp.eq.s32.totalorder %s77, 0
      %p165 = por %p163, %p164
      %p166 = scmp.ne.s32.totalorder %s158, %s160
      %p167 = scmp.eq.s32.totalorder %s82, 1
      %p168 = por %p166, %p167
      %p169 = scmp.ne.s32.totalorder %s160, %s161
      %p170 = scmp.eq.s32.totalorder %s82, 0
      %p171 = por %p169, %p170
      %p172 = scmp.ne.s32.totalorder %s160, %s161
      %p173 = scmp.eq.s32.totalorder %s83, 1
      %p174 = por %p172, %p173
      %p176 = scmp.ne.s32.totalorder %s161, %s175
      %p177 = scmp.eq.s32.totalorder %s83, 0
      %p178 = por %p176, %p177
      %s180 = sadd.s32 %s179, 1
      %p183 = scmp.eq.s32.totalorder %s77, 1
      %p184 = scmp.ne.s32.totalorder %s179, %s181
      %p185 = scmp.eq.s32.totalorder %s77, 0
      %p186 = por %p184, %p185
      %p187 = scmp.ne.s32.totalorder %s179, %s181
      %p188 = scmp.eq.s32.totalorder %s82, 1
      %p189 = por %p187, %p188
      %p190 = scmp.ne.s32.totalorder %s181, %s182
      %p191 = scmp.eq.s32.totalorder %s82, 0
      %p192 = por %p190, %p191
      %p193 = scmp.ne.s32.totalorder %s181, %s182
      %p194 = scmp.eq.s32.totalorder %s83, 1
      %p195 = por %p193, %p194
      %p197 = scmp.ne.s32.totalorder %s182, %s196
      %p198 = scmp.eq.s32.totalorder %s83, 0
      %p199 = por %p197, %p198
      %s201 = sadd.s32 %s200, 1
      %p204 = scmp.eq.s32.totalorder %s77, 1
      %p205 = scmp.ne.s32.totalorder %s200, %s202
      %p206 = scmp.eq.s32.totalorder %s77, 0
      %p207 = por %p205, %p206
      %p208 = scmp.ne.s32.totalorder %s200, %s202
      %p209 = scmp.eq.s32.totalorder %s82, 1
      %p210 = por %p208, %p209
      %p211 = scmp.ne.s32.totalorder %s202, %s203
      %p212 = scmp.eq.s32.totalorder %s82, 0
      %p213 = por %p211, %p212
      %p214 = scmp.ne.s32.totalorder %s202, %s203
      %p215 = scmp.eq.s32.totalorder %s83, 1
      %p216 = por %p214, %p215
      %p218 = scmp.ne.s32.totalorder %s203, %s217
      %p219 = scmp.eq.s32.totalorder %s83, 0
      %p220 = por %p218, %p219
      %s222 = sadd.s32 %s221, 1
      %p225 = scmp.eq.s32.totalorder %s77, 1
      %p226 = scmp.ne.s32.totalorder %s221, %s223
      %p227 = scmp.eq.s32.totalorder %s77, 0
      %p228 = por %p226, %p227
      %p229 = scmp.ne.s32.totalorder %s221, %s223
      %p230 = scmp.eq.s32.totalorder %s82, 1
      %p231 = por %p229, %p230
      %p232 = scmp.ne.s32.totalorder %s223, %s224
      %p233 = scmp.eq.s32.totalorder %s82, 0
      %p234 = por %p232, %p233
      %p235 = scmp.ne.s32.totalorder %s223, %s224
      %p236 = scmp.eq.s32.totalorder %s83, 1
      %p237 = por %p235, %p236
      %p239 = scmp.ne.s32.totalorder %s224, %s238
      %p240 = scmp.eq.s32.totalorder %s83, 0
      %p241 = por %p239, %p240
      %s243 = sadd.s32 %s242, 1
      %p246 = scmp.eq.s32.totalorder %s77, 1
      %p247 = scmp.ne.s32.totalorder %s242, %s244
      %p248 = scmp.eq.s32.totalorder %s77, 0
      %p249 = por %p247, %p248
      %p250 = scmp.ne.s32.totalorder %s242, %s244
      %p251 = scmp.eq.s32.totalorder %s82, 1
      %p252 = por %p250, %p251
      %p253 = scmp.ne.s32.totalorder %s244, %s245
      %p254 = scmp.eq.s32.totalorder %s82, 0
      %p255 = por %p253, %p254
      %p256 = scmp.ne.s32.totalorder %s244, %s245
      %p257 = scmp.eq.s32.totalorder %s83, 1
      %p258 = por %p256, %p257
      %p260 = scmp.ne.s32.totalorder %s245, %s259
      %p261 = scmp.eq.s32.totalorder %s83, 0
      %p262 = por %p260, %p261
      %s264 = sadd.s32 %s263, 1
      %p267 = scmp.eq.s32.totalorder %s77, 1
      %p268 = scmp.ne.s32.totalorder %s263, %s265
      %p269 = scmp.eq.s32.totalorder %s77, 0
      %p270 = por %p268, %p269
      %p271 = scmp.ne.s32.totalorder %s263, %s265
      %p272 = scmp.eq.s32.totalorder %s82, 1
      %p273 = por %p271, %p272
      %p274 = scmp.ne.s32.totalorder %s265, %s266
      %p275 = scmp.eq.s32.totalorder %s82, 0
      %p276 = por %p274, %p275
      %p277 = scmp.ne.s32.totalorder %s265, %s266
      %p278 = scmp.eq.s32.totalorder %s83, 1
      %p279 = por %p277, %p278
      %p281 = scmp.ne.s32.totalorder %s266, %s280
      %p282 = scmp.eq.s32.totalorder %s83, 0
      %p283 = por %p281, %p282
      %s285 = sadd.s32 %s284, 1
      %p288 = scmp.eq.s32.totalorder %s77, 1
      %p289 = scmp.ne.s32.totalorder %s284, %s286
      %p290 = scmp.eq.s32.totalorder %s77, 0
      %p291 = por %p289, %p290
      %p292 = scmp.ne.s32.totalorder %s284, %s286
      %p293 = scmp.eq.s32.totalorder %s82, 1
      %p294 = por %p292, %p293
      %p295 = scmp.ne.s32.totalorder %s286, %s287
      %p296 = scmp.eq.s32.totalorder %s82, 0
      %p297 = por %p295, %p296
      %p298 = scmp.ne.s32.totalorder %s286, %s287
      %p299 = scmp.eq.s32.totalorder %s83, 1
      %p300 = por %p298, %p299
      %p302 = scmp.ne.s32.totalorder %s287, %s301
      %p303 = scmp.eq.s32.totalorder %s83, 0
      %p304 = por %p302, %p303
      %s306 = sadd.s32 %s305, 1
      %p309 = scmp.eq.s32.totalorder %s77, 1
      %p310 = scmp.ne.s32.totalorder %s305, %s307
      %p311 = scmp.eq.s32.totalorder %s77, 0
      %p312 = por %p310, %p311
      %p313 = scmp.ne.s32.totalorder %s305, %s307
      %p314 = scmp.eq.s32.totalorder %s82, 1
      %p315 = por %p313, %p314
      %p316 = scmp.ne.s32.totalorder %s307, %s308
      %p317 = scmp.eq.s32.totalorder %s82, 0
      %p318 = por %p316, %p317
      %p319 = scmp.ne.s32.totalorder %s307, %s308
      %p320 = scmp.eq.s32.totalorder %s83, 1
      %p321 = por %p319, %p320
      %p323 = scmp.ne.s32.totalorder %s308, %s322
      %p324 = scmp.eq.s32.totalorder %s83, 0
      %p325 = por %p323, %p324
      %s327 = sadd.s32 %s326, 1
      %p330 = scmp.eq.s32.totalorder %s77, 1
      %p331 = scmp.ne.s32.totalorder %s326, %s328
      %p332 = scmp.eq.s32.totalorder %s77, 0
      %p333 = por %p331, %p332
      %p334 = scmp.ne.s32.totalorder %s326, %s328
      %p335 = scmp.eq.s32.totalorder %s82, 1
      %p336 = por %p334, %p335
      %p337 = scmp.ne.s32.totalorder %s328, %s329
      %p338 = scmp.eq.s32.totalorder %s82, 0
      %p339 = por %p337, %p338
      %p340 = scmp.ne.s32.totalorder %s328, %s329
      %p341 = scmp.eq.s32.totalorder %s83, 1
      %p342 = por %p340, %p341
      %p344 = scmp.ne.s32.totalorder %s329, %s343
      %p345 = scmp.eq.s32.totalorder %s83, 0
      %p346 = por %p344, %p345
      %s348 = sadd.s32 %s347, 1
      %p351 = scmp.eq.s32.totalorder %s77, 1
      %p352 = scmp.ne.s32.totalorder %s347, %s349
      %p353 = scmp.eq.s32.totalorder %s77, 0
      %p354 = por %p352, %p353
      %p355 = scmp.ne.s32.totalorder %s347, %s349
      %p356 = scmp.eq.s32.totalorder %s82, 1
      %p357 = por %p355, %p356
      %p358 = scmp.ne.s32.totalorder %s349, %s350
      %p359 = scmp.eq.s32.totalorder %s82, 0
      %p360 = por %p358, %p359
      %p361 = scmp.ne.s32.totalorder %s349, %s350
      %p362 = scmp.eq.s32.totalorder %s83, 1
      %p363 = por %p361, %p362
      %p365 = scmp.ne.s32.totalorder %s350, %s364
      %p366 = scmp.eq.s32.totalorder %s83, 0
      %p367 = por %p365, %p366
      %s369 = sadd.s32 %s368, 1
      %p372 = scmp.eq.s32.totalorder %s77, 1
      %p373 = scmp.ne.s32.totalorder %s368, %s370
      %p374 = scmp.eq.s32.totalorder %s77, 0
      %p375 = por %p373, %p374
      %p376 = scmp.ne.s32.totalorder %s368, %s370
      %p377 = scmp.eq.s32.totalorder %s82, 1
      %p378 = por %p376, %p377
      %p379 = scmp.ne.s32.totalorder %s370, %s371
      %p380 = scmp.eq.s32.totalorder %s82, 0
      %p381 = por %p379, %p380
      %p382 = scmp.ne.s32.totalorder %s370, %s371
      %p383 = scmp.eq.s32.totalorder %s83, 1
      %p384 = por %p382, %p383
      %p386 = scmp.ne.s32.totalorder %s371, %s385
      %p387 = scmp.eq.s32.totalorder %s83, 0
      %p388 = por %p386, %p387
      %s390 = sadd.s32 %s389, 1
      %p393 = scmp.eq.s32.totalorder %s77, 1
      %p394 = scmp.ne.s32.totalorder %s389, %s391
      %p395 = scmp.eq.s32.totalorder %s77, 0
      %p396 = por %p394, %p395
      %p397 = scmp.ne.s32.totalorder %s389, %s391
      %p398 = scmp.eq.s32.totalorder %s82, 1
      %p399 = por %p397, %p398
      %p400 = scmp.ne.s32.totalorder %s391, %s392
      %p401 = scmp.eq.s32.totalorder %s82, 0
      %p402 = por %p400, %p401
      %p403 = scmp.ne.s32.totalorder %s391, %s392
      %p404 = scmp.eq.s32.totalorder %s83, 1
      %p405 = por %p403, %p404
      %p407 = scmp.ne.s32.totalorder %s392, %s406
      %p408 = scmp.eq.s32.totalorder %s83, 0
      %p409 = por %p407, %p408
      %s411 = sadd.s32 %s410, 1
      %p414 = scmp.eq.s32.totalorder %s77, 1
      %p415 = scmp.ne.s32.totalorder %s410, %s412
      %p416 = scmp.eq.s32.totalorder %s77, 0
      %p417 = por %p415, %p416
      %p418 = scmp.ne.s32.totalorder %s410, %s412
      %p419 = scmp.eq.s32.totalorder %s82, 1
      %p420 = por %p418, %p419
      %p421 = scmp.ne.s32.totalorder %s412, %s413
      %p422 = scmp.eq.s32.totalorder %s82, 0
      %p423 = por %p421, %p422
      %p424 = scmp.ne.s32.totalorder %s412, %s413
      %p425 = scmp.eq.s32.totalorder %s83, 1
      %p426 = por %p424, %p425
      %p428 = scmp.ne.s32.totalorder %s413, %s427
      %p429 = scmp.eq.s32.totalorder %s83, 0
      %p430 = por %p428, %p429
      %s432 = sadd.s32 %s431, 1
      %p435 = scmp.eq.s32.totalorder %s77, 1
      %p436 = scmp.ne.s32.totalorder %s431, %s433
      %p437 = scmp.eq.s32.totalorder %s77, 0
      %p438 = por %p436, %p437
      %p439 = scmp.ne.s32.totalorder %s431, %s433
      %p440 = scmp.eq.s32.totalorder %s82, 1
      %p441 = por %p439, %p440
      %p442 = scmp.ne.s32.totalorder %s433, %s434
      %p443 = scmp.eq.s32.totalorder %s82, 0
      %p444 = por %p442, %p443
      %p445 = scmp.ne.s32.totalorder %s433, %s434
      %p446 = scmp.eq.s32.totalorder %s83, 1
      %p447 = por %p445, %p446
      %p449 = scmp.ne.s32.totalorder %s434, %s448
      %p450 = scmp.eq.s32.totalorder %s83, 0
      %p451 = por %p449, %p450
      %s453 = sadd.s32 %s452, 1
      %p456 = scmp.eq.s32.totalorder %s77, 1
      %p457 = scmp.ne.s32.totalorder %s452, %s454
      %p458 = scmp.eq.s32.totalorder %s77, 0
      %p459 = por %p457, %p458
      %p460 = scmp.ne.s32.totalorder %s452, %s454
      %p461 = scmp.eq.s32.totalorder %s82, 1
      %p462 = por %p460, %p461
      %p463 = scmp.ne.s32.totalorder %s454, %s455
      %p464 = scmp.eq.s32.totalorder %s82, 0
      %p465 = por %p463, %p464
      %p466 = scmp.ne.s32.totalorder %s454, %s455
      %p467 = scmp.eq.s32.totalorder %s83, 1
      %p468 = por %p466, %p467
      %p470 = scmp.ne.s32.totalorder %s455, %s469
      %p471 = scmp.eq.s32.totalorder %s83, 0
      %p472 = por %p470, %p471
      %s474 = sadd.s32 %s473, 1
      %p477 = scmp.eq.s32.totalorder %s77, 1
      %p478 = scmp.ne.s32.totalorder %s473, %s475
      %p479 = scmp.eq.s32.totalorder %s77, 0
      %p480 = por %p478, %p479
      %p481 = scmp.ne.s32.totalorder %s473, %s475
      %p482 = scmp.eq.s32.totalorder %s82, 1
      %p483 = por %p481, %p482
      %p484 = scmp.ne.s32.totalorder %s475, %s476
      %p485 = scmp.eq.s32.totalorder %s82, 0
      %p486 = por %p484, %p485
      %p487 = scmp.ne.s32.totalorder %s475, %s476
      %p488 = scmp.eq.s32.totalorder %s83, 1
      %p489 = por %p487, %p488
      %p491 = scmp.ne.s32.totalorder %s476, %s490
      %p492 = scmp.eq.s32.totalorder %s83, 0
      %p493 = por %p491, %p492
      %s495 = sadd.s32 %s494, 1
      %p498 = scmp.eq.s32.totalorder %s77, 1
      %p499 = scmp.ne.s32.totalorder %s494, %s496
      %p500 = scmp.eq.s32.totalorder %s77, 0
      %p501 = por %p499, %p500
      %p502 = scmp.ne.s32.totalorder %s494, %s496
      %p503 = scmp.eq.s32.totalorder %s82, 1
      %p504 = por %p502, %p503
      %p505 = scmp.ne.s32.totalorder %s496, %s497
      %p506 = scmp.eq.s32.totalorder %s82, 0
      %p507 = por %p505, %p506
      %p508 = scmp.ne.s32.totalorder %s496, %s497
      %p509 = scmp.eq.s32.totalorder %s83, 1
      %p510 = por %p508, %p509
      %p512 = scmp.ne.s32.totalorder %s497, %s511
      %p513 = scmp.eq.s32.totalorder %s83, 0
      %p514 = por %p512, %p513
      %s516 = sadd.s32 %s515, 1
      %p519 = scmp.eq.s32.totalorder %s77, 1
      %p520 = scmp.ne.s32.totalorder %s515, %s517
      %p521 = scmp.eq.s32.totalorder %s77, 0
      %p522 = por %p520, %p521
      %p523 = scmp.ne.s32.totalorder %s515, %s517
      %p524 = scmp.eq.s32.totalorder %s82, 1
      %p525 = por %p523, %p524
      %p526 = scmp.ne.s32.totalorder %s517, %s518
      %p527 = scmp.eq.s32.totalorder %s82, 0
      %p528 = por %p526, %p527
      %p529 = scmp.ne.s32.totalorder %s517, %s518
      %p530 = scmp.eq.s32.totalorder %s83, 1
      %p531 = por %p529, %p530
      %p533 = scmp.ne.s32.totalorder %s518, %s532
      %p534 = scmp.eq.s32.totalorder %s83, 0
      %p535 = por %p533, %p534
      %s537 = sadd.s32 %s536, 1
      %p540 = scmp.eq.s32.totalorder %s77, 1
      %p541 = scmp.ne.s32.totalorder %s536, %s538
      %p542 = scmp.eq.s32.totalorder %s77, 0
      %p543 = por %p541, %p542
      %p544 = scmp.ne.s32.totalorder %s536, %s538
      %p545 = scmp.eq.s32.totalorder %s82, 1
      %p546 = por %p544, %p545
      %p547 = scmp.ne.s32.totalorder %s538, %s539
      %p548 = scmp.eq.s32.totalorder %s82, 0
      %p549 = por %p547, %p548
      %p550 = scmp.ne.s32.totalorder %s538, %s539
      %p551 = scmp.eq.s32.totalorder %s83, 1
      %p552 = por %p550, %p551
      %p554 = scmp.ne.s32.totalorder %s539, %s553
      %p555 = scmp.eq.s32.totalorder %s83, 0
      %p556 = por %p554, %p555
      %s558 = sadd.s32 %s557, 1
      %p561 = scmp.eq.s32.totalorder %s77, 1
      %p562 = scmp.ne.s32.totalorder %s557, %s559
      %p563 = scmp.eq.s32.totalorder %s77, 0
      %p564 = por %p562, %p563
      %p565 = scmp.ne.s32.totalorder %s557, %s559
      %p566 = scmp.eq.s32.totalorder %s82, 1
      %p567 = por %p565, %p566
      %p568 = scmp.ne.s32.totalorder %s559, %s560
      %p569 = scmp.eq.s32.totalorder %s82, 0
      %p570 = por %p568, %p569
      %p571 = scmp.ne.s32.totalorder %s559, %s560
      %p572 = scmp.eq.s32.totalorder %s83, 1
      %p573 = por %p571, %p572
      %p575 = scmp.ne.s32.totalorder %s560, %s574
      %p576 = scmp.eq.s32.totalorder %s83, 0
      %p577 = por %p575, %p576
      %s579 = sadd.s32 %s578, 1
      %p582 = scmp.eq.s32.totalorder %s77, 1
      %p583 = scmp.ne.s32.totalorder %s578, %s580
      %p584 = scmp.eq.s32.totalorder %s77, 0
      %p585 = por %p583, %p584
      %p586 = scmp.ne.s32.totalorder %s578, %s580
      %p587 = scmp.eq.s32.totalorder %s82, 1
      %p588 = por %p586, %p587
      %p589 = scmp.ne.s32.totalorder %s580, %s581
      %p590 = scmp.eq.s32.totalorder %s82, 0
      %p591 = por %p589, %p590
      %p592 = scmp.ne.s32.totalorder %s580, %s581
      %p593 = scmp.eq.s32.totalorder %s83, 1
      %p594 = por %p592, %p593
      %p596 = scmp.ne.s32.totalorder %s581, %s595
      %p597 = scmp.eq.s32.totalorder %s83, 0
      %p598 = por %p596, %p597
      %s599 = ssub.s32 %s77, %s84
      %p600 = scmp.eq.s32.totalorder %s599, 0
      %s602 = sadd.s32 %s601, 1
      %s603 = scalar_select %p600, %s601, %s602
      %p606 = pneg %p600
      %p607 = scmp.eq.s32.totalorder %s77, 1
      %p608 = por %p606, %p607
      %p609 = scmp.ne.s32.totalorder %s601, %s604
      %p610 = scmp.eq.s32.totalorder %s77, 0
      %p611 = por %p609, %p610
      %p612 = scmp.ne.s32.totalorder %s601, %s604
      %p613 = scmp.eq.s32.totalorder %s82, 1
      %p614 = por %p612, %p613
      %p615 = scmp.ne.s32.totalorder %s604, %s605
      %p616 = scmp.eq.s32.totalorder %s82, 0
      %p617 = por %p615, %p616
      %p618 = scmp.ne.s32.totalorder %s604, %s605
      %p619 = scmp.eq.s32.totalorder %s83, 1
      %p620 = por %p618, %p619
      %p622 = scmp.ne.s32.totalorder %s605, %s621
      %p623 = scmp.eq.s32.totalorder %s83, 0
      %p624 = por %p622, %p623
      %s625 = ssub.s32 %s77, %s84
      %p626 = scmp.eq.s32.totalorder %s625, 0
      %s628 = sadd.s32 %s627, 1
      %s629 = scalar_select %p626, %s627, %s628
      %p632 = pneg %p626
      %p633 = scmp.eq.s32.totalorder %s77, 1
      %p634 = por %p632, %p633
      %p635 = scmp.ne.s32.totalorder %s627, %s630
      %p636 = scmp.eq.s32.totalorder %s77, 0
      %p637 = por %p635, %p636
      %p638 = scmp.ne.s32.totalorder %s627, %s630
      %p639 = scmp.eq.s32.totalorder %s82, 1
      %p640 = por %p638, %p639
      %p641 = scmp.ne.s32.totalorder %s630, %s631
      %p642 = scmp.eq.s32.totalorder %s82, 0
      %p643 = por %p641, %p642
      %p644 = scmp.ne.s32.totalorder %s630, %s631
      %p645 = scmp.eq.s32.totalorder %s83, 1
      %p646 = por %p644, %p645
      %p648 = scmp.ne.s32.totalorder %s631, %s647
      %p649 = scmp.eq.s32.totalorder %s83, 0
      %p650 = por %p648, %p649
      %s651 = ssub.s32 %s77, %s84
      %p652 = scmp.eq.s32.totalorder %s651, 0
      %s654 = sadd.s32 %s653, 1
      %s655 = scalar_select %p652, %s653, %s654
      %p658 = pneg %p652
      %p659 = scmp.eq.s32.totalorder %s77, 1
      %p660 = por %p658, %p659
      %p661 = scmp.ne.s32.totalorder %s653, %s656
      %p662 = scmp.eq.s32.totalorder %s77, 0
      %p663 = por %p661, %p662
      %p664 = scmp.ne.s32.totalorder %s653, %s656
      %p665 = scmp.eq.s32.totalorder %s82, 1
      %p666 = por %p664, %p665
      %p667 = scmp.ne.s32.totalorder %s656, %s657
      %p668 = scmp.eq.s32.totalorder %s82, 0
      %p669 = por %p667, %p668
      %p670 = scmp.ne.s32.totalorder %s656, %s657
      %p671 = scmp.eq.s32.totalorder %s83, 1
      %p672 = por %p670, %p671
      %p674 = scmp.ne.s32.totalorder %s657, %s673
      %p675 = scmp.eq.s32.totalorder %s83, 0
      %p676 = por %p674, %p675
      %s677 = ssub.s32 %s77, %s84
      %p678 = scmp.eq.s32.totalorder %s677, 0
      %s680 = sadd.s32 %s679, 1
      %s681 = scalar_select %p678, %s679, %s680
      %p684 = pneg %p678
      %p685 = scmp.eq.s32.totalorder %s77, 1
      %p686 = por %p684, %p685
      %p687 = scmp.ne.s32.totalorder %s679, %s682
      %p688 = scmp.eq.s32.totalorder %s77, 0
      %p689 = por %p687, %p688
      %p690 = scmp.ne.s32.totalorder %s679, %s682
      %p691 = scmp.eq.s32.totalorder %s82, 1
      %p692 = por %p690, %p691
      %p693 = scmp.ne.s32.totalorder %s682, %s683
      %p694 = scmp.eq.s32.totalorder %s82, 0
      %p695 = por %p693, %p694
      %p696 = scmp.ne.s32.totalorder %s682, %s683
      %p697 = scmp.eq.s32.totalorder %s83, 1
      %p698 = por %p696, %p697
      %p700 = scmp.ne.s32.totalorder %s683, %s699
      %p701 = scmp.eq.s32.totalorder %s83, 0
      %p702 = por %p700, %p701
      %s703 = ssub.s32 %s77, %s84
      %p704 = scmp.eq.s32.totalorder %s703, 0
      %s706 = sadd.s32 %s705, 1
      %s707 = scalar_select %p704, %s705, %s706
      %p710 = pneg %p704
      %p711 = scmp.eq.s32.totalorder %s77, 1
      %p712 = por %p710, %p711
      %p713 = scmp.ne.s32.totalorder %s705, %s708
      %p714 = scmp.eq.s32.totalorder %s77, 0
      %p715 = por %p713, %p714
      %p716 = scmp.ne.s32.totalorder %s705, %s708
      %p717 = scmp.eq.s32.totalorder %s82, 1
      %p718 = por %p716, %p717
      %p719 = scmp.ne.s32.totalorder %s708, %s709
      %p720 = scmp.eq.s32.totalorder %s82, 0
      %p721 = por %p719, %p720
      %p722 = scmp.ne.s32.totalorder %s708, %s709
      %p723 = scmp.eq.s32.totalorder %s83, 1
      %p724 = por %p722, %p723
      %p726 = scmp.ne.s32.totalorder %s709, %s725
      %p727 = scmp.eq.s32.totalorder %s83, 0
      %p728 = por %p726, %p727
      %s729 = ssub.s32 %s77, %s84
      %p730 = scmp.eq.s32.totalorder %s729, 0
      %s732 = sadd.s32 %s731, 1
      %s733 = scalar_select %p730, %s731, %s732
      %p736 = pneg %p730
      %p737 = scmp.eq.s32.totalorder %s77, 1
      %p738 = por %p736, %p737
      %p739 = scmp.ne.s32.totalorder %s731, %s734
      %p740 = scmp.eq.s32.totalorder %s77, 0
      %p741 = por %p739, %p740
      %p742 = scmp.ne.s32.totalorder %s731, %s734
      %p743 = scmp.eq.s32.totalorder %s82, 1
      %p744 = por %p742, %p743
      %p745 = scmp.ne.s32.totalorder %s734, %s735
      %p746 = scmp.eq.s32.totalorder %s82, 0
      %p747 = por %p745, %p746
      %p748 = scmp.ne.s32.totalorder %s734, %s735
      %p749 = scmp.eq.s32.totalorder %s83, 1
      %p750 = por %p748, %p749
      %p752 = scmp.ne.s32.totalorder %s735, %s751
      %p753 = scmp.eq.s32.totalorder %s83, 0
      %p754 = por %p752, %p753
      %p755 = scmp.le.s32.totalorder 1, %s77
      %p756 = scmp.lt.s32.totalorder %s77, 3
      %p757 = pnand %p755, %p756
      %p758 = pneg %p757
      // Predicated region
      $region9: #{tpu_custom_call.1} parent=5 // pred_check
        _
      $region10: #{tpu_custom_call.1} parent=5 // pred_check_branch
        %760 = sbr.rel (%p757) target = $region12
      $region11: #{tpu_custom_call.1} parent=5 // pred_region
        %s761 = ssub.s32 %s77, 1
        // Predicated region
        $region13: #{tpu_custom_call.1} parent=11 // pred_check
          %p762 = pneg %p150
        $region14: #{tpu_custom_call.1} parent=11 // pred_check_branch
          %764 = sbr.rel (%p762) target = $region16
        $region15: #{tpu_custom_call.1} parent=11 // pred_region
          _
        $region16: #{tpu_custom_call.1} parent=11 // pred_fallthru
          _
        // Predicated region
        $region17: #{tpu_custom_call.1} parent=11 // pred_check
          %p765 = pneg %p171
        $region18: #{tpu_custom_call.1} parent=11 // pred_check_branch
          %767 = sbr.rel (%p765) target = $region20
        $region19: #{tpu_custom_call.1} parent=11 // pred_region
          _
        $region20: #{tpu_custom_call.1} parent=11 // pred_fallthru
          _
        // Predicated region
        $region21: #{tpu_custom_call.1} parent=11 // pred_check
          %p768 = pneg %p192
        $region22: #{tpu_custom_call.1} parent=11 // pred_check_branch
          %770 = sbr.rel (%p768) target = $region24
        $region23: #{tpu_custom_call.1} parent=11 // pred_region
          _
        $region24: #{tpu_custom_call.1} parent=11 // pred_fallthru
          _
        // Predicated region
        $region25: #{tpu_custom_call.1} parent=11 // pred_check
          %p771 = pneg %p213
        $region26: #{tpu_custom_call.1} parent=11 // pred_check_branch
          %773 = sbr.rel (%p771) target = $region28
        $region27: #{tpu_custom_call.1} parent=11 // pred_region
          _
        $region28: #{tpu_custom_call.1} parent=11 // pred_fallthru
          _
        // Predicated region
        $region29: #{tpu_custom_call.1} parent=11 // pred_check
          %p774 = pneg %p234
        $region30: #{tpu_custom_call.1} parent=11 // pred_check_branch
          %776 = sbr.rel (%p774) target = $region32
        $region31: #{tpu_custom_call.1} parent=11 // pred_region
          %s778 = ssub.s32 16, 16
          %779 = vsyncadd [#allocation3], %s778
          %s781 = sshll.u32 [#allocation2], 4
          %s782 = int_to_ptr.vmem [resolvable:$true] %s781
          %784 = dma.hbm_to_vmem [thread:$0]  %s13, 16, %s782, [#allocation3]
        $region32: #{tpu_custom_call.1} parent=11 // pred_fallthru
          _
        // Predicated region
        $region33: #{tpu_custom_call.1} parent=11 // pred_check
          %p785 = pneg %p255
        $region34: #{tpu_custom_call.1} parent=11 // pred_check_branch
          %787 = sbr.rel (%p785) target = $region36
        $region35: #{tpu_custom_call.1} parent=11 // pred_region
          _
        $region36: #{tpu_custom_call.1} parent=11 // pred_fallthru
          _
        // Predicated region
        $region37: #{tpu_custom_call.1} parent=11 // pred_check
          %p788 = pneg %p276
        $region38: #{tpu_custom_call.1} parent=11 // pred_check_branch
          %790 = sbr.rel (%p788) target = $region40
        $region39: #{tpu_custom_call.1} parent=11 // pred_region
          _
        $region40: #{tpu_custom_call.1} parent=11 // pred_fallthru
          _
        // Predicated region
        $region41: #{tpu_custom_call.1} parent=11 // pred_check
          %p791 = pneg %p297
        $region42: #{tpu_custom_call.1} parent=11 // pred_check_branch
          %793 = sbr.rel (%p791) target = $region44
        $region43: #{tpu_custom_call.1} parent=11 // pred_region
          %s795 = ssub.s32 16, 16
          %796 = vsyncadd [#allocation6], %s795
          %s798 = sshll.u32 [#allocation5], 4
          %s799 = int_to_ptr.vmem [resolvable:$true] %s798
          %801 = dma.hbm_to_vmem [thread:$0]  %s19, 16, %s799, [#allocation6]
        $region44: #{tpu_custom_call.1} parent=11 // pred_fallthru
          _
        // Predicated region
        $region45: #{tpu_custom_call.1} parent=11 // pred_check
          %p802 = pneg %p318
        $region46: #{tpu_custom_call.1} parent=11 // pred_check_branch
          %804 = sbr.rel (%p802) target = $region48
        $region47: #{tpu_custom_call.1} parent=11 // pred_region
          _
        $region48: #{tpu_custom_call.1} parent=11 // pred_fallthru
          _
        // Predicated region
        $region49: #{tpu_custom_call.1} parent=11 // pred_check
          %p805 = pneg %p339
        $region50: #{tpu_custom_call.1} parent=11 // pred_check_branch
          %807 = sbr.rel (%p805) target = $region52
        $region51: #{tpu_custom_call.1} parent=11 // pred_region
          _
        $region52: #{tpu_custom_call.1} parent=11 // pred_fallthru
          _
        // Predicated region
        $region53: #{tpu_custom_call.1} parent=11 // pred_check
          %p808 = pneg %p360
        $region54: #{tpu_custom_call.1} parent=11 // pred_check_branch
          %810 = sbr.rel (%p808) target = $region56
        $region55: #{tpu_custom_call.1} parent=11 // pred_region
          _
        $region56: #{tpu_custom_call.1} parent=11 // pred_fallthru
          _
        // Predicated region
        $region57: #{tpu_custom_call.1} parent=11 // pred_check
          %p811 = pneg %p381
        $region58: #{tpu_custom_call.1} parent=11 // pred_check_branch
          %813 = sbr.rel (%p811) target = $region60
        $region59: #{tpu_custom_call.1} parent=11 // pred_region
          _
        $region60: #{tpu_custom_call.1} parent=11 // pred_fallthru
          _
        // Predicated region
        $region61: #{tpu_custom_call.1} parent=11 // pred_check
          %p814 = pneg %p402
        $region62: #{tpu_custom_call.1} parent=11 // pred_check_branch
          %816 = sbr.rel (%p814) target = $region64
        $region63: #{tpu_custom_call.1} parent=11 // pred_region
          _
        $region64: #{tpu_custom_call.1} parent=11 // pred_fallthru
          _
        // Predicated region
        $region65: #{tpu_custom_call.1} parent=11 // pred_check
          %p817 = pneg %p423
        $region66: #{tpu_custom_call.1} parent=11 // pred_check_branch
          %819 = sbr.rel (%p817) target = $region68
        $region67: #{tpu_custom_call.1} parent=11 // pred_region
          _
        $region68: #{tpu_custom_call.1} parent=11 // pred_fallthru
          _
        // Predicated region
        $region69: #{tpu_custom_call.1} parent=11 // pred_check
          %p820 = pneg %p444
        $region70: #{tpu_custom_call.1} parent=11 // pred_check_branch
          %822 = sbr.rel (%p820) target = $region72
        $region71: #{tpu_custom_call.1} parent=11 // pred_region
          _
        $region72: #{tpu_custom_call.1} parent=11 // pred_fallthru
          _
        // Predicated region
        $region73: #{tpu_custom_call.1} parent=11 // pred_check
          %p823 = pneg %p465
        $region74: #{tpu_custom_call.1} parent=11 // pred_check_branch
          %825 = sbr.rel (%p823) target = $region76
        $region75: #{tpu_custom_call.1} parent=11 // pred_region
          _
        $region76: #{tpu_custom_call.1} parent=11 // pred_fallthru
          _
        // Predicated region
        $region77: #{tpu_custom_call.1} parent=11 // pred_check
          %p826 = pneg %p486
        $region78: #{tpu_custom_call.1} parent=11 // pred_check_branch
          %828 = sbr.rel (%p826) target = $region80
        $region79: #{tpu_custom_call.1} parent=11 // pred_region
          _
        $region80: #{tpu_custom_call.1} parent=11 // pred_fallthru
          _
        // Predicated region
        $region81: #{tpu_custom_call.1} parent=11 // pred_check
          %p829 = pneg %p507
        $region82: #{tpu_custom_call.1} parent=11 // pred_check_branch
          %831 = sbr.rel (%p829) target = $region84
        $region83: #{tpu_custom_call.1} parent=11 // pred_region
          _
        $region84: #{tpu_custom_call.1} parent=11 // pred_fallthru
          _
        // Predicated region
        $region85: #{tpu_custom_call.1} parent=11 // pred_check
          %p832 = pneg %p528
        $region86: #{tpu_custom_call.1} parent=11 // pred_check_branch
          %834 = sbr.rel (%p832) target = $region88
        $region87: #{tpu_custom_call.1} parent=11 // pred_region
          _
        $region88: #{tpu_custom_call.1} parent=11 // pred_fallthru
          _
        // Predicated region
        $region89: #{tpu_custom_call.1} parent=11 // pred_check
          %p835 = pneg %p549
        $region90: #{tpu_custom_call.1} parent=11 // pred_check_branch
          %837 = sbr.rel (%p835) target = $region92
        $region91: #{tpu_custom_call.1} parent=11 // pred_region
          _
        $region92: #{tpu_custom_call.1} parent=11 // pred_fallthru
          _
        // Predicated region
        $region93: #{tpu_custom_call.1} parent=11 // pred_check
          %p838 = pneg %p570
        $region94: #{tpu_custom_call.1} parent=11 // pred_check_branch
          %840 = sbr.rel (%p838) target = $region96
        $region95: #{tpu_custom_call.1} parent=11 // pred_region
          _
        $region96: #{tpu_custom_call.1} parent=11 // pred_fallthru
          _
        // Predicated region
        $region97: #{tpu_custom_call.1} parent=11 // pred_check
          %p841 = pneg %p591
        $region98: #{tpu_custom_call.1} parent=11 // pred_check_branch
          %843 = sbr.rel (%p841) target = $region100
        $region99: #{tpu_custom_call.1} parent=11 // pred_region
          _
        $region100: #{tpu_custom_call.1} parent=11 // pred_fallthru
          _
      $region12: #{tpu_custom_call.1} parent=5 // pred_fallthru
        _
      %p844 = scmp.lt.s32.totalorder %s77, 2
      // Predicated region
      $region101: #{tpu_custom_call.1} parent=5 // pred_check
        %p845 = pneg %p844
      $region102: #{tpu_custom_call.1} parent=5 // pred_check_branch
        %847 = sbr.rel (%p845) target = $region104
      $region103: #{tpu_custom_call.1} parent=5 // pred_region
        // Predicated region
        $region105: #{tpu_custom_call.1} parent=103 // pred_check
          %p848 = pneg %p97
        $region106: #{tpu_custom_call.1} parent=103 // pred_check_branch
          %850 = sbr.rel (%p848) target = $region108
        $region107: #{tpu_custom_call.1} parent=103 // pred_region
          %p851 = scmp.lt.s32.totalorder %s77, 1
          %s852 = scalar_select %p851, %s77, 1
          %s853 = smul.addr %s852, 2
          %s854 = smul.addr %s853, 8
          %s855 = scalar_lea.vmem %s1, %s854
        $region108: #{tpu_custom_call.1} parent=103 // pred_fallthru
          _
        // Predicated region
        $region109: #{tpu_custom_call.1} parent=103 // pred_check
          %p856 = pneg %p123
        $region110: #{tpu_custom_call.1} parent=103 // pred_check_branch
          %858 = sbr.rel (%p856) target = $region112
        $region111: #{tpu_custom_call.1} parent=103 // pred_region
          %p859 = scmp.lt.s32.totalorder %s77, 1
          %s860 = scalar_select %p859, %s77, 1
          %s861 = smul.addr %s860, 2
          %s862 = smul.addr %s861, 8
          %s863 = scalar_lea.vmem %s3, %s862
        $region112: #{tpu_custom_call.1} parent=103 // pred_fallthru
          _
      $region104: #{tpu_custom_call.1} parent=5 // pred_fallthru
        _
      %p864 = scmp.le.s32.totalorder 1, %s77
      %p865 = scmp.lt.s32.totalorder %s77, 3
      %p866 = pnand %p864, %p865
      %p867 = pneg %p866
      // Predicated region
      $region113: #{tpu_custom_call.1} parent=5 // pred_check
        _
      $region114: #{tpu_custom_call.1} parent=5 // pred_check_branch
        %869 = sbr.rel (%p866) target = $region116
      $region115: #{tpu_custom_call.1} parent=5 // pred_region
        %s870 = ssub.s32 %s77, 1
        // Predicated region
        $region117: #{tpu_custom_call.1} parent=115 // pred_check
          %p871 = pneg %p234
        $region118: #{tpu_custom_call.1} parent=115 // pred_check_branch
          %873 = sbr.rel (%p871) target = $region120
        $region119: #{tpu_custom_call.1} parent=115 // pred_region
          %874 = dma.done [#allocation3], 16
        $region120: #{tpu_custom_call.1} parent=115 // pred_fallthru
          _
        // Predicated region
        $region121: #{tpu_custom_call.1} parent=115 // pred_check
          %p875 = pneg %p297
        $region122: #{tpu_custom_call.1} parent=115 // pred_check_branch
          %877 = sbr.rel (%p875) target = $region124
        $region123: #{tpu_custom_call.1} parent=115 // pred_region
          %878 = dma.done [#allocation6], 16
        $region124: #{tpu_custom_call.1} parent=115 // pred_fallthru
          _
        %p879 = scmp.lt.s32.totalorder %s82, 1
        %s880 = scalar_select %p879, %s82, 1
        %s881 = smul.addr %s880, 2
        %s882 = smul.addr %s881, 8
        %s883 = scalar_lea.vmem %s1, %s882
        %p884 = pneg %p103
        %p885 = pneg %p100
        %p886 = scmp.lt.s32.totalorder %s82, 1
        %s887 = scalar_select %p886, %s82, 1
        %s888 = smul.addr %s887, 2
        %s889 = smul.addr %s888, 8
        %s890 = scalar_lea.vmem %s3, %s889
        %p891 = pneg %p129
        %p892 = pneg %p126
        %p893 = pneg %p150
        %p894 = pneg %p147
        %p895 = pneg %p171
        %p896 = pneg %p168
        %p897 = pneg %p192
        %p898 = pneg %p189
        %p899 = pneg %p213
        %p900 = pneg %p210
        %p901 = pneg %p234
        %p902 = pneg %p231
        %p903 = pneg %p255
        %p904 = pneg %p252
        %p905 = pneg %p276
        %p906 = pneg %p273
        %p907 = pneg %p297
        %p908 = pneg %p294
        %p909 = pneg %p318
        %p910 = pneg %p315
        %p911 = pneg %p339
        %p912 = pneg %p336
        %p913 = pneg %p360
        %p914 = pneg %p357
        %p915 = pneg %p381
        %p916 = pneg %p378
        %p917 = pneg %p402
        %p918 = pneg %p399
        %p919 = pneg %p423
        %p920 = pneg %p420
        %p921 = pneg %p444
        %p922 = pneg %p441
        %p923 = pneg %p465
        %p924 = pneg %p462
        %p925 = pneg %p486
        %p926 = pneg %p483
        %p927 = pneg %p507
        %p928 = pneg %p504
        %p929 = pneg %p528
        %p930 = pneg %p525
        %p931 = pneg %p549
        %p932 = pneg %p546
        %p933 = pneg %p570
        %p934 = pneg %p567
        %p935 = pneg %p591
        %p936 = pneg %p588
        %p937 = pneg %p617
        %p938 = pneg %p614
        %s939 = sand.u32 %s604, 1
        %s940 = scalar_lea.sflag [#allocation4], %s939
        %s941 = sand.u32 %s604, 1
        %s942 = smul.addr %s941, 4
        %s943 = scalar_lea.vmem [#allocation7], %s942
        %p944 = pneg %p643
        %p945 = pneg %p640
        %s946 = sand.u32 %s82, 1
        %s947 = scalar_lea.sflag [#allocation9], %s946
        %s948 = sand.u32 %s630, 1
        %s949 = smul.addr %s948, 4
        %s950 = scalar_lea.vmem [#allocation8], %s949
        %p951 = pneg %p669
        %p952 = pneg %p666
        %s953 = sand.u32 %s82, 1
        %s954 = scalar_lea.sflag [#allocation9], %s953
        %s955 = sand.u32 %s656, 1
        %s956 = smul.addr %s955, 4
        %s957 = scalar_lea.vmem [#allocation10], %s956
        %p958 = pneg %p695
        %p959 = pneg %p692
        %s960 = sand.u32 %s682, 1
        %s961 = scalar_lea.sflag [#allocation12], %s960
        %s962 = sand.u32 %s682, 1
        %s963 = smul.addr %s962, 4
        %s964 = scalar_lea.vmem [#allocation11], %s963
        %p965 = pneg %p721
        %p966 = pneg %p718
        %p967 = scmp.lt.s32.totalorder %s82, 1
        %s968 = scalar_select %p967, %s82, 1
        %s969 = scalar_lea.vmem %s57, %s968
        %p970 = pneg %p747
        %p971 = pneg %p744
        %p972 = scmp.lt.s32.totalorder %s82, 1
        %s973 = scalar_select %p972, %s82, 1
        %s974 = scalar_lea.vmem %s59, %s973
        %p975 = scmp.lt.s32.totalorder %s82, 1
        %s976 = scalar_select %p975, %s82, 1
        %s977 = smul.addr %s976, 2
        %s978 = smul.addr %s977, 8
        %s979 = scalar_lea.vmem %s1, %s978
        %p980 = scmp.lt.s32.totalorder %s82, 1
        %s981 = scalar_select %p980, %s82, 1
        %s982 = smul.addr %s981, 2
        %s983 = smul.addr %s982, 8
        %s984 = scalar_lea.vmem %s3, %s983
        %p985 = scmp.lt.s32.totalorder %s82, 1
        %s986 = scalar_select %p985, %s82, 1
        %s987 = scalar_lea.vmem %s57, %s986
        %p988 = scmp.lt.s32.totalorder %s82, 1
        %s989 = scalar_select %p988, %s82, 1
        %s990 = scalar_lea.vmem %s59, %s989
        %v991 = vld [vmem:[%s979] sm:$0xff]
        %v992 = vld [vmem:[%s979 + $0x8] sm:$0xff]
        %v993 = vld [vmem:[%s984] sm:$0xff]
        %v994 = vld [vmem:[%s984 + $0x8] sm:$0xff]
        %vm995 = vcmask 130048
        %v997 = vsel %vm995, %v993, 0
        %v1000 = vsel %vm995, %v994, 0
        %1002 = vmatprep.subr.mxu0 0.0
        %1003 = vmatpush1.msra.mxu0 %v991
        %1004 = vmatprep.subr.mxu0 0.0
        %1005 = vmatpush1.msra.mxu0 %v992
        %1006 = vmatprep.subr.mxu0 0.0
        %1007 = vmatpush1.msra.mxu0 0.0
        %1008 = vmatprep.subr.mxu0 0.0
        %1009 = vmatpush1.msra.mxu0 0.0
        %1010 = vmatprep.subr.mxu0 0.0
        %1011 = vmatpush1.msra.mxu0 0.0
        %1012 = vmatprep.subr.mxu0 0.0
        %1013 = vmatpush1.msra.mxu0 0.0
        %1014 = vmatprep.subr.mxu0 0.0
        %1015 = vmatpush1.msra.mxu0 0.0
        %1016 = vmatprep.subr.mxu0 0.0
        %1017 = vmatpush1.msra.mxu0 0.0
        %1018 = vmatprep.subr.mxu0 0.0
        %1019 = vmatpush1.msra.mxu0 0.0
        %1020 = vmatprep.subr.mxu0 0.0
        %1021 = vmatpush1.msra.mxu0 0.0
        %1022 = vmatprep.subr.mxu0 0.0
        %1023 = vmatpush1.msra.mxu0 0.0
        %1024 = vmatprep.subr.mxu0 0.0
        %1025 = vmatpush1.msra.mxu0 0.0
        %1026 = vmatprep.subr.mxu0 0.0
        %1027 = vmatpush1.msra.mxu0 0.0
        %1028 = vmatprep.subr.mxu0 0.0
        %1029 = vmatpush1.msra.mxu0 0.0
        %1030 = vmatprep.subr.mxu0 0.0
        %1031 = vmatpush1.msra.mxu0 0.0
        %1032 = vmatprep.subr.mxu0 0.0
        %1033 = vmatpush1.msra.mxu0 0.0
        %1034 = vmatprep.subr.mxu0 0.0
        %1035 = vmatpush1.msra.mxu0 0.0
        %1036 = vmatprep.subr.mxu0 0.0
        %1037 = vmatpush1.msra.mxu0 0.0
        %1038 = vmatprep.subr.mxu0 0.0
        %1039 = vmatpush1.msra.mxu0 0.0
        %1040 = vmatprep.subr.mxu0 0.0
        %1041 = vmatpush1.msra.mxu0 0.0
        %1042 = vmatprep.subr.mxu0 0.0
        %1043 = vmatpush1.msra.mxu0 0.0
        %1044 = vmatprep.subr.mxu0 0.0
        %1045 = vmatpush1.msra.mxu0 0.0
        %1046 = vmatprep.subr.mxu0 0.0
        %1047 = vmatpush1.msra.mxu0 0.0
        %1048 = vmatprep.subr.mxu0 0.0
        %1049 = vmatpush1.msra.mxu0 0.0
        %1050 = vmatprep.subr.mxu0 0.0
        %1051 = vmatpush1.msra.mxu0 0.0
        %1052 = vmatprep.subr.mxu0 0.0
        %1053 = vmatpush1.msra.mxu0 0.0
        %1054 = vmatprep.subr.mxu0 0.0
        %1055 = vmatpush1.msra.mxu0 0.0
        %1056 = vmatprep.subr.mxu0 0.0
        %1057 = vmatpush1.msra.mxu0 0.0
        %1058 = vmatprep.subr.mxu0 0.0
        %1059 = vmatpush1.msra.mxu0 0.0
        %1060 = vmatprep.subr.mxu0 0.0
        %1061 = vmatpush1.msra.mxu0 0.0
        %1062 = vmatprep.subr.mxu0 0.0
        %1063 = vmatpush1.msra.mxu0 0.0
        %1064 = vmatprep.subr.mxu0 0.0
        %1065 = vmatpush1.msra.mxu0 0.0
        %1066 = vmatprep.mubr.f32.mxu0 0.0
        %1067 = vmatmul.mubr.f32.gmra.mrb[0].mxu0 %v997
        %v1068 = vpop.f32.mrb[0].mxu0
        %v1069 = vadd.f32 0.0, %v1068
        %v1070 = vpop.f32.mrb[0].mxu0
        %1071 = vmatprep.mubr.f32.mxu0 0.0
        %1072 = vmatmul.mubr.f32.gmra.mrb[0].mxu0 %v1000
        %v1073 = vpop.f32.mrb[0].mxu0
        %v1074 = vadd.f32 0.0, %v1073
        %v1075 = vpop.f32.mrb[0].mxu0
        %1076 = vdwg.mxu0
        %v1077 = vld [vmem:[%s5] sm:$0xff]
        %v1078 = vld [vmem:[%s7] sm:$0x1]
        %v1080 = vlaneseq
        %v1081 = vshrl.u32 %v1080, 7
        %v1082 = vsub.s32 0, %v1081
        %v1083 = vrot.slane %v1078, %v1082
        %vm1085 = vcmask 64512
        %v1087 = vsel %vm1085, %v1069, 0
        %v1090 = vsel %vm1085, %v1074, 0
        %1092 = vmatprep.subr.mxu0 0.0
        %1093 = vmatpush1.msra.mxu0 %v1077
        %1094 = vmatprep.subr.mxu0 0.0
        %1095 = vmatpush1.msra.mxu0 0.0
        %1096 = vmatprep.subr.mxu0 0.0
        %1097 = vmatpush1.msra.mxu0 0.0
        %1098 = vmatprep.subr.mxu0 0.0
        %1099 = vmatpush1.msra.mxu0 0.0
        %1100 = vmatprep.subr.mxu0 0.0
        %1101 = vmatpush1.msra.mxu0 0.0
        %1102 = vmatprep.subr.mxu0 0.0
        %1103 = vmatpush1.msra.mxu0 0.0
        %1104 = vmatprep.subr.mxu0 0.0
        %1105 = vmatpush1.msra.mxu0 0.0
        %1106 = vmatprep.subr.mxu0 0.0
        %1107 = vmatpush1.msra.mxu0 0.0
        %1108 = vmatprep.subr.mxu0 0.0
        %1109 = vmatpush1.msra.mxu0 0.0
        %1110 = vmatprep.subr.mxu0 0.0
        %1111 = vmatpush1.msra.mxu0 0.0
        %1112 = vmatprep.subr.mxu0 0.0
        %1113 = vmatpush1.msra.mxu0 0.0
        %1114 = vmatprep.subr.mxu0 0.0
        %1115 = vmatpush1.msra.mxu0 0.0
        %1116 = vmatprep.subr.mxu0 0.0
        %1117 = vmatpush1.msra.mxu0 0.0
        %1118 = vmatprep.subr.mxu0 0.0
        %1119 = vmatpush1.msra.mxu0 0.0
        %1120 = vmatprep.subr.mxu0 0.0
        %1121 = vmatpush1.msra.mxu0 0.0
        %1122 = vmatprep.subr.mxu0 0.0
        %1123 = vmatpush1.msra.mxu0 0.0
        %1124 = vmatprep.subr.mxu0 0.0
        %1125 = vmatpush1.msra.mxu0 0.0
        %1126 = vmatprep.subr.mxu0 0.0
        %1127 = vmatpush1.msra.mxu0 0.0
        %1128 = vmatprep.subr.mxu0 0.0
        %1129 = vmatpush1.msra.mxu0 0.0
        %1130 = vmatprep.subr.mxu0 0.0
        %1131 = vmatpush1.msra.mxu0 0.0
        %1132 = vmatprep.subr.mxu0 0.0
        %1133 = vmatpush1.msra.mxu0 0.0
        %1134 = vmatprep.subr.mxu0 0.0
        %1135 = vmatpush1.msra.mxu0 0.0
        %1136 = vmatprep.subr.mxu0 0.0
        %1137 = vmatpush1.msra.mxu0 0.0
        %1138 = vmatprep.subr.mxu0 0.0
        %1139 = vmatpush1.msra.mxu0 0.0
        %1140 = vmatprep.subr.mxu0 0.0
        %1141 = vmatpush1.msra.mxu0 0.0
        %1142 = vmatprep.subr.mxu0 0.0
        %1143 = vmatpush1.msra.mxu0 0.0
        %1144 = vmatprep.subr.mxu0 0.0
        %1145 = vmatpush1.msra.mxu0 0.0
        %1146 = vmatprep.subr.mxu0 0.0
        %1147 = vmatpush1.msra.mxu0 0.0
        %1148 = vmatprep.subr.mxu0 0.0
        %1149 = vmatpush1.msra.mxu0 0.0
        %1150 = vmatprep.subr.mxu0 0.0
        %1151 = vmatpush1.msra.mxu0 0.0
        %1152 = vmatprep.subr.mxu0 0.0
        %1153 = vmatpush1.msra.mxu0 0.0
        %1154 = vmatprep.subr.mxu0 0.0
        %1155 = vmatpush1.msra.mxu0 0.0
        %1156 = vmatprep.mubr.f32.mxu0 0.0
        %1157 = vmatmul.mubr.f32.gmra.mrb[0].mxu0 %v1087
        %v1158 = vpop.f32.mrb[0].mxu0
        %v1159 = vadd.f32 %v1083, %v1158
        %v1160 = vpop.f32.mrb[0].mxu0
        %1161 = vmatprep.mubr.f32.mxu0 0.0
        %1162 = vmatmul.mubr.f32.gmra.mrb[0].mxu0 %v1090
        %v1163 = vpop.f32.mrb[0].mxu0
        %v1164 = vadd.f32 %v1083, %v1163
        %v1165 = vpop.f32.mrb[0].mxu0
        %1166 = vdwg.mxu0
        %v1167 = vld [vmem:[%s9] sm:$0xff]
        %v1169 = vsel %vm1085, %v991, 0
        %v1172 = vsel %vm1085, %v992, 0
        %1174 = vmatprep.subr.mxu0 0.0
        %1175 = vmatpush1.msra.mxu0 %v1167
        %1176 = vmatprep.subr.mxu0 0.0
        %1177 = vmatpush1.msra.mxu0 0.0
        %1178 = vmatprep.subr.mxu0 0.0
        %1179 = vmatpush1.msra.mxu0 0.0
        %1180 = vmatprep.subr.mxu0 0.0
        %1181 = vmatpush1.msra.mxu0 0.0
        %1182 = vmatprep.subr.mxu0 0.0
        %1183 = vmatpush1.msra.mxu0 0.0
        %1184 = vmatprep.subr.mxu0 0.0
        %1185 = vmatpush1.msra.mxu0 0.0
        %1186 = vmatprep.subr.mxu0 0.0
        %1187 = vmatpush1.msra.mxu0 0.0
        %1188 = vmatprep.subr.mxu0 0.0
        %1189 = vmatpush1.msra.mxu0 0.0
        %1190 = vmatprep.subr.mxu0 0.0
        %1191 = vmatpush1.msra.mxu0 0.0
        %1192 = vmatprep.subr.mxu0 0.0
        %1193 = vmatpush1.msra.mxu0 0.0
        %1194 = vmatprep.subr.mxu0 0.0
        %1195 = vmatpush1.msra.mxu0 0.0
        %1196 = vmatprep.subr.mxu0 0.0
        %1197 = vmatpush1.msra.mxu0 0.0
        %1198 = vmatprep.subr.mxu0 0.0
        %1199 = vmatpush1.msra.mxu0 0.0
        %1200 = vmatprep.subr.mxu0 0.0
        %1201 = vmatpush1.msra.mxu0 0.0
        %1202 = vmatprep.subr.mxu0 0.0
        %1203 = vmatpush1.msra.mxu0 0.0
        %1204 = vmatprep.subr.mxu0 0.0
        %1205 = vmatpush1.msra.mxu0 0.0
        %1206 = vmatprep.subr.mxu0 0.0
        %1207 = vmatpush1.msra.mxu0 0.0
        %1208 = vmatprep.subr.mxu0 0.0
        %1209 = vmatpush1.msra.mxu0 0.0
        %1210 = vmatprep.subr.mxu0 0.0
        %1211 = vmatpush1.msra.mxu0 0.0
        %1212 = vmatprep.subr.mxu0 0.0
        %1213 = vmatpush1.msra.mxu0 0.0
        %1214 = vmatprep.subr.mxu0 0.0
        %1215 = vmatpush1.msra.mxu0 0.0
        %1216 = vmatprep.subr.mxu0 0.0
        %1217 = vmatpush1.msra.mxu0 0.0
        %1218 = vmatprep.subr.mxu0 0.0
        %1219 = vmatpush1.msra.mxu0 0.0
        %1220 = vmatprep.subr.mxu0 0.0
        %1221 = vmatpush1.msra.mxu0 0.0
        %1222 = vmatprep.subr.mxu0 0.0
        %1223 = vmatpush1.msra.mxu0 0.0
        %1224 = vmatprep.subr.mxu0 0.0
        %1225 = vmatpush1.msra.mxu0 0.0
        %1226 = vmatprep.subr.mxu0 0.0
        %1227 = vmatpush1.msra.mxu0 0.0
        %1228 = vmatprep.subr.mxu0 0.0
        %1229 = vmatpush1.msra.mxu0 0.0
        %1230 = vmatprep.subr.mxu0 0.0
        %1231 = vmatpush1.msra.mxu0 0.0
        %1232 = vmatprep.subr.mxu0 0.0
        %1233 = vmatpush1.msra.mxu0 0.0
        %1234 = vmatprep.subr.mxu0 0.0
        %1235 = vmatpush1.msra.mxu0 0.0
        %1236 = vmatprep.subr.mxu0 0.0
        %1237 = vmatpush1.msra.mxu0 0.0
        %1238 = vmatprep.mubr.f32.mxu0 0.0
        %1239 = vmatmul.mubr.f32.gmra.mrb[0].mxu0 %v1169
        %v1240 = vpop.f32.mrb[0].mxu0
        %v1241 = vadd.f32 0.0, %v1240
        %v1242 = vpop.f32.mrb[0].mxu0
        %1243 = vmatprep.mubr.f32.mxu0 0.0
        %1244 = vmatmul.mubr.f32.gmra.mrb[0].mxu0 %v1172
        %v1245 = vpop.f32.mrb[0].mxu0
        %v1246 = vadd.f32 0.0, %v1245
        %v1247 = vpop.f32.mrb[0].mxu0
        %1248 = vdwg.mxu0
        %v1249 = vadd.f32 %v1159, %v1241
        %v1250 = vadd.f32 %v1164, %v1246
        %v1251 = vmax.f32 %v1249, 0.0
        %v1252 = vmax.f32 %v1250, 0.0
        %v1253 = vld [vmem:[%s23] sm:$0xff]
        %v1254 = vld [vmem:[%s29] sm:$0x1]
        %v1256 = vlaneseq
        %v1257 = vshrl.u32 %v1256, 7
        %v1258 = vsub.s32 0, %v1257
        %v1259 = vrot.slane %v1254, %v1258
        %v1262 = vsel %vm1085, %v1251, 0
        %v1265 = vsel %vm1085, %v1252, 0
        %1267 = vmatprep.subr.mxu0 0.0
        %1268 = vmatpush1.msra.mxu0 %v1253
        %1269 = vmatprep.subr.mxu0 0.0
        %1270 = vmatpush1.msra.mxu0 0.0
        %1271 = vmatprep.subr.mxu0 0.0
        %1272 = vmatpush1.msra.mxu0 0.0
        %1273 = vmatprep.subr.mxu0 0.0
        %1274 = vmatpush1.msra.mxu0 0.0
        %1275 = vmatprep.subr.mxu0 0.0
        %1276 = vmatpush1.msra.mxu0 0.0
        %1277 = vmatprep.subr.mxu0 0.0
        %1278 = vmatpush1.msra.mxu0 0.0
        %1279 = vmatprep.subr.mxu0 0.0
        %1280 = vmatpush1.msra.mxu0 0.0
        %1281 = vmatprep.subr.mxu0 0.0
        %1282 = vmatpush1.msra.mxu0 0.0
        %1283 = vmatprep.subr.mxu0 0.0
        %1284 = vmatpush1.msra.mxu0 0.0
        %1285 = vmatprep.subr.mxu0 0.0
        %1286 = vmatpush1.msra.mxu0 0.0
        %1287 = vmatprep.subr.mxu0 0.0
        %1288 = vmatpush1.msra.mxu0 0.0
        %1289 = vmatprep.subr.mxu0 0.0
        %1290 = vmatpush1.msra.mxu0 0.0
        %1291 = vmatprep.subr.mxu0 0.0
        %1292 = vmatpush1.msra.mxu0 0.0
        %1293 = vmatprep.subr.mxu0 0.0
        %1294 = vmatpush1.msra.mxu0 0.0
        %1295 = vmatprep.subr.mxu0 0.0
        %1296 = vmatpush1.msra.mxu0 0.0
        %1297 = vmatprep.subr.mxu0 0.0
        %1298 = vmatpush1.msra.mxu0 0.0
        %1299 = vmatprep.subr.mxu0 0.0
        %1300 = vmatpush1.msra.mxu0 0.0
        %1301 = vmatprep.subr.mxu0 0.0
        %1302 = vmatpush1.msra.mxu0 0.0
        %1303 = vmatprep.subr.mxu0 0.0
        %1304 = vmatpush1.msra.mxu0 0.0
        %1305 = vmatprep.subr.mxu0 0.0
        %1306 = vmatpush1.msra.mxu0 0.0
        %1307 = vmatprep.subr.mxu0 0.0
        %1308 = vmatpush1.msra.mxu0 0.0
        %1309 = vmatprep.subr.mxu0 0.0
        %1310 = vmatpush1.msra.mxu0 0.0
        %1311 = vmatprep.subr.mxu0 0.0
        %1312 = vmatpush1.msra.mxu0 0.0
        %1313 = vmatprep.subr.mxu0 0.0
        %1314 = vmatpush1.msra.mxu0 0.0
        %1315 = vmatprep.subr.mxu0 0.0
        %1316 = vmatpush1.msra.mxu0 0.0
        %1317 = vmatprep.subr.mxu0 0.0
        %1318 = vmatpush1.msra.mxu0 0.0
        %1319 = vmatprep.subr.mxu0 0.0
        %1320 = vmatpush1.msra.mxu0 0.0
        %1321 = vmatprep.subr.mxu0 0.0
        %1322 = vmatpush1.msra.mxu0 0.0
        %1323 = vmatprep.subr.mxu0 0.0
        %1324 = vmatpush1.msra.mxu0 0.0
        %1325 = vmatprep.subr.mxu0 0.0
        %1326 = vmatpush1.msra.mxu0 0.0
        %1327 = vmatprep.subr.mxu0 0.0
        %1328 = vmatpush1.msra.mxu0 0.0
        %1329 = vmatprep.subr.mxu0 0.0
        %1330 = vmatpush1.msra.mxu0 0.0
        %1331 = vmatprep.mubr.f32.mxu0 0.0
        %1332 = vmatmul.mubr.f32.gmra.mrb[0].mxu0 %v1262
        %v1333 = vpop.f32.mrb[0].mxu0
        %v1334 = vadd.f32 %v1259, %v1333
        %v1335 = vpop.f32.mrb[0].mxu0
        %1336 = vmatprep.mubr.f32.mxu0 0.0
        %1337 = vmatmul.mubr.f32.gmra.mrb[0].mxu0 %v1265
        %v1338 = vpop.f32.mrb[0].mxu0
        %v1339 = vadd.f32 %v1259, %v1338
        %v1340 = vpop.f32.mrb[0].mxu0
        %1341 = vdwg.mxu0
        %1342 = vmatprep.subr.mxu0 0.0
        %1343 = vmatpush1.msra.mxu0 %v1251
        %1344 = vmatprep.subr.mxu0 0.0
        %1345 = vmatpush1.msra.mxu0 %v1252
        %1346 = vmatprep.subr.mxu0 0.0
        %1347 = vmatpush1.msra.mxu0 0.0
        %1348 = vmatprep.subr.mxu0 0.0
        %1349 = vmatpush1.msra.mxu0 0.0
        %1350 = vmatprep.subr.mxu0 0.0
        %1351 = vmatpush1.msra.mxu0 0.0
        %1352 = vmatprep.subr.mxu0 0.0
        %1353 = vmatpush1.msra.mxu0 0.0
        %1354 = vmatprep.subr.mxu0 0.0
        %1355 = vmatpush1.msra.mxu0 0.0
        %1356 = vmatprep.subr.mxu0 0.0
        %1357 = vmatpush1.msra.mxu0 0.0
        %1358 = vmatprep.subr.mxu0 0.0
        %1359 = vmatpush1.msra.mxu0 0.0
        %1360 = vmatprep.subr.mxu0 0.0
        %1361 = vmatpush1.msra.mxu0 0.0
        %1362 = vmatprep.subr.mxu0 0.0
        %1363 = vmatpush1.msra.mxu0 0.0
        %1364 = vmatprep.subr.mxu0 0.0
        %1365 = vmatpush1.msra.mxu0 0.0
        %1366 = vmatprep.subr.mxu0 0.0
        %1367 = vmatpush1.msra.mxu0 0.0
        %1368 = vmatprep.subr.mxu0 0.0
        %1369 = vmatpush1.msra.mxu0 0.0
        %1370 = vmatprep.subr.mxu0 0.0
        %1371 = vmatpush1.msra.mxu0 0.0
        %1372 = vmatprep.subr.mxu0 0.0
        %1373 = vmatpush1.msra.mxu0 0.0
        %1374 = vmatprep.subr.mxu0 0.0
        %1375 = vmatpush1.msra.mxu0 0.0
        %1376 = vmatprep.subr.mxu0 0.0
        %1377 = vmatpush1.msra.mxu0 0.0
        %1378 = vmatprep.subr.mxu0 0.0
        %1379 = vmatpush1.msra.mxu0 0.0
        %1380 = vmatprep.subr.mxu0 0.0
        %1381 = vmatpush1.msra.mxu0 0.0
        %1382 = vmatprep.subr.mxu0 0.0
        %1383 = vmatpush1.msra.mxu0 0.0
        %1384 = vmatprep.subr.mxu0 0.0
        %1385 = vmatpush1.msra.mxu0 0.0
        %1386 = vmatprep.subr.mxu0 0.0
        %1387 = vmatpush1.msra.mxu0 0.0
        %1388 = vmatprep.subr.mxu0 0.0
        %1389 = vmatpush1.msra.mxu0 0.0
        %1390 = vmatprep.subr.mxu0 0.0
        %1391 = vmatpush1.msra.mxu0 0.0
        %1392 = vmatprep.subr.mxu0 0.0
        %1393 = vmatpush1.msra.mxu0 0.0
        %1394 = vmatprep.subr.mxu0 0.0
        %1395 = vmatpush1.msra.mxu0 0.0
        %1396 = vmatprep.subr.mxu0 0.0
        %1397 = vmatpush1.msra.mxu0 0.0
        %1398 = vmatprep.subr.mxu0 0.0
        %1399 = vmatpush1.msra.mxu0 0.0
        %1400 = vmatprep.subr.mxu0 0.0
        %1401 = vmatpush1.msra.mxu0 0.0
        %1402 = vmatprep.subr.mxu0 0.0
        %1403 = vmatpush1.msra.mxu0 0.0
        %1404 = vmatprep.subr.mxu0 0.0
        %1405 = vmatpush1.msra.mxu0 0.0
        %1406 = vmatprep.mubr.f32.mxu0 0.0
        %1407 = vmatmul.mubr.f32.gmra.mrb[0].mxu0 %v997
        %v1408 = vpop.f32.mrb[0].mxu0
        %v1409 = vadd.f32 0.0, %v1408
        %v1410 = vpop.f32.mrb[0].mxu0
        %1411 = vmatprep.mubr.f32.mxu0 0.0
        %1412 = vmatmul.mubr.f32.gmra.mrb[0].mxu0 %v1000
        %v1413 = vpop.f32.mrb[0].mxu0
        %v1414 = vadd.f32 0.0, %v1413
        %v1415 = vpop.f32.mrb[0].mxu0
        %1416 = vdwg.mxu0
        %v1417 = vld [vmem:[%s11] sm:$0xff]
        %v1418 = vld [vmem:[#allocation2] sm:$0x1]
        %v1420 = vlaneseq
        %v1421 = vshrl.u32 %v1420, 7
        %v1422 = vsub.s32 0, %v1421
        %v1423 = vrot.slane %v1418, %v1422
        %v1426 = vsel %vm1085, %v1409, 0
        %v1429 = vsel %vm1085, %v1414, 0
        %1431 = vmatprep.subr.mxu0 0.0
        %1432 = vmatpush1.msra.mxu0 %v1417
        %1433 = vmatprep.subr.mxu0 0.0
        %1434 = vmatpush1.msra.mxu0 0.0
        %1435 = vmatprep.subr.mxu0 0.0
        %1436 = vmatpush1.msra.mxu0 0.0
        %1437 = vmatprep.subr.mxu0 0.0
        %1438 = vmatpush1.msra.mxu0 0.0
        %1439 = vmatprep.subr.mxu0 0.0
        %1440 = vmatpush1.msra.mxu0 0.0
        %1441 = vmatprep.subr.mxu0 0.0
        %1442 = vmatpush1.msra.mxu0 0.0
        %1443 = vmatprep.subr.mxu0 0.0
        %1444 = vmatpush1.msra.mxu0 0.0
        %1445 = vmatprep.subr.mxu0 0.0
        %1446 = vmatpush1.msra.mxu0 0.0
        %1447 = vmatprep.subr.mxu0 0.0
        %1448 = vmatpush1.msra.mxu0 0.0
        %1449 = vmatprep.subr.mxu0 0.0
        %1450 = vmatpush1.msra.mxu0 0.0
        %1451 = vmatprep.subr.mxu0 0.0
        %1452 = vmatpush1.msra.mxu0 0.0
        %1453 = vmatprep.subr.mxu0 0.0
        %1454 = vmatpush1.msra.mxu0 0.0
        %1455 = vmatprep.subr.mxu0 0.0
        %1456 = vmatpush1.msra.mxu0 0.0
        %1457 = vmatprep.subr.mxu0 0.0
        %1458 = vmatpush1.msra.mxu0 0.0
        %1459 = vmatprep.subr.mxu0 0.0
        %1460 = vmatpush1.msra.mxu0 0.0
        %1461 = vmatprep.subr.mxu0 0.0
        %1462 = vmatpush1.msra.mxu0 0.0
        %1463 = vmatprep.subr.mxu0 0.0
        %1464 = vmatpush1.msra.mxu0 0.0
        %1465 = vmatprep.subr.mxu0 0.0
        %1466 = vmatpush1.msra.mxu0 0.0
        %1467 = vmatprep.subr.mxu0 0.0
        %1468 = vmatpush1.msra.mxu0 0.0
        %1469 = vmatprep.subr.mxu0 0.0
        %1470 = vmatpush1.msra.mxu0 0.0
        %1471 = vmatprep.subr.mxu0 0.0
        %1472 = vmatpush1.msra.mxu0 0.0
        %1473 = vmatprep.subr.mxu0 0.0
        %1474 = vmatpush1.msra.mxu0 0.0
        %1475 = vmatprep.subr.mxu0 0.0
        %1476 = vmatpush1.msra.mxu0 0.0
        %1477 = vmatprep.subr.mxu0 0.0
        %1478 = vmatpush1.msra.mxu0 0.0
        %1479 = vmatprep.subr.mxu0 0.0
        %1480 = vmatpush1.msra.mxu0 0.0
        %1481 = vmatprep.subr.mxu0 0.0
        %1482 = vmatpush1.msra.mxu0 0.0
        %1483 = vmatprep.subr.mxu0 0.0
        %1484 = vmatpush1.msra.mxu0 0.0
        %1485 = vmatprep.subr.mxu0 0.0
        %1486 = vmatpush1.msra.mxu0 0.0
        %1487 = vmatprep.subr.mxu0 0.0
        %1488 = vmatpush1.msra.mxu0 0.0
        %1489 = vmatprep.subr.mxu0 0.0
        %1490 = vmatpush1.msra.mxu0 0.0
        %1491 = vmatprep.subr.mxu0 0.0
        %1492 = vmatpush1.msra.mxu0 0.0
        %1493 = vmatprep.subr.mxu0 0.0
        %1494 = vmatpush1.msra.mxu0 0.0
        %1495 = vmatprep.mubr.f32.mxu0 0.0
        %1496 = vmatmul.mubr.f32.gmra.mrb[0].mxu0 %v1426
        %v1497 = vpop.f32.mrb[0].mxu0
        %v1498 = vadd.f32 %v1423, %v1497
        %v1499 = vpop.f32.mrb[0].mxu0
        %1500 = vmatprep.mubr.f32.mxu0 0.0
        %1501 = vmatmul.mubr.f32.gmra.mrb[0].mxu0 %v1429
        %v1502 = vpop.f32.mrb[0].mxu0
        %v1503 = vadd.f32 %v1423, %v1502
        %v1504 = vpop.f32.mrb[0].mxu0
        %1505 = vdwg.mxu0
        %v1506 = vld [vmem:[%s15] sm:$0xff]
        %1507 = vmatprep.subr.mxu0 0.0
        %1508 = vmatpush1.msra.mxu0 %v1506
        %1509 = vmatprep.subr.mxu0 0.0
        %1510 = vmatpush1.msra.mxu0 0.0
        %1511 = vmatprep.subr.mxu0 0.0
        %1512 = vmatpush1.msra.mxu0 0.0
        %1513 = vmatprep.subr.mxu0 0.0
        %1514 = vmatpush1.msra.mxu0 0.0
        %1515 = vmatprep.subr.mxu0 0.0
        %1516 = vmatpush1.msra.mxu0 0.0
        %1517 = vmatprep.subr.mxu0 0.0
        %1518 = vmatpush1.msra.mxu0 0.0
        %1519 = vmatprep.subr.mxu0 0.0
        %1520 = vmatpush1.msra.mxu0 0.0
        %1521 = vmatprep.subr.mxu0 0.0
        %1522 = vmatpush1.msra.mxu0 0.0
        %1523 = vmatprep.subr.mxu0 0.0
        %1524 = vmatpush1.msra.mxu0 0.0
        %1525 = vmatprep.subr.mxu0 0.0
        %1526 = vmatpush1.msra.mxu0 0.0
        %1527 = vmatprep.subr.mxu0 0.0
        %1528 = vmatpush1.msra.mxu0 0.0
        %1529 = vmatprep.subr.mxu0 0.0
        %1530 = vmatpush1.msra.mxu0 0.0
        %1531 = vmatprep.subr.mxu0 0.0
        %1532 = vmatpush1.msra.mxu0 0.0
        %1533 = vmatprep.subr.mxu0 0.0
        %1534 = vmatpush1.msra.mxu0 0.0
        %1535 = vmatprep.subr.mxu0 0.0
        %1536 = vmatpush1.msra.mxu0 0.0
        %1537 = vmatprep.subr.mxu0 0.0
        %1538 = vmatpush1.msra.mxu0 0.0
        %1539 = vmatprep.subr.mxu0 0.0
        %1540 = vmatpush1.msra.mxu0 0.0
        %1541 = vmatprep.subr.mxu0 0.0
        %1542 = vmatpush1.msra.mxu0 0.0
        %1543 = vmatprep.subr.mxu0 0.0
        %1544 = vmatpush1.msra.mxu0 0.0
        %1545 = vmatprep.subr.mxu0 0.0
        %1546 = vmatpush1.msra.mxu0 0.0
        %1547 = vmatprep.subr.mxu0 0.0
        %1548 = vmatpush1.msra.mxu0 0.0
        %1549 = vmatprep.subr.mxu0 0.0
        %1550 = vmatpush1.msra.mxu0 0.0
        %1551 = vmatprep.subr.mxu0 0.0
        %1552 = vmatpush1.msra.mxu0 0.0
        %1553 = vmatprep.subr.mxu0 0.0
        %1554 = vmatpush1.msra.mxu0 0.0
        %1555 = vmatprep.subr.mxu0 0.0
        %1556 = vmatpush1.msra.mxu0 0.0
        %1557 = vmatprep.subr.mxu0 0.0
        %1558 = vmatpush1.msra.mxu0 0.0
        %1559 = vmatprep.subr.mxu0 0.0
        %1560 = vmatpush1.msra.mxu0 0.0
        %1561 = vmatprep.subr.mxu0 0.0
        %1562 = vmatpush1.msra.mxu0 0.0
        %1563 = vmatprep.subr.mxu0 0.0
        %1564 = vmatpush1.msra.mxu0 0.0
        %1565 = vmatprep.subr.mxu0 0.0
        %1566 = vmatpush1.msra.mxu0 0.0
        %1567 = vmatprep.subr.mxu0 0.0
        %1568 = vmatpush1.msra.mxu0 0.0
        %1569 = vmatprep.subr.mxu0 0.0
        %1570 = vmatpush1.msra.mxu0 0.0
        %1571 = vmatprep.mubr.f32.mxu0 0.0
        %1572 = vmatmul.mubr.f32.gmra.mrb[0].mxu0 %v1262
        %v1573 = vpop.f32.mrb[0].mxu0
        %v1574 = vadd.f32 0.0, %v1573
        %v1575 = vpop.f32.mrb[0].mxu0
        %1576 = vmatprep.mubr.f32.mxu0 0.0
        %1577 = vmatmul.mubr.f32.gmra.mrb[0].mxu0 %v1265
        %v1578 = vpop.f32.mrb[0].mxu0
        %v1579 = vadd.f32 0.0, %v1578
        %v1580 = vpop.f32.mrb[0].mxu0
        %1581 = vdwg.mxu0
        %v1582 = vadd.f32 %v1498, %v1574
        %v1583 = vadd.f32 %v1503, %v1579
        %v1584 = vmax.f32 %v1582, 0.0
        %v1585 = vmax.f32 %v1583, 0.0
        %v1586 = vld [vmem:[%s25] sm:$0xff]
        %v1588 = vsel %vm1085, %v1584, 0
        %v1591 = vsel %vm1085, %v1585, 0
        %1593 = vmatprep.subr.mxu0 0.0
        %1594 = vmatpush1.msra.mxu0 %v1586
        %1595 = vmatprep.subr.mxu0 0.0
        %1596 = vmatpush1.msra.mxu0 0.0
        %1597 = vmatprep.subr.mxu0 0.0
        %1598 = vmatpush1.msra.mxu0 0.0
        %1599 = vmatprep.subr.mxu0 0.0
        %1600 = vmatpush1.msra.mxu0 0.0
        %1601 = vmatprep.subr.mxu0 0.0
        %1602 = vmatpush1.msra.mxu0 0.0
        %1603 = vmatprep.subr.mxu0 0.0
        %1604 = vmatpush1.msra.mxu0 0.0
        %1605 = vmatprep.subr.mxu0 0.0
        %1606 = vmatpush1.msra.mxu0 0.0
        %1607 = vmatprep.subr.mxu0 0.0
        %1608 = vmatpush1.msra.mxu0 0.0
        %1609 = vmatprep.subr.mxu0 0.0
        %1610 = vmatpush1.msra.mxu0 0.0
        %1611 = vmatprep.subr.mxu0 0.0
        %1612 = vmatpush1.msra.mxu0 0.0
        %1613 = vmatprep.subr.mxu0 0.0
        %1614 = vmatpush1.msra.mxu0 0.0
        %1615 = vmatprep.subr.mxu0 0.0
        %1616 = vmatpush1.msra.mxu0 0.0
        %1617 = vmatprep.subr.mxu0 0.0
        %1618 = vmatpush1.msra.mxu0 0.0
        %1619 = vmatprep.subr.mxu0 0.0
        %1620 = vmatpush1.msra.mxu0 0.0
        %1621 = vmatprep.subr.mxu0 0.0
        %1622 = vmatpush1.msra.mxu0 0.0
        %1623 = vmatprep.subr.mxu0 0.0
        %1624 = vmatpush1.msra.mxu0 0.0
        %1625 = vmatprep.subr.mxu0 0.0
        %1626 = vmatpush1.msra.mxu0 0.0
        %1627 = vmatprep.subr.mxu0 0.0
        %1628 = vmatpush1.msra.mxu0 0.0
        %1629 = vmatprep.subr.mxu0 0.0
        %1630 = vmatpush1.msra.mxu0 0.0
        %1631 = vmatprep.subr.mxu0 0.0
        %1632 = vmatpush1.msra.mxu0 0.0
        %1633 = vmatprep.subr.mxu0 0.0
        %1634 = vmatpush1.msra.mxu0 0.0
        %1635 = vmatprep.subr.mxu0 0.0
        %1636 = vmatpush1.msra.mxu0 0.0
        %1637 = vmatprep.subr.mxu0 0.0
        %1638 = vmatpush1.msra.mxu0 0.0
        %1639 = vmatprep.subr.mxu0 0.0
        %1640 = vmatpush1.msra.mxu0 0.0
        %1641 = vmatprep.subr.mxu0 0.0
        %1642 = vmatpush1.msra.mxu0 0.0
        %1643 = vmatprep.subr.mxu0 0.0
        %1644 = vmatpush1.msra.mxu0 0.0
        %1645 = vmatprep.subr.mxu0 0.0
        %1646 = vmatpush1.msra.mxu0 0.0
        %1647 = vmatprep.subr.mxu0 0.0
        %1648 = vmatpush1.msra.mxu0 0.0
        %1649 = vmatprep.subr.mxu0 0.0
        %1650 = vmatpush1.msra.mxu0 0.0
        %1651 = vmatprep.subr.mxu0 0.0
        %1652 = vmatpush1.msra.mxu0 0.0
        %1653 = vmatprep.subr.mxu0 0.0
        %1654 = vmatpush1.msra.mxu0 0.0
        %1655 = vmatprep.subr.mxu0 0.0
        %1656 = vmatpush1.msra.mxu0 0.0
        %1657 = vmatprep.mubr.f32.mxu0 0.0
        %1658 = vmatmul.mubr.f32.gmra.mrb[0].mxu0 %v1588
        %v1659 = vpop.f32.mrb[0].mxu0
        %v1660 = vadd.f32 0.0, %v1659
        %v1661 = vpop.f32.mrb[0].mxu0
        %1662 = vmatprep.mubr.f32.mxu0 0.0
        %1663 = vmatmul.mubr.f32.gmra.mrb[0].mxu0 %v1591
        %v1664 = vpop.f32.mrb[0].mxu0
        %v1665 = vadd.f32 0.0, %v1664
        %v1666 = vpop.f32.mrb[0].mxu0
        %1667 = vdwg.mxu0
        %v1668 = vadd.f32 %v1334, %v1660
        %v1669 = vadd.f32 %v1339, %v1665
        %1670 = vmatprep.subr.mxu0 0.0
        %1671 = vmatpush1.msra.mxu0 %v1584
        %1672 = vmatprep.subr.mxu0 0.0
        %1673 = vmatpush1.msra.mxu0 %v1585
        %1674 = vmatprep.subr.mxu0 0.0
        %1675 = vmatpush1.msra.mxu0 0.0
        %1676 = vmatprep.subr.mxu0 0.0
        %1677 = vmatpush1.msra.mxu0 0.0
        %1678 = vmatprep.subr.mxu0 0.0
        %1679 = vmatpush1.msra.mxu0 0.0
        %1680 = vmatprep.subr.mxu0 0.0
        %1681 = vmatpush1.msra.mxu0 0.0
        %1682 = vmatprep.subr.mxu0 0.0
        %1683 = vmatpush1.msra.mxu0 0.0
        %1684 = vmatprep.subr.mxu0 0.0
        %1685 = vmatpush1.msra.mxu0 0.0
        %1686 = vmatprep.subr.mxu0 0.0
        %1687 = vmatpush1.msra.mxu0 0.0
        %1688 = vmatprep.subr.mxu0 0.0
        %1689 = vmatpush1.msra.mxu0 0.0
        %1690 = vmatprep.subr.mxu0 0.0
        %1691 = vmatpush1.msra.mxu0 0.0
        %1692 = vmatprep.subr.mxu0 0.0
        %1693 = vmatpush1.msra.mxu0 0.0
        %1694 = vmatprep.subr.mxu0 0.0
        %1695 = vmatpush1.msra.mxu0 0.0
        %1696 = vmatprep.subr.mxu0 0.0
        %1697 = vmatpush1.msra.mxu0 0.0
        %1698 = vmatprep.subr.mxu0 0.0
        %1699 = vmatpush1.msra.mxu0 0.0
        %1700 = vmatprep.subr.mxu0 0.0
        %1701 = vmatpush1.msra.mxu0 0.0
        %1702 = vmatprep.subr.mxu0 0.0
        %1703 = vmatpush1.msra.mxu0 0.0
        %1704 = vmatprep.subr.mxu0 0.0
        %1705 = vmatpush1.msra.mxu0 0.0
        %1706 = vmatprep.subr.mxu0 0.0
        %1707 = vmatpush1.msra.mxu0 0.0
        %1708 = vmatprep.subr.mxu0 0.0
        %1709 = vmatpush1.msra.mxu0 0.0
        %1710 = vmatprep.subr.mxu0 0.0
        %1711 = vmatpush1.msra.mxu0 0.0
        %1712 = vmatprep.subr.mxu0 0.0
        %1713 = vmatpush1.msra.mxu0 0.0
        %1714 = vmatprep.subr.mxu0 0.0
        %1715 = vmatpush1.msra.mxu0 0.0
        %1716 = vmatprep.subr.mxu0 0.0
        %1717 = vmatpush1.msra.mxu0 0.0
        %1718 = vmatprep.subr.mxu0 0.0
        %1719 = vmatpush1.msra.mxu0 0.0
        %1720 = vmatprep.subr.mxu0 0.0
        %1721 = vmatpush1.msra.mxu0 0.0
        %1722 = vmatprep.subr.mxu0 0.0
        %1723 = vmatpush1.msra.mxu0 0.0
        %1724 = vmatprep.subr.mxu0 0.0
        %1725 = vmatpush1.msra.mxu0 0.0
        %1726 = vmatprep.subr.mxu0 0.0
        %1727 = vmatpush1.msra.mxu0 0.0
        %1728 = vmatprep.subr.mxu0 0.0
        %1729 = vmatpush1.msra.mxu0 0.0
        %1730 = vmatprep.subr.mxu0 0.0
        %1731 = vmatpush1.msra.mxu0 0.0
        %1732 = vmatprep.subr.mxu0 0.0
        %1733 = vmatpush1.msra.mxu0 0.0
        %1734 = vmatprep.mubr.f32.mxu0 0.0
        %1735 = vmatmul.mubr.f32.gmra.mrb[0].mxu0 %v997
        %v1736 = vpop.f32.mrb[0].mxu0
        %v1737 = vadd.f32 0.0, %v1736
        %v1738 = vpop.f32.mrb[0].mxu0
        %1739 = vmatprep.mubr.f32.mxu0 0.0
        %1740 = vmatmul.mubr.f32.gmra.mrb[0].mxu0 %v1000
        %v1741 = vpop.f32.mrb[0].mxu0
        %v1742 = vadd.f32 0.0, %v1741
        %v1743 = vpop.f32.mrb[0].mxu0
        %1744 = vdwg.mxu0
        %v1745 = vld [vmem:[%s17] sm:$0xff]
        %v1746 = vld [vmem:[#allocation5] sm:$0x1]
        %v1748 = vlaneseq
        %v1749 = vshrl.u32 %v1748, 7
        %v1750 = vsub.s32 0, %v1749
        %v1751 = vrot.slane %v1746, %v1750
        %v1754 = vsel %vm1085, %v1737, 0
        %v1757 = vsel %vm1085, %v1742, 0
        %1759 = vmatprep.subr.mxu0 0.0
        %1760 = vmatpush1.msra.mxu0 %v1745
        %1761 = vmatprep.subr.mxu0 0.0
        %1762 = vmatpush1.msra.mxu0 0.0
        %1763 = vmatprep.subr.mxu0 0.0
        %1764 = vmatpush1.msra.mxu0 0.0
        %1765 = vmatprep.subr.mxu0 0.0
        %1766 = vmatpush1.msra.mxu0 0.0
        %1767 = vmatprep.subr.mxu0 0.0
        %1768 = vmatpush1.msra.mxu0 0.0
        %1769 = vmatprep.subr.mxu0 0.0
        %1770 = vmatpush1.msra.mxu0 0.0
        %1771 = vmatprep.subr.mxu0 0.0
        %1772 = vmatpush1.msra.mxu0 0.0
        %1773 = vmatprep.subr.mxu0 0.0
        %1774 = vmatpush1.msra.mxu0 0.0
        %1775 = vmatprep.subr.mxu0 0.0
        %1776 = vmatpush1.msra.mxu0 0.0
        %1777 = vmatprep.subr.mxu0 0.0
        %1778 = vmatpush1.msra.mxu0 0.0
        %1779 = vmatprep.subr.mxu0 0.0
        %1780 = vmatpush1.msra.mxu0 0.0
        %1781 = vmatprep.subr.mxu0 0.0
        %1782 = vmatpush1.msra.mxu0 0.0
        %1783 = vmatprep.subr.mxu0 0.0
        %1784 = vmatpush1.msra.mxu0 0.0
        %1785 = vmatprep.subr.mxu0 0.0
        %1786 = vmatpush1.msra.mxu0 0.0
        %1787 = vmatprep.subr.mxu0 0.0
        %1788 = vmatpush1.msra.mxu0 0.0
        %1789 = vmatprep.subr.mxu0 0.0
        %1790 = vmatpush1.msra.mxu0 0.0
        %1791 = vmatprep.subr.mxu0 0.0
        %1792 = vmatpush1.msra.mxu0 0.0
        %1793 = vmatprep.subr.mxu0 0.0
        %1794 = vmatpush1.msra.mxu0 0.0
        %1795 = vmatprep.subr.mxu0 0.0
        %1796 = vmatpush1.msra.mxu0 0.0
        %1797 = vmatprep.subr.mxu0 0.0
        %1798 = vmatpush1.msra.mxu0 0.0
        %1799 = vmatprep.subr.mxu0 0.0
        %1800 = vmatpush1.msra.mxu0 0.0
        %1801 = vmatprep.subr.mxu0 0.0
        %1802 = vmatpush1.msra.mxu0 0.0
        %1803 = vmatprep.subr.mxu0 0.0
        %1804 = vmatpush1.msra.mxu0 0.0
        %1805 = vmatprep.subr.mxu0 0.0
        %1806 = vmatpush1.msra.mxu0 0.0
        %1807 = vmatprep.subr.mxu0 0.0
        %1808 = vmatpush1.msra.mxu0 0.0
        %1809 = vmatprep.subr.mxu0 0.0
        %1810 = vmatpush1.msra.mxu0 0.0
        %1811 = vmatprep.subr.mxu0 0.0
        %1812 = vmatpush1.msra.mxu0 0.0
        %1813 = vmatprep.subr.mxu0 0.0
        %1814 = vmatpush1.msra.mxu0 0.0
        %1815 = vmatprep.subr.mxu0 0.0
        %1816 = vmatpush1.msra.mxu0 0.0
        %1817 = vmatprep.subr.mxu0 0.0
        %1818 = vmatpush1.msra.mxu0 0.0
        %1819 = vmatprep.subr.mxu0 0.0
        %1820 = vmatpush1.msra.mxu0 0.0
        %1821 = vmatprep.subr.mxu0 0.0
        %1822 = vmatpush1.msra.mxu0 0.0
        %1823 = vmatprep.mubr.f32.mxu0 0.0
        %1824 = vmatmul.mubr.f32.gmra.mrb[0].mxu0 %v1754
        %v1825 = vpop.f32.mrb[0].mxu0
        %v1826 = vadd.f32 %v1751, %v1825
        %v1827 = vpop.f32.mrb[0].mxu0
        %1828 = vmatprep.mubr.f32.mxu0 0.0
        %1829 = vmatmul.mubr.f32.gmra.mrb[0].mxu0 %v1757
        %v1830 = vpop.f32.mrb[0].mxu0
        %v1831 = vadd.f32 %v1751, %v1830
        %v1832 = vpop.f32.mrb[0].mxu0
        %1833 = vdwg.mxu0
        %v1834 = vld [vmem:[%s21] sm:$0xff]
        %1835 = vmatprep.subr.mxu0 0.0
        %1836 = vmatpush1.msra.mxu0 %v1834
        %1837 = vmatprep.subr.mxu0 0.0
        %1838 = vmatpush1.msra.mxu0 0.0
        %1839 = vmatprep.subr.mxu0 0.0
        %1840 = vmatpush1.msra.mxu0 0.0
        %1841 = vmatprep.subr.mxu0 0.0
        %1842 = vmatpush1.msra.mxu0 0.0
        %1843 = vmatprep.subr.mxu0 0.0
        %1844 = vmatpush1.msra.mxu0 0.0
        %1845 = vmatprep.subr.mxu0 0.0
        %1846 = vmatpush1.msra.mxu0 0.0
        %1847 = vmatprep.subr.mxu0 0.0
        %1848 = vmatpush1.msra.mxu0 0.0
        %1849 = vmatprep.subr.mxu0 0.0
        %1850 = vmatpush1.msra.mxu0 0.0
        %1851 = vmatprep.subr.mxu0 0.0
        %1852 = vmatpush1.msra.mxu0 0.0
        %1853 = vmatprep.subr.mxu0 0.0
        %1854 = vmatpush1.msra.mxu0 0.0
        %1855 = vmatprep.subr.mxu0 0.0
        %1856 = vmatpush1.msra.mxu0 0.0
        %1857 = vmatprep.subr.mxu0 0.0
        %1858 = vmatpush1.msra.mxu0 0.0
        %1859 = vmatprep.subr.mxu0 0.0
        %1860 = vmatpush1.msra.mxu0 0.0
        %1861 = vmatprep.subr.mxu0 0.0
        %1862 = vmatpush1.msra.mxu0 0.0
        %1863 = vmatprep.subr.mxu0 0.0
        %1864 = vmatpush1.msra.mxu0 0.0
        %1865 = vmatprep.subr.mxu0 0.0
        %1866 = vmatpush1.msra.mxu0 0.0
        %1867 = vmatprep.subr.mxu0 0.0
        %1868 = vmatpush1.msra.mxu0 0.0
        %1869 = vmatprep.subr.mxu0 0.0
        %1870 = vmatpush1.msra.mxu0 0.0
        %1871 = vmatprep.subr.mxu0 0.0
        %1872 = vmatpush1.msra.mxu0 0.0
        %1873 = vmatprep.subr.mxu0 0.0
        %1874 = vmatpush1.msra.mxu0 0.0
        %1875 = vmatprep.subr.mxu0 0.0
        %1876 = vmatpush1.msra.mxu0 0.0
        %1877 = vmatprep.subr.mxu0 0.0
        %1878 = vmatpush1.msra.mxu0 0.0
        %1879 = vmatprep.subr.mxu0 0.0
        %1880 = vmatpush1.msra.mxu0 0.0
        %1881 = vmatprep.subr.mxu0 0.0
        %1882 = vmatpush1.msra.mxu0 0.0
        %1883 = vmatprep.subr.mxu0 0.0
        %1884 = vmatpush1.msra.mxu0 0.0
        %1885 = vmatprep.subr.mxu0 0.0
        %1886 = vmatpush1.msra.mxu0 0.0
        %1887 = vmatprep.subr.mxu0 0.0
        %1888 = vmatpush1.msra.mxu0 0.0
        %1889 = vmatprep.subr.mxu0 0.0
        %1890 = vmatpush1.msra.mxu0 0.0
        %1891 = vmatprep.subr.mxu0 0.0
        %1892 = vmatpush1.msra.mxu0 0.0
        %1893 = vmatprep.subr.mxu0 0.0
        %1894 = vmatpush1.msra.mxu0 0.0
        %1895 = vmatprep.subr.mxu0 0.0
        %1896 = vmatpush1.msra.mxu0 0.0
        %1897 = vmatprep.subr.mxu0 0.0
        %1898 = vmatpush1.msra.mxu0 0.0
        %1899 = vmatprep.mubr.f32.mxu0 0.0
        %1900 = vmatmul.mubr.f32.gmra.mrb[0].mxu0 %v1588
        %v1901 = vpop.f32.mrb[0].mxu0
        %v1902 = vadd.f32 0.0, %v1901
        %v1903 = vpop.f32.mrb[0].mxu0
        %1904 = vmatprep.mubr.f32.mxu0 0.0
        %1905 = vmatmul.mubr.f32.gmra.mrb[0].mxu0 %v1591
        %v1906 = vpop.f32.mrb[0].mxu0
        %v1907 = vadd.f32 0.0, %v1906
        %v1908 = vpop.f32.mrb[0].mxu0
        %1909 = vdwg.mxu0
        %v1910 = vadd.f32 %v1826, %v1902
        %v1911 = vadd.f32 %v1831, %v1907
        %v1912 = vmax.f32 %v1910, 0.0
        %v1913 = vmax.f32 %v1911, 0.0
        %v1914 = vld [vmem:[%s27] sm:$0xf]
        %vm1915 = vcmask 31744
        %v1917 = vsel %vm1915, %v1912, 0
        %v1920 = vsel %vm1915, %v1913, 0
        %vm1922 = vcmask 1043456
        %v1924 = vsel %vm1922, %v1914, 0
        %1926 = vmatprep.subr.mxu0 0.0
        %1927 = vmatpush1.msra.mxu0 %v1924
        %1928 = vmatprep.subr.mxu0 0.0
        %1929 = vmatpush1.msra.mxu0 0.0
        %1930 = vmatprep.subr.mxu0 0.0
        %1931 = vmatpush1.msra.mxu0 0.0
        %1932 = vmatprep.subr.mxu0 0.0
        %1933 = vmatpush1.msra.mxu0 0.0
        %1934 = vmatprep.subr.mxu0 0.0
        %1935 = vmatpush1.msra.mxu0 0.0
        %1936 = vmatprep.subr.mxu0 0.0
        %1937 = vmatpush1.msra.mxu0 0.0
        %1938 = vmatprep.subr.mxu0 0.0
        %1939 = vmatpush1.msra.mxu0 0.0
        %1940 = vmatprep.subr.mxu0 0.0
        %1941 = vmatpush1.msra.mxu0 0.0
        %1942 = vmatprep.subr.mxu0 0.0
        %1943 = vmatpush1.msra.mxu0 0.0
        %1944 = vmatprep.subr.mxu0 0.0
        %1945 = vmatpush1.msra.mxu0 0.0
        %1946 = vmatprep.subr.mxu0 0.0
        %1947 = vmatpush1.msra.mxu0 0.0
        %1948 = vmatprep.subr.mxu0 0.0
        %1949 = vmatpush1.msra.mxu0 0.0
        %1950 = vmatprep.subr.mxu0 0.0
        %1951 = vmatpush1.msra.mxu0 0.0
        %1952 = vmatprep.subr.mxu0 0.0
        %1953 = vmatpush1.msra.mxu0 0.0
        %1954 = vmatprep.subr.mxu0 0.0
        %1955 = vmatpush1.msra.mxu0 0.0
        %1956 = vmatprep.subr.mxu0 0.0
        %1957 = vmatpush1.msra.mxu0 0.0
        %1958 = vmatprep.subr.mxu0 0.0
        %1959 = vmatpush1.msra.mxu0 0.0
        %1960 = vmatprep.subr.mxu0 0.0
        %1961 = vmatpush1.msra.mxu0 0.0
        %1962 = vmatprep.subr.mxu0 0.0
        %1963 = vmatpush1.msra.mxu0 0.0
        %1964 = vmatprep.subr.mxu0 0.0
        %1965 = vmatpush1.msra.mxu0 0.0
        %1966 = vmatprep.subr.mxu0 0.0
        %1967 = vmatpush1.msra.mxu0 0.0
        %1968 = vmatprep.subr.mxu0 0.0
        %1969 = vmatpush1.msra.mxu0 0.0
        %1970 = vmatprep.subr.mxu0 0.0
        %1971 = vmatpush1.msra.mxu0 0.0
        %1972 = vmatprep.subr.mxu0 0.0
        %1973 = vmatpush1.msra.mxu0 0.0
        %1974 = vmatprep.subr.mxu0 0.0
        %1975 = vmatpush1.msra.mxu0 0.0
        %1976 = vmatprep.subr.mxu0 0.0
        %1977 = vmatpush1.msra.mxu0 0.0
        %1978 = vmatprep.subr.mxu0 0.0
        %1979 = vmatpush1.msra.mxu0 0.0
        %1980 = vmatprep.subr.mxu0 0.0
        %1981 = vmatpush1.msra.mxu0 0.0
        %1982 = vmatprep.subr.mxu0 0.0
        %1983 = vmatpush1.msra.mxu0 0.0
        %1984 = vmatprep.subr.mxu0 0.0
        %1985 = vmatpush1.msra.mxu0 0.0
        %1986 = vmatprep.subr.mxu0 0.0
        %1987 = vmatpush1.msra.mxu0 0.0
        %1988 = vmatprep.subr.mxu0 0.0
        %1989 = vmatpush1.msra.mxu0 0.0
        %1990 = vmatprep.mubr.f32.mxu0 0.0
        %1991 = vmatmul.mubr.f32.gmra.mrb[0].mxu0 %v1917
        %v1992 = vpop.f32.mrb[0].mxu0
        %v1993 = vadd.f32 0.0, %v1992
        %v1994 = vpop.f32.mrb[0].mxu0
        %1995 = vmatprep.mubr.f32.mxu0 0.0
        %1996 = vmatmul.mubr.f32.gmra.mrb[0].mxu0 %v1920
        %v1997 = vpop.f32.mrb[0].mxu0
        %v1998 = vadd.f32 0.0, %v1997
        %v1999 = vpop.f32.mrb[0].mxu0
        %2000 = vdwg.mxu0
        %v2001 = vadd.f32 %v1668, %v1993
        %v2002 = vadd.f32 %v1669, %v1998
        %v2003 = vmax.f32 %v2001, 0.0
        %v2004 = vmax.f32 %v2002, 0.0
        %v2005 = vsel %vm1915, %v2003, -inf
        %2006 = vmax.xlane.f32.xlu0 %v2005
        %v2007 = vpop.xlane.xlu0 %2006
        %v2008 = vsel %vm1915, %v2004, -inf
        %2009 = vmax.xlane.f32.xlu0 %v2008
        %v2010 = vpop.xlane.xlu0 %2009
        %v2011 = vsub.f32 %v2003, %v2007
        %v2012 = vsub.f32 %v2004, %v2010
        %v2013 = vmul.f32 %v2011, 1.442695
        %v2014 = vpow.pop %v2013
        %v2015 = vmul.f32 %v2012, 1.442695
        %v2016 = vpow.pop %v2015
        %v2017 = vsel %vm1915, %v2014, 0.0
        %2018 = vadd.xlane.f32.xlu0 %v2017
        %v2019 = vpop.xlane.xlu0 %2018
        %v2020 = vsel %vm1915, %v2016, 0.0
        %2021 = vadd.xlane.f32.xlu0 %v2020
        %v2022 = vpop.xlane.xlu0 %2021
        %v2023 = vrcp.pop %v2019
        %v2024 = vmul.f32 %v2014, %v2023
        %v2025 = vrcp.pop %v2022
        %v2026 = vmul.f32 %v2016, %v2025
        %v2027 = vld [vmem:[%s31] sm:$0xff]
        %v2028 = vld [vmem:[%s33] sm:$0x1]
        %v2030 = vlaneseq
        %v2031 = vshrl.u32 %v2030, 7
        %v2032 = vsub.s32 0, %v2031
        %v2033 = vrot.slane %v2028, %v2032
        %2035 = vmatprep.subr.mxu0 0.0
        %2036 = vmatpush1.msra.mxu0 %v2027
        %2037 = vmatprep.subr.mxu0 0.0
        %2038 = vmatpush1.msra.mxu0 0.0
        %2039 = vmatprep.subr.mxu0 0.0
        %2040 = vmatpush1.msra.mxu0 0.0
        %2041 = vmatprep.subr.mxu0 0.0
        %2042 = vmatpush1.msra.mxu0 0.0
        %2043 = vmatprep.subr.mxu0 0.0
        %2044 = vmatpush1.msra.mxu0 0.0
        %2045 = vmatprep.subr.mxu0 0.0
        %2046 = vmatpush1.msra.mxu0 0.0
        %2047 = vmatprep.subr.mxu0 0.0
        %2048 = vmatpush1.msra.mxu0 0.0
        %2049 = vmatprep.subr.mxu0 0.0
        %2050 = vmatpush1.msra.mxu0 0.0
        %2051 = vmatprep.subr.mxu0 0.0
        %2052 = vmatpush1.msra.mxu0 0.0
        %2053 = vmatprep.subr.mxu0 0.0
        %2054 = vmatpush1.msra.mxu0 0.0
        %2055 = vmatprep.subr.mxu0 0.0
        %2056 = vmatpush1.msra.mxu0 0.0
        %2057 = vmatprep.subr.mxu0 0.0
        %2058 = vmatpush1.msra.mxu0 0.0
        %2059 = vmatprep.subr.mxu0 0.0
        %2060 = vmatpush1.msra.mxu0 0.0
        %2061 = vmatprep.subr.mxu0 0.0
        %2062 = vmatpush1.msra.mxu0 0.0
        %2063 = vmatprep.subr.mxu0 0.0
        %2064 = vmatpush1.msra.mxu0 0.0
        %2065 = vmatprep.subr.mxu0 0.0
        %2066 = vmatpush1.msra.mxu0 0.0
        %2067 = vmatprep.subr.mxu0 0.0
        %2068 = vmatpush1.msra.mxu0 0.0
        %2069 = vmatprep.subr.mxu0 0.0
        %2070 = vmatpush1.msra.mxu0 0.0
        %2071 = vmatprep.subr.mxu0 0.0
        %2072 = vmatpush1.msra.mxu0 0.0
        %2073 = vmatprep.subr.mxu0 0.0
        %2074 = vmatpush1.msra.mxu0 0.0
        %2075 = vmatprep.subr.mxu0 0.0
        %2076 = vmatpush1.msra.mxu0 0.0
        %2077 = vmatprep.subr.mxu0 0.0
        %2078 = vmatpush1.msra.mxu0 0.0
        %2079 = vmatprep.subr.mxu0 0.0
        %2080 = vmatpush1.msra.mxu0 0.0
        %2081 = vmatprep.subr.mxu0 0.0
        %2082 = vmatpush1.msra.mxu0 0.0
        %2083 = vmatprep.subr.mxu0 0.0
        %2084 = vmatpush1.msra.mxu0 0.0
        %2085 = vmatprep.subr.mxu0 0.0
        %2086 = vmatpush1.msra.mxu0 0.0
        %2087 = vmatprep.subr.mxu0 0.0
        %2088 = vmatpush1.msra.mxu0 0.0
        %2089 = vmatprep.subr.mxu0 0.0
        %2090 = vmatpush1.msra.mxu0 0.0
        %2091 = vmatprep.subr.mxu0 0.0
        %2092 = vmatpush1.msra.mxu0 0.0
        %2093 = vmatprep.subr.mxu0 0.0
        %2094 = vmatpush1.msra.mxu0 0.0
        %2095 = vmatprep.subr.mxu0 0.0
        %2096 = vmatpush1.msra.mxu0 0.0
        %2097 = vmatprep.subr.mxu0 0.0
        %2098 = vmatpush1.msra.mxu0 0.0
        %2099 = vmatprep.mubr.f32.mxu0 0.0
        %2100 = vmatmul.mubr.f32.gmra.mrb[0].mxu0 %v1087
        %v2101 = vpop.f32.mrb[0].mxu0
        %v2102 = vadd.f32 %v2033, %v2101
        %v2103 = vpop.f32.mrb[0].mxu0
        %2104 = vmatprep.mubr.f32.mxu0 0.0
        %2105 = vmatmul.mubr.f32.gmra.mrb[0].mxu0 %v1090
        %v2106 = vpop.f32.mrb[0].mxu0
        %v2107 = vadd.f32 %v2033, %v2106
        %v2108 = vpop.f32.mrb[0].mxu0
        %2109 = vdwg.mxu0
        %v2110 = vld [vmem:[%s35] sm:$0xff]
        %2111 = vmatprep.subr.mxu0 0.0
        %2112 = vmatpush1.msra.mxu0 %v2110
        %2113 = vmatprep.subr.mxu0 0.0
        %2114 = vmatpush1.msra.mxu0 0.0
        %2115 = vmatprep.subr.mxu0 0.0
        %2116 = vmatpush1.msra.mxu0 0.0
        %2117 = vmatprep.subr.mxu0 0.0
        %2118 = vmatpush1.msra.mxu0 0.0
        %2119 = vmatprep.subr.mxu0 0.0
        %2120 = vmatpush1.msra.mxu0 0.0
        %2121 = vmatprep.subr.mxu0 0.0
        %2122 = vmatpush1.msra.mxu0 0.0
        %2123 = vmatprep.subr.mxu0 0.0
        %2124 = vmatpush1.msra.mxu0 0.0
        %2125 = vmatprep.subr.mxu0 0.0
        %2126 = vmatpush1.msra.mxu0 0.0
        %2127 = vmatprep.subr.mxu0 0.0
        %2128 = vmatpush1.msra.mxu0 0.0
        %2129 = vmatprep.subr.mxu0 0.0
        %2130 = vmatpush1.msra.mxu0 0.0
        %2131 = vmatprep.subr.mxu0 0.0
        %2132 = vmatpush1.msra.mxu0 0.0
        %2133 = vmatprep.subr.mxu0 0.0
        %2134 = vmatpush1.msra.mxu0 0.0
        %2135 = vmatprep.subr.mxu0 0.0
        %2136 = vmatpush1.msra.mxu0 0.0
        %2137 = vmatprep.subr.mxu0 0.0
        %2138 = vmatpush1.msra.mxu0 0.0
        %2139 = vmatprep.subr.mxu0 0.0
        %2140 = vmatpush1.msra.mxu0 0.0
        %2141 = vmatprep.subr.mxu0 0.0
        %2142 = vmatpush1.msra.mxu0 0.0
        %2143 = vmatprep.subr.mxu0 0.0
        %2144 = vmatpush1.msra.mxu0 0.0
        %2145 = vmatprep.subr.mxu0 0.0
        %2146 = vmatpush1.msra.mxu0 0.0
        %2147 = vmatprep.subr.mxu0 0.0
        %2148 = vmatpush1.msra.mxu0 0.0
        %2149 = vmatprep.subr.mxu0 0.0
        %2150 = vmatpush1.msra.mxu0 0.0
        %2151 = vmatprep.subr.mxu0 0.0
        %2152 = vmatpush1.msra.mxu0 0.0
        %2153 = vmatprep.subr.mxu0 0.0
        %2154 = vmatpush1.msra.mxu0 0.0
        %2155 = vmatprep.subr.mxu0 0.0
        %2156 = vmatpush1.msra.mxu0 0.0
        %2157 = vmatprep.subr.mxu0 0.0
        %2158 = vmatpush1.msra.mxu0 0.0
        %2159 = vmatprep.subr.mxu0 0.0
        %2160 = vmatpush1.msra.mxu0 0.0
        %2161 = vmatprep.subr.mxu0 0.0
        %2162 = vmatpush1.msra.mxu0 0.0
        %2163 = vmatprep.subr.mxu0 0.0
        %2164 = vmatpush1.msra.mxu0 0.0
        %2165 = vmatprep.subr.mxu0 0.0
        %2166 = vmatpush1.msra.mxu0 0.0
        %2167 = vmatprep.subr.mxu0 0.0
        %2168 = vmatpush1.msra.mxu0 0.0
        %2169 = vmatprep.subr.mxu0 0.0
        %2170 = vmatpush1.msra.mxu0 0.0
        %2171 = vmatprep.subr.mxu0 0.0
        %2172 = vmatpush1.msra.mxu0 0.0
        %2173 = vmatprep.subr.mxu0 0.0
        %2174 = vmatpush1.msra.mxu0 0.0
        %2175 = vmatprep.mubr.f32.mxu0 0.0
        %2176 = vmatmul.mubr.f32.gmra.mrb[0].mxu0 %v1169
        %v2177 = vpop.f32.mrb[0].mxu0
        %v2178 = vadd.f32 0.0, %v2177
        %v2179 = vpop.f32.mrb[0].mxu0
        %2180 = vmatprep.mubr.f32.mxu0 0.0
        %2181 = vmatmul.mubr.f32.gmra.mrb[0].mxu0 %v1172
        %v2182 = vpop.f32.mrb[0].mxu0
        %v2183 = vadd.f32 0.0, %v2182
        %v2184 = vpop.f32.mrb[0].mxu0
        %2185 = vdwg.mxu0
        %v2186 = vadd.f32 %v2102, %v2178
        %v2187 = vadd.f32 %v2107, %v2183
        %v2188 = vmax.f32 %v2186, 0.0
        %v2189 = vmax.f32 %v2187, 0.0
        %2190 = vmatprep.subr.mxu0 0.0
        %2191 = vmatpush1.msra.mxu0 %v2188
        %2192 = vmatprep.subr.mxu0 0.0
        %2193 = vmatpush1.msra.mxu0 %v2189
        %2194 = vmatprep.subr.mxu0 0.0
        %2195 = vmatpush1.msra.mxu0 0.0
        %2196 = vmatprep.subr.mxu0 0.0
        %2197 = vmatpush1.msra.mxu0 0.0
        %2198 = vmatprep.subr.mxu0 0.0
        %2199 = vmatpush1.msra.mxu0 0.0
        %2200 = vmatprep.subr.mxu0 0.0
        %2201 = vmatpush1.msra.mxu0 0.0
        %2202 = vmatprep.subr.mxu0 0.0
        %2203 = vmatpush1.msra.mxu0 0.0
        %2204 = vmatprep.subr.mxu0 0.0
        %2205 = vmatpush1.msra.mxu0 0.0
        %2206 = vmatprep.subr.mxu0 0.0
        %2207 = vmatpush1.msra.mxu0 0.0
        %2208 = vmatprep.subr.mxu0 0.0
        %2209 = vmatpush1.msra.mxu0 0.0
        %2210 = vmatprep.subr.mxu0 0.0
        %2211 = vmatpush1.msra.mxu0 0.0
        %2212 = vmatprep.subr.mxu0 0.0
        %2213 = vmatpush1.msra.mxu0 0.0
        %2214 = vmatprep.subr.mxu0 0.0
        %2215 = vmatpush1.msra.mxu0 0.0
        %2216 = vmatprep.subr.mxu0 0.0
        %2217 = vmatpush1.msra.mxu0 0.0
        %2218 = vmatprep.subr.mxu0 0.0
        %2219 = vmatpush1.msra.mxu0 0.0
        %2220 = vmatprep.subr.mxu0 0.0
        %2221 = vmatpush1.msra.mxu0 0.0
        %2222 = vmatprep.subr.mxu0 0.0
        %2223 = vmatpush1.msra.mxu0 0.0
        %2224 = vmatprep.subr.mxu0 0.0
        %2225 = vmatpush1.msra.mxu0 0.0
        %2226 = vmatprep.subr.mxu0 0.0
        %2227 = vmatpush1.msra.mxu0 0.0
        %2228 = vmatprep.subr.mxu0 0.0
        %2229 = vmatpush1.msra.mxu0 0.0
        %2230 = vmatprep.subr.mxu0 0.0
        %2231 = vmatpush1.msra.mxu0 0.0
        %2232 = vmatprep.subr.mxu0 0.0
        %2233 = vmatpush1.msra.mxu0 0.0
        %2234 = vmatprep.subr.mxu0 0.0
        %2235 = vmatpush1.msra.mxu0 0.0
        %2236 = vmatprep.subr.mxu0 0.0
        %2237 = vmatpush1.msra.mxu0 0.0
        %2238 = vmatprep.subr.mxu0 0.0
        %2239 = vmatpush1.msra.mxu0 0.0
        %2240 = vmatprep.subr.mxu0 0.0
        %2241 = vmatpush1.msra.mxu0 0.0
        %2242 = vmatprep.subr.mxu0 0.0
        %2243 = vmatpush1.msra.mxu0 0.0
        %2244 = vmatprep.subr.mxu0 0.0
        %2245 = vmatpush1.msra.mxu0 0.0
        %2246 = vmatprep.subr.mxu0 0.0
        %2247 = vmatpush1.msra.mxu0 0.0
        %2248 = vmatprep.subr.mxu0 0.0
        %2249 = vmatpush1.msra.mxu0 0.0
        %2250 = vmatprep.subr.mxu0 0.0
        %2251 = vmatpush1.msra.mxu0 0.0
        %2252 = vmatprep.subr.mxu0 0.0
        %2253 = vmatpush1.msra.mxu0 0.0
        %2254 = vmatprep.mubr.f32.mxu0 0.0
        %2255 = vmatmul.mubr.f32.gmra.mrb[0].mxu0 %v997
        %v2256 = vpop.f32.mrb[0].mxu0
        %v2257 = vadd.f32 0.0, %v2256
        %v2258 = vpop.f32.mrb[0].mxu0
        %2259 = vmatprep.mubr.f32.mxu0 0.0
        %2260 = vmatmul.mubr.f32.gmra.mrb[0].mxu0 %v1000
        %v2261 = vpop.f32.mrb[0].mxu0
        %v2262 = vadd.f32 0.0, %v2261
        %v2263 = vpop.f32.mrb[0].mxu0
        %2264 = vdwg.mxu0
        %v2265 = vld [vmem:[%s37] sm:$0xff]
        %v2266 = vld [vmem:[%s39] sm:$0x1]
        %v2268 = vlaneseq
        %v2269 = vshrl.u32 %v2268, 7
        %v2270 = vsub.s32 0, %v2269
        %v2271 = vrot.slane %v2266, %v2270
        %v2274 = vsel %vm1085, %v2257, 0
        %v2277 = vsel %vm1085, %v2262, 0
        %2279 = vmatprep.subr.mxu0 0.0
        %2280 = vmatpush1.msra.mxu0 %v2265
        %2281 = vmatprep.subr.mxu0 0.0
        %2282 = vmatpush1.msra.mxu0 0.0
        %2283 = vmatprep.subr.mxu0 0.0
        %2284 = vmatpush1.msra.mxu0 0.0
        %2285 = vmatprep.subr.mxu0 0.0
        %2286 = vmatpush1.msra.mxu0 0.0
        %2287 = vmatprep.subr.mxu0 0.0
        %2288 = vmatpush1.msra.mxu0 0.0
        %2289 = vmatprep.subr.mxu0 0.0
        %2290 = vmatpush1.msra.mxu0 0.0
        %2291 = vmatprep.subr.mxu0 0.0
        %2292 = vmatpush1.msra.mxu0 0.0
        %2293 = vmatprep.subr.mxu0 0.0
        %2294 = vmatpush1.msra.mxu0 0.0
        %2295 = vmatprep.subr.mxu0 0.0
        %2296 = vmatpush1.msra.mxu0 0.0
        %2297 = vmatprep.subr.mxu0 0.0
        %2298 = vmatpush1.msra.mxu0 0.0
        %2299 = vmatprep.subr.mxu0 0.0
        %2300 = vmatpush1.msra.mxu0 0.0
        %2301 = vmatprep.subr.mxu0 0.0
        %2302 = vmatpush1.msra.mxu0 0.0
        %2303 = vmatprep.subr.mxu0 0.0
        %2304 = vmatpush1.msra.mxu0 0.0
        %2305 = vmatprep.subr.mxu0 0.0
        %2306 = vmatpush1.msra.mxu0 0.0
        %2307 = vmatprep.subr.mxu0 0.0
        %2308 = vmatpush1.msra.mxu0 0.0
        %2309 = vmatprep.subr.mxu0 0.0
        %2310 = vmatpush1.msra.mxu0 0.0
        %2311 = vmatprep.subr.mxu0 0.0
        %2312 = vmatpush1.msra.mxu0 0.0
        %2313 = vmatprep.subr.mxu0 0.0
        %2314 = vmatpush1.msra.mxu0 0.0
        %2315 = vmatprep.subr.mxu0 0.0
        %2316 = vmatpush1.msra.mxu0 0.0
        %2317 = vmatprep.subr.mxu0 0.0
        %2318 = vmatpush1.msra.mxu0 0.0
        %2319 = vmatprep.subr.mxu0 0.0
        %2320 = vmatpush1.msra.mxu0 0.0
        %2321 = vmatprep.subr.mxu0 0.0
        %2322 = vmatpush1.msra.mxu0 0.0
        %2323 = vmatprep.subr.mxu0 0.0
        %2324 = vmatpush1.msra.mxu0 0.0
        %2325 = vmatprep.subr.mxu0 0.0
        %2326 = vmatpush1.msra.mxu0 0.0
        %2327 = vmatprep.subr.mxu0 0.0
        %2328 = vmatpush1.msra.mxu0 0.0
        %2329 = vmatprep.subr.mxu0 0.0
        %2330 = vmatpush1.msra.mxu0 0.0
        %2331 = vmatprep.subr.mxu0 0.0
        %2332 = vmatpush1.msra.mxu0 0.0
        %2333 = vmatprep.subr.mxu0 0.0
        %2334 = vmatpush1.msra.mxu0 0.0
        %2335 = vmatprep.subr.mxu0 0.0
        %2336 = vmatpush1.msra.mxu0 0.0
        %2337 = vmatprep.subr.mxu0 0.0
        %2338 = vmatpush1.msra.mxu0 0.0
        %2339 = vmatprep.subr.mxu0 0.0
        %2340 = vmatpush1.msra.mxu0 0.0
        %2341 = vmatprep.subr.mxu0 0.0
        %2342 = vmatpush1.msra.mxu0 0.0
        %2343 = vmatprep.mubr.f32.mxu0 0.0
        %2344 = vmatmul.mubr.f32.gmra.mrb[0].mxu0 %v2274
        %v2345 = vpop.f32.mrb[0].mxu0
        %v2346 = vadd.f32 %v2271, %v2345
        %v2347 = vpop.f32.mrb[0].mxu0
        %2348 = vmatprep.mubr.f32.mxu0 0.0
        %2349 = vmatmul.mubr.f32.gmra.mrb[0].mxu0 %v2277
        %v2350 = vpop.f32.mrb[0].mxu0
        %v2351 = vadd.f32 %v2271, %v2350
        %v2352 = vpop.f32.mrb[0].mxu0
        %2353 = vdwg.mxu0
        %v2354 = vld [vmem:[%s41] sm:$0xff]
        %v2356 = vsel %vm1085, %v2188, 0
        %v2359 = vsel %vm1085, %v2189, 0
        %2361 = vmatprep.subr.mxu0 0.0
        %2362 = vmatpush1.msra.mxu0 %v2354
        %2363 = vmatprep.subr.mxu0 0.0
        %2364 = vmatpush1.msra.mxu0 0.0
        %2365 = vmatprep.subr.mxu0 0.0
        %2366 = vmatpush1.msra.mxu0 0.0
        %2367 = vmatprep.subr.mxu0 0.0
        %2368 = vmatpush1.msra.mxu0 0.0
        %2369 = vmatprep.subr.mxu0 0.0
        %2370 = vmatpush1.msra.mxu0 0.0
        %2371 = vmatprep.subr.mxu0 0.0
        %2372 = vmatpush1.msra.mxu0 0.0
        %2373 = vmatprep.subr.mxu0 0.0
        %2374 = vmatpush1.msra.mxu0 0.0
        %2375 = vmatprep.subr.mxu0 0.0
        %2376 = vmatpush1.msra.mxu0 0.0
        %2377 = vmatprep.subr.mxu0 0.0
        %2378 = vmatpush1.msra.mxu0 0.0
        %2379 = vmatprep.subr.mxu0 0.0
        %2380 = vmatpush1.msra.mxu0 0.0
        %2381 = vmatprep.subr.mxu0 0.0
        %2382 = vmatpush1.msra.mxu0 0.0
        %2383 = vmatprep.subr.mxu0 0.0
        %2384 = vmatpush1.msra.mxu0 0.0
        %2385 = vmatprep.subr.mxu0 0.0
        %2386 = vmatpush1.msra.mxu0 0.0
        %2387 = vmatprep.subr.mxu0 0.0
        %2388 = vmatpush1.msra.mxu0 0.0
        %2389 = vmatprep.subr.mxu0 0.0
        %2390 = vmatpush1.msra.mxu0 0.0
        %2391 = vmatprep.subr.mxu0 0.0
        %2392 = vmatpush1.msra.mxu0 0.0
        %2393 = vmatprep.subr.mxu0 0.0
        %2394 = vmatpush1.msra.mxu0 0.0
        %2395 = vmatprep.subr.mxu0 0.0
        %2396 = vmatpush1.msra.mxu0 0.0
        %2397 = vmatprep.subr.mxu0 0.0
        %2398 = vmatpush1.msra.mxu0 0.0
        %2399 = vmatprep.subr.mxu0 0.0
        %2400 = vmatpush1.msra.mxu0 0.0
        %2401 = vmatprep.subr.mxu0 0.0
        %2402 = vmatpush1.msra.mxu0 0.0
        %2403 = vmatprep.subr.mxu0 0.0
        %2404 = vmatpush1.msra.mxu0 0.0
        %2405 = vmatprep.subr.mxu0 0.0
        %2406 = vmatpush1.msra.mxu0 0.0
        %2407 = vmatprep.subr.mxu0 0.0
        %2408 = vmatpush1.msra.mxu0 0.0
        %2409 = vmatprep.subr.mxu0 0.0
        %2410 = vmatpush1.msra.mxu0 0.0
        %2411 = vmatprep.subr.mxu0 0.0
        %2412 = vmatpush1.msra.mxu0 0.0
        %2413 = vmatprep.subr.mxu0 0.0
        %2414 = vmatpush1.msra.mxu0 0.0
        %2415 = vmatprep.subr.mxu0 0.0
        %2416 = vmatpush1.msra.mxu0 0.0
        %2417 = vmatprep.subr.mxu0 0.0
        %2418 = vmatpush1.msra.mxu0 0.0
        %2419 = vmatprep.subr.mxu0 0.0
        %2420 = vmatpush1.msra.mxu0 0.0
        %2421 = vmatprep.subr.mxu0 0.0
        %2422 = vmatpush1.msra.mxu0 0.0
        %2423 = vmatprep.subr.mxu0 0.0
        %2424 = vmatpush1.msra.mxu0 0.0
        %2425 = vmatprep.mubr.f32.mxu0 0.0
        %2426 = vmatmul.mubr.f32.gmra.mrb[0].mxu0 %v2356
        %v2427 = vpop.f32.mrb[0].mxu0
        %v2428 = vadd.f32 0.0, %v2427
        %v2429 = vpop.f32.mrb[0].mxu0
        %2430 = vmatprep.mubr.f32.mxu0 0.0
        %2431 = vmatmul.mubr.f32.gmra.mrb[0].mxu0 %v2359
        %v2432 = vpop.f32.mrb[0].mxu0
        %v2433 = vadd.f32 0.0, %v2432
        %v2434 = vpop.f32.mrb[0].mxu0
        %2435 = vdwg.mxu0
        %v2436 = vadd.f32 %v2346, %v2428
        %v2437 = vadd.f32 %v2351, %v2433
        %v2438 = vmax.f32 %v2436, 0.0
        %v2439 = vmax.f32 %v2437, 0.0
        %2440 = vmatprep.subr.mxu0 0.0
        %2441 = vmatpush1.msra.mxu0 %v2438
        %2442 = vmatprep.subr.mxu0 0.0
        %2443 = vmatpush1.msra.mxu0 %v2439
        %2444 = vmatprep.subr.mxu0 0.0
        %2445 = vmatpush1.msra.mxu0 0.0
        %2446 = vmatprep.subr.mxu0 0.0
        %2447 = vmatpush1.msra.mxu0 0.0
        %2448 = vmatprep.subr.mxu0 0.0
        %2449 = vmatpush1.msra.mxu0 0.0
        %2450 = vmatprep.subr.mxu0 0.0
        %2451 = vmatpush1.msra.mxu0 0.0
        %2452 = vmatprep.subr.mxu0 0.0
        %2453 = vmatpush1.msra.mxu0 0.0
        %2454 = vmatprep.subr.mxu0 0.0
        %2455 = vmatpush1.msra.mxu0 0.0
        %2456 = vmatprep.subr.mxu0 0.0
        %2457 = vmatpush1.msra.mxu0 0.0
        %2458 = vmatprep.subr.mxu0 0.0
        %2459 = vmatpush1.msra.mxu0 0.0
        %2460 = vmatprep.subr.mxu0 0.0
        %2461 = vmatpush1.msra.mxu0 0.0
        %2462 = vmatprep.subr.mxu0 0.0
        %2463 = vmatpush1.msra.mxu0 0.0
        %2464 = vmatprep.subr.mxu0 0.0
        %2465 = vmatpush1.msra.mxu0 0.0
        %2466 = vmatprep.subr.mxu0 0.0
        %2467 = vmatpush1.msra.mxu0 0.0
        %2468 = vmatprep.subr.mxu0 0.0
        %2469 = vmatpush1.msra.mxu0 0.0
        %2470 = vmatprep.subr.mxu0 0.0
        %2471 = vmatpush1.msra.mxu0 0.0
        %2472 = vmatprep.subr.mxu0 0.0
        %2473 = vmatpush1.msra.mxu0 0.0
        %2474 = vmatprep.subr.mxu0 0.0
        %2475 = vmatpush1.msra.mxu0 0.0
        %2476 = vmatprep.subr.mxu0 0.0
        %2477 = vmatpush1.msra.mxu0 0.0
        %2478 = vmatprep.subr.mxu0 0.0
        %2479 = vmatpush1.msra.mxu0 0.0
        %2480 = vmatprep.subr.mxu0 0.0
        %2481 = vmatpush1.msra.mxu0 0.0
        %2482 = vmatprep.subr.mxu0 0.0
        %2483 = vmatpush1.msra.mxu0 0.0
        %2484 = vmatprep.subr.mxu0 0.0
        %2485 = vmatpush1.msra.mxu0 0.0
        %2486 = vmatprep.subr.mxu0 0.0
        %2487 = vmatpush1.msra.mxu0 0.0
        %2488 = vmatprep.subr.mxu0 0.0
        %2489 = vmatpush1.msra.mxu0 0.0
        %2490 = vmatprep.subr.mxu0 0.0
        %2491 = vmatpush1.msra.mxu0 0.0
        %2492 = vmatprep.subr.mxu0 0.0
        %2493 = vmatpush1.msra.mxu0 0.0
        %2494 = vmatprep.subr.mxu0 0.0
        %2495 = vmatpush1.msra.mxu0 0.0
        %2496 = vmatprep.subr.mxu0 0.0
        %2497 = vmatpush1.msra.mxu0 0.0
        %2498 = vmatprep.subr.mxu0 0.0
        %2499 = vmatpush1.msra.mxu0 0.0
        %2500 = vmatprep.subr.mxu0 0.0
        %2501 = vmatpush1.msra.mxu0 0.0
        %2502 = vmatprep.subr.mxu0 0.0
        %2503 = vmatpush1.msra.mxu0 0.0
        %2504 = vmatprep.mubr.f32.mxu0 0.0
        %2505 = vmatmul.mubr.f32.gmra.mrb[0].mxu0 %v997
        %v2506 = vpop.f32.mrb[0].mxu0
        %v2507 = vadd.f32 0.0, %v2506
        %v2508 = vpop.f32.mrb[0].mxu0
        %2509 = vmatprep.mubr.f32.mxu0 0.0
        %2510 = vmatmul.mubr.f32.gmra.mrb[0].mxu0 %v1000
        %v2511 = vpop.f32.mrb[0].mxu0
        %v2512 = vadd.f32 0.0, %v2511
        %v2513 = vpop.f32.mrb[0].mxu0
        %2514 = vdwg.mxu0
        %v2515 = vld [vmem:[%s43] sm:$0xff]
        %v2516 = vld [vmem:[%s45] sm:$0x1]
        %v2518 = vlaneseq
        %v2519 = vshrl.u32 %v2518, 7
        %v2520 = vsub.s32 0, %v2519
        %v2521 = vrot.slane %v2516, %v2520
        %v2524 = vsel %vm1085, %v2507, 0
        %v2527 = vsel %vm1085, %v2512, 0
        %2529 = vmatprep.subr.mxu0 0.0
        %2530 = vmatpush1.msra.mxu0 %v2515
        %2531 = vmatprep.subr.mxu0 0.0
        %2532 = vmatpush1.msra.mxu0 0.0
        %2533 = vmatprep.subr.mxu0 0.0
        %2534 = vmatpush1.msra.mxu0 0.0
        %2535 = vmatprep.subr.mxu0 0.0
        %2536 = vmatpush1.msra.mxu0 0.0
        %2537 = vmatprep.subr.mxu0 0.0
        %2538 = vmatpush1.msra.mxu0 0.0
        %2539 = vmatprep.subr.mxu0 0.0
        %2540 = vmatpush1.msra.mxu0 0.0
        %2541 = vmatprep.subr.mxu0 0.0
        %2542 = vmatpush1.msra.mxu0 0.0
        %2543 = vmatprep.subr.mxu0 0.0
        %2544 = vmatpush1.msra.mxu0 0.0
        %2545 = vmatprep.subr.mxu0 0.0
        %2546 = vmatpush1.msra.mxu0 0.0
        %2547 = vmatprep.subr.mxu0 0.0
        %2548 = vmatpush1.msra.mxu0 0.0
        %2549 = vmatprep.subr.mxu0 0.0
        %2550 = vmatpush1.msra.mxu0 0.0
        %2551 = vmatprep.subr.mxu0 0.0
        %2552 = vmatpush1.msra.mxu0 0.0
        %2553 = vmatprep.subr.mxu0 0.0
        %2554 = vmatpush1.msra.mxu0 0.0
        %2555 = vmatprep.subr.mxu0 0.0
        %2556 = vmatpush1.msra.mxu0 0.0
        %2557 = vmatprep.subr.mxu0 0.0
        %2558 = vmatpush1.msra.mxu0 0.0
        %2559 = vmatprep.subr.mxu0 0.0
        %2560 = vmatpush1.msra.mxu0 0.0
        %2561 = vmatprep.subr.mxu0 0.0
        %2562 = vmatpush1.msra.mxu0 0.0
        %2563 = vmatprep.subr.mxu0 0.0
        %2564 = vmatpush1.msra.mxu0 0.0
        %2565 = vmatprep.subr.mxu0 0.0
        %2566 = vmatpush1.msra.mxu0 0.0
        %2567 = vmatprep.subr.mxu0 0.0
        %2568 = vmatpush1.msra.mxu0 0.0
        %2569 = vmatprep.subr.mxu0 0.0
        %2570 = vmatpush1.msra.mxu0 0.0
        %2571 = vmatprep.subr.mxu0 0.0
        %2572 = vmatpush1.msra.mxu0 0.0
        %2573 = vmatprep.subr.mxu0 0.0
        %2574 = vmatpush1.msra.mxu0 0.0
        %2575 = vmatprep.subr.mxu0 0.0
        %2576 = vmatpush1.msra.mxu0 0.0
        %2577 = vmatprep.subr.mxu0 0.0
        %2578 = vmatpush1.msra.mxu0 0.0
        %2579 = vmatprep.subr.mxu0 0.0
        %2580 = vmatpush1.msra.mxu0 0.0
        %2581 = vmatprep.subr.mxu0 0.0
        %2582 = vmatpush1.msra.mxu0 0.0
        %2583 = vmatprep.subr.mxu0 0.0
        %2584 = vmatpush1.msra.mxu0 0.0
        %2585 = vmatprep.subr.mxu0 0.0
        %2586 = vmatpush1.msra.mxu0 0.0
        %2587 = vmatprep.subr.mxu0 0.0
        %2588 = vmatpush1.msra.mxu0 0.0
        %2589 = vmatprep.subr.mxu0 0.0
        %2590 = vmatpush1.msra.mxu0 0.0
        %2591 = vmatprep.subr.mxu0 0.0
        %2592 = vmatpush1.msra.mxu0 0.0
        %2593 = vmatprep.mubr.f32.mxu0 0.0
        %2594 = vmatmul.mubr.f32.gmra.mrb[0].mxu0 %v2524
        %v2595 = vpop.f32.mrb[0].mxu0
        %v2596 = vadd.f32 %v2521, %v2595
        %v2597 = vpop.f32.mrb[0].mxu0
        %2598 = vmatprep.mubr.f32.mxu0 0.0
        %2599 = vmatmul.mubr.f32.gmra.mrb[0].mxu0 %v2527
        %v2600 = vpop.f32.mrb[0].mxu0
        %v2601 = vadd.f32 %v2521, %v2600
        %v2602 = vpop.f32.mrb[0].mxu0
        %2603 = vdwg.mxu0
        %v2604 = vld [vmem:[%s47] sm:$0xff]
        %v2606 = vsel %vm1085, %v2438, 0
        %v2609 = vsel %vm1085, %v2439, 0
        %2611 = vmatprep.subr.mxu0 0.0
        %2612 = vmatpush1.msra.mxu0 %v2604
        %2613 = vmatprep.subr.mxu0 0.0
        %2614 = vmatpush1.msra.mxu0 0.0
        %2615 = vmatprep.subr.mxu0 0.0
        %2616 = vmatpush1.msra.mxu0 0.0
        %2617 = vmatprep.subr.mxu0 0.0
        %2618 = vmatpush1.msra.mxu0 0.0
        %2619 = vmatprep.subr.mxu0 0.0
        %2620 = vmatpush1.msra.mxu0 0.0
        %2621 = vmatprep.subr.mxu0 0.0
        %2622 = vmatpush1.msra.mxu0 0.0
        %2623 = vmatprep.subr.mxu0 0.0
        %2624 = vmatpush1.msra.mxu0 0.0
        %2625 = vmatprep.subr.mxu0 0.0
        %2626 = vmatpush1.msra.mxu0 0.0
        %2627 = vmatprep.subr.mxu0 0.0
        %2628 = vmatpush1.msra.mxu0 0.0
        %2629 = vmatprep.subr.mxu0 0.0
        %2630 = vmatpush1.msra.mxu0 0.0
        %2631 = vmatprep.subr.mxu0 0.0
        %2632 = vmatpush1.msra.mxu0 0.0
        %2633 = vmatprep.subr.mxu0 0.0
        %2634 = vmatpush1.msra.mxu0 0.0
        %2635 = vmatprep.subr.mxu0 0.0
        %2636 = vmatpush1.msra.mxu0 0.0
        %2637 = vmatprep.subr.mxu0 0.0
        %2638 = vmatpush1.msra.mxu0 0.0
        %2639 = vmatprep.subr.mxu0 0.0
        %2640 = vmatpush1.msra.mxu0 0.0
        %2641 = vmatprep.subr.mxu0 0.0
        %2642 = vmatpush1.msra.mxu0 0.0
        %2643 = vmatprep.subr.mxu0 0.0
        %2644 = vmatpush1.msra.mxu0 0.0
        %2645 = vmatprep.subr.mxu0 0.0
        %2646 = vmatpush1.msra.mxu0 0.0
        %2647 = vmatprep.subr.mxu0 0.0
        %2648 = vmatpush1.msra.mxu0 0.0
        %2649 = vmatprep.subr.mxu0 0.0
        %2650 = vmatpush1.msra.mxu0 0.0
        %2651 = vmatprep.subr.mxu0 0.0
        %2652 = vmatpush1.msra.mxu0 0.0
        %2653 = vmatprep.subr.mxu0 0.0
        %2654 = vmatpush1.msra.mxu0 0.0
        %2655 = vmatprep.subr.mxu0 0.0
        %2656 = vmatpush1.msra.mxu0 0.0
        %2657 = vmatprep.subr.mxu0 0.0
        %2658 = vmatpush1.msra.mxu0 0.0
        %2659 = vmatprep.subr.mxu0 0.0
        %2660 = vmatpush1.msra.mxu0 0.0
        %2661 = vmatprep.subr.mxu0 0.0
        %2662 = vmatpush1.msra.mxu0 0.0
        %2663 = vmatprep.subr.mxu0 0.0
        %2664 = vmatpush1.msra.mxu0 0.0
        %2665 = vmatprep.subr.mxu0 0.0
        %2666 = vmatpush1.msra.mxu0 0.0
        %2667 = vmatprep.subr.mxu0 0.0
        %2668 = vmatpush1.msra.mxu0 0.0
        %2669 = vmatprep.subr.mxu0 0.0
        %2670 = vmatpush1.msra.mxu0 0.0
        %2671 = vmatprep.subr.mxu0 0.0
        %2672 = vmatpush1.msra.mxu0 0.0
        %2673 = vmatprep.subr.mxu0 0.0
        %2674 = vmatpush1.msra.mxu0 0.0
        %2675 = vmatprep.mubr.f32.mxu0 0.0
        %2676 = vmatmul.mubr.f32.gmra.mrb[0].mxu0 %v2606
        %v2677 = vpop.f32.mrb[0].mxu0
        %v2678 = vadd.f32 0.0, %v2677
        %v2679 = vpop.f32.mrb[0].mxu0
        %2680 = vmatprep.mubr.f32.mxu0 0.0
        %2681 = vmatmul.mubr.f32.gmra.mrb[0].mxu0 %v2609
        %v2682 = vpop.f32.mrb[0].mxu0
        %v2683 = vadd.f32 0.0, %v2682
        %v2684 = vpop.f32.mrb[0].mxu0
        %2685 = vdwg.mxu0
        %v2686 = vadd.f32 %v2596, %v2678
        %v2687 = vadd.f32 %v2601, %v2683
        %v2688 = vmax.f32 %v2686, 0.0
        %v2689 = vmax.f32 %v2687, 0.0
        %2690 = vxpose.xlu0.b32.start [1/16] %v2024, 128
        %2691 = vxpose.xlu0.b32.cont [2/16] %v2026, 128
        %2692 = vxpose.xlu0.b32.cont [3/16] 0.0, 128
        %2693 = vxpose.xlu0.b32.cont [4/16] 0.0, 128
        %2694 = vxpose.xlu0.b32.cont [5/16] 0.0, 128
        %2695 = vxpose.xlu0.b32.cont [6/16] 0.0, 128
        %2696 = vxpose.xlu0.b32.cont [7/16] 0.0, 128
        %2697 = vxpose.xlu0.b32.cont [8/16] 0.0, 128
        %2698 = vxpose.xlu0.b32.cont [9/16] 0.0, 128
        %2699 = vxpose.xlu0.b32.cont [10/16] 0.0, 128
        %2700 = vxpose.xlu0.b32.cont [11/16] 0.0, 128
        %2701 = vxpose.xlu0.b32.cont [12/16] 0.0, 128
        %2702 = vxpose.xlu0.b32.cont [13/16] 0.0, 128
        %2703 = vxpose.xlu0.b32.cont [14/16] 0.0, 128
        %2704 = vxpose.xlu0.b32.cont [15/16] 0.0, 128
        %2705 = vxpose.xlu0.b32.end [16/16] 0.0, 128
        %v2706 = vpop.trf.xlu0
        %v2707 = vpop.trf.xlu0
        %v2708 = vpop.trf.xlu0
        %v2709 = vpop.trf.xlu0
        %v2710 = vpop.trf.xlu0
        %v2711 = vpop.trf.xlu0
        %v2712 = vpop.trf.xlu0
        %v2713 = vpop.trf.xlu0
        %v2714 = vpop.trf.xlu0
        %v2715 = vpop.trf.xlu0
        %v2716 = vpop.trf.xlu0
        %v2717 = vpop.trf.xlu0
        %v2718 = vpop.trf.xlu0
        %v2719 = vpop.trf.xlu0
        %v2720 = vpop.trf.xlu0
        %v2721 = vpop.trf.xlu0
        %v2723 = vsel %vm995, %v2706, 0
        %2725 = vmatprep.subr.mxu0 0.0
        %2726 = vmatpush1.msra.mxu0 %v2188
        %2727 = vmatprep.subr.mxu0 0.0
        %2728 = vmatpush1.msra.mxu0 %v2189
        %2729 = vmatprep.subr.mxu0 0.0
        %2730 = vmatpush1.msra.mxu0 0.0
        %2731 = vmatprep.subr.mxu0 0.0
        %2732 = vmatpush1.msra.mxu0 0.0
        %2733 = vmatprep.subr.mxu0 0.0
        %2734 = vmatpush1.msra.mxu0 0.0
        %2735 = vmatprep.subr.mxu0 0.0
        %2736 = vmatpush1.msra.mxu0 0.0
        %2737 = vmatprep.subr.mxu0 0.0
        %2738 = vmatpush1.msra.mxu0 0.0
        %2739 = vmatprep.subr.mxu0 0.0
        %2740 = vmatpush1.msra.mxu0 0.0
        %2741 = vmatprep.subr.mxu0 0.0
        %2742 = vmatpush1.msra.mxu0 0.0
        %2743 = vmatprep.subr.mxu0 0.0
        %2744 = vmatpush1.msra.mxu0 0.0
        %2745 = vmatprep.subr.mxu0 0.0
        %2746 = vmatpush1.msra.mxu0 0.0
        %2747 = vmatprep.subr.mxu0 0.0
        %2748 = vmatpush1.msra.mxu0 0.0
        %2749 = vmatprep.subr.mxu0 0.0
        %2750 = vmatpush1.msra.mxu0 0.0
        %2751 = vmatprep.subr.mxu0 0.0
        %2752 = vmatpush1.msra.mxu0 0.0
        %2753 = vmatprep.subr.mxu0 0.0
        %2754 = vmatpush1.msra.mxu0 0.0
        %2755 = vmatprep.subr.mxu0 0.0
        %2756 = vmatpush1.msra.mxu0 0.0
        %2757 = vmatprep.subr.mxu0 0.0
        %2758 = vmatpush1.msra.mxu0 0.0
        %2759 = vmatprep.subr.mxu0 0.0
        %2760 = vmatpush1.msra.mxu0 0.0
        %2761 = vmatprep.subr.mxu0 0.0
        %2762 = vmatpush1.msra.mxu0 0.0
        %2763 = vmatprep.subr.mxu0 0.0
        %2764 = vmatpush1.msra.mxu0 0.0
        %2765 = vmatprep.subr.mxu0 0.0
        %2766 = vmatpush1.msra.mxu0 0.0
        %2767 = vmatprep.subr.mxu0 0.0
        %2768 = vmatpush1.msra.mxu0 0.0
        %2769 = vmatprep.subr.mxu0 0.0
        %2770 = vmatpush1.msra.mxu0 0.0
        %2771 = vmatprep.subr.mxu0 0.0
        %2772 = vmatpush1.msra.mxu0 0.0
        %2773 = vmatprep.subr.mxu0 0.0
        %2774 = vmatpush1.msra.mxu0 0.0
        %2775 = vmatprep.subr.mxu0 0.0
        %2776 = vmatpush1.msra.mxu0 0.0
        %2777 = vmatprep.subr.mxu0 0.0
        %2778 = vmatpush1.msra.mxu0 0.0
        %2779 = vmatprep.subr.mxu0 0.0
        %2780 = vmatpush1.msra.mxu0 0.0
        %2781 = vmatprep.subr.mxu0 0.0
        %2782 = vmatpush1.msra.mxu0 0.0
        %2783 = vmatprep.subr.mxu0 0.0
        %2784 = vmatpush1.msra.mxu0 0.0
        %2785 = vmatprep.subr.mxu0 0.0
        %2786 = vmatpush1.msra.mxu0 0.0
        %2787 = vmatprep.subr.mxu0 0.0
        %2788 = vmatpush1.msra.mxu0 0.0
        %2789 = vmatprep.mubr.f32.mxu0 0.0
        %2790 = vmatmul.mubr.f32.gmra.mrb[0].mxu0 %v2723
        %v2791 = vpop.f32.mrb[0].mxu0
        %v2792 = vadd.f32 0.0, %v2791
        %v2793 = vpop.f32.mrb[0].mxu0
        %2794 = vdwg.mxu0
        %vm2795 = vcmask 60416
        %2796 = vst.msk [vmem:[%s943] sm:$0xf] %vm2795, %v2792
        %2797 = vmatprep.subr.mxu0 0.0
        %2798 = vmatpush1.msra.mxu0 %v2438
        %2799 = vmatprep.subr.mxu0 0.0
        %2800 = vmatpush1.msra.mxu0 %v2439
        %2801 = vmatprep.subr.mxu0 0.0
        %2802 = vmatpush1.msra.mxu0 0.0
        %2803 = vmatprep.subr.mxu0 0.0
        %2804 = vmatpush1.msra.mxu0 0.0
        %2805 = vmatprep.subr.mxu0 0.0
        %2806 = vmatpush1.msra.mxu0 0.0
        %2807 = vmatprep.subr.mxu0 0.0
        %2808 = vmatpush1.msra.mxu0 0.0
        %2809 = vmatprep.subr.mxu0 0.0
        %2810 = vmatpush1.msra.mxu0 0.0
        %2811 = vmatprep.subr.mxu0 0.0
        %2812 = vmatpush1.msra.mxu0 0.0
        %2813 = vmatprep.subr.mxu0 0.0
        %2814 = vmatpush1.msra.mxu0 0.0
        %2815 = vmatprep.subr.mxu0 0.0
        %2816 = vmatpush1.msra.mxu0 0.0
        %2817 = vmatprep.subr.mxu0 0.0
        %2818 = vmatpush1.msra.mxu0 0.0
        %2819 = vmatprep.subr.mxu0 0.0
        %2820 = vmatpush1.msra.mxu0 0.0
        %2821 = vmatprep.subr.mxu0 0.0
        %2822 = vmatpush1.msra.mxu0 0.0
        %2823 = vmatprep.subr.mxu0 0.0
        %2824 = vmatpush1.msra.mxu0 0.0
        %2825 = vmatprep.subr.mxu0 0.0
        %2826 = vmatpush1.msra.mxu0 0.0
        %2827 = vmatprep.subr.mxu0 0.0
        %2828 = vmatpush1.msra.mxu0 0.0
        %2829 = vmatprep.subr.mxu0 0.0
        %2830 = vmatpush1.msra.mxu0 0.0
        %2831 = vmatprep.subr.mxu0 0.0
        %2832 = vmatpush1.msra.mxu0 0.0
        %2833 = vmatprep.subr.mxu0 0.0
        %2834 = vmatpush1.msra.mxu0 0.0
        %2835 = vmatprep.subr.mxu0 0.0
        %2836 = vmatpush1.msra.mxu0 0.0
        %2837 = vmatprep.subr.mxu0 0.0
        %2838 = vmatpush1.msra.mxu0 0.0
        %2839 = vmatprep.subr.mxu0 0.0
        %2840 = vmatpush1.msra.mxu0 0.0
        %2841 = vmatprep.subr.mxu0 0.0
        %2842 = vmatpush1.msra.mxu0 0.0
        %2843 = vmatprep.subr.mxu0 0.0
        %2844 = vmatpush1.msra.mxu0 0.0
        %2845 = vmatprep.subr.mxu0 0.0
        %2846 = vmatpush1.msra.mxu0 0.0
        %2847 = vmatprep.subr.mxu0 0.0
        %2848 = vmatpush1.msra.mxu0 0.0
        %2849 = vmatprep.subr.mxu0 0.0
        %2850 = vmatpush1.msra.mxu0 0.0
        %2851 = vmatprep.subr.mxu0 0.0
        %2852 = vmatpush1.msra.mxu0 0.0
        %2853 = vmatprep.subr.mxu0 0.0
        %2854 = vmatpush1.msra.mxu0 0.0
        %2855 = vmatprep.subr.mxu0 0.0
        %2856 = vmatpush1.msra.mxu0 0.0
        %2857 = vmatprep.subr.mxu0 0.0
        %2858 = vmatpush1.msra.mxu0 0.0
        %2859 = vmatprep.subr.mxu0 0.0
        %2860 = vmatpush1.msra.mxu0 0.0
        %2861 = vmatprep.mubr.f32.mxu0 0.0
        %2862 = vmatmul.mubr.f32.gmra.mrb[0].mxu0 %v2723
        %v2863 = vpop.f32.mrb[0].mxu0
        %v2864 = vadd.f32 0.0, %v2863
        %v2865 = vpop.f32.mrb[0].mxu0
        %2866 = vdwg.mxu0
        %2867 = vst.msk [vmem:[%s950] sm:$0xf] %vm2795, %v2864
        %2868 = vmatprep.subr.mxu0 0.0
        %2869 = vmatpush1.msra.mxu0 %v2688
        %2870 = vmatprep.subr.mxu0 0.0
        %2871 = vmatpush1.msra.mxu0 %v2689
        %2872 = vmatprep.subr.mxu0 0.0
        %2873 = vmatpush1.msra.mxu0 0.0
        %2874 = vmatprep.subr.mxu0 0.0
        %2875 = vmatpush1.msra.mxu0 0.0
        %2876 = vmatprep.subr.mxu0 0.0
        %2877 = vmatpush1.msra.mxu0 0.0
        %2878 = vmatprep.subr.mxu0 0.0
        %2879 = vmatpush1.msra.mxu0 0.0
        %2880 = vmatprep.subr.mxu0 0.0
        %2881 = vmatpush1.msra.mxu0 0.0
        %2882 = vmatprep.subr.mxu0 0.0
        %2883 = vmatpush1.msra.mxu0 0.0
        %2884 = vmatprep.subr.mxu0 0.0
        %2885 = vmatpush1.msra.mxu0 0.0
        %2886 = vmatprep.subr.mxu0 0.0
        %2887 = vmatpush1.msra.mxu0 0.0
        %2888 = vmatprep.subr.mxu0 0.0
        %2889 = vmatpush1.msra.mxu0 0.0
        %2890 = vmatprep.subr.mxu0 0.0
        %2891 = vmatpush1.msra.mxu0 0.0
        %2892 = vmatprep.subr.mxu0 0.0
        %2893 = vmatpush1.msra.mxu0 0.0
        %2894 = vmatprep.subr.mxu0 0.0
        %2895 = vmatpush1.msra.mxu0 0.0
        %2896 = vmatprep.subr.mxu0 0.0
        %2897 = vmatpush1.msra.mxu0 0.0
        %2898 = vmatprep.subr.mxu0 0.0
        %2899 = vmatpush1.msra.mxu0 0.0
        %2900 = vmatprep.subr.mxu0 0.0
        %2901 = vmatpush1.msra.mxu0 0.0
        %2902 = vmatprep.subr.mxu0 0.0
        %2903 = vmatpush1.msra.mxu0 0.0
        %2904 = vmatprep.subr.mxu0 0.0
        %2905 = vmatpush1.msra.mxu0 0.0
        %2906 = vmatprep.subr.mxu0 0.0
        %2907 = vmatpush1.msra.mxu0 0.0
        %2908 = vmatprep.subr.mxu0 0.0
        %2909 = vmatpush1.msra.mxu0 0.0
        %2910 = vmatprep.subr.mxu0 0.0
        %2911 = vmatpush1.msra.mxu0 0.0
        %2912 = vmatprep.subr.mxu0 0.0
        %2913 = vmatpush1.msra.mxu0 0.0
        %2914 = vmatprep.subr.mxu0 0.0
        %2915 = vmatpush1.msra.mxu0 0.0
        %2916 = vmatprep.subr.mxu0 0.0
        %2917 = vmatpush1.msra.mxu0 0.0
        %2918 = vmatprep.subr.mxu0 0.0
        %2919 = vmatpush1.msra.mxu0 0.0
        %2920 = vmatprep.subr.mxu0 0.0
        %2921 = vmatpush1.msra.mxu0 0.0
        %2922 = vmatprep.subr.mxu0 0.0
        %2923 = vmatpush1.msra.mxu0 0.0
        %2924 = vmatprep.subr.mxu0 0.0
        %2925 = vmatpush1.msra.mxu0 0.0
        %2926 = vmatprep.subr.mxu0 0.0
        %2927 = vmatpush1.msra.mxu0 0.0
        %2928 = vmatprep.subr.mxu0 0.0
        %2929 = vmatpush1.msra.mxu0 0.0
        %2930 = vmatprep.subr.mxu0 0.0
        %2931 = vmatpush1.msra.mxu0 0.0
        %2932 = vmatprep.mubr.f32.mxu0 0.0
        %2933 = vmatmul.mubr.f32.gmra.mrb[0].mxu0 %v2723
        %v2934 = vpop.f32.mrb[0].mxu0
        %v2935 = vadd.f32 0.0, %v2934
        %v2936 = vpop.f32.mrb[0].mxu0
        %2937 = vdwg.mxu0
        %2938 = vst.msk [vmem:[%s957] sm:$0xf] %vm2795, %v2935
        %2939 = vmatprep.subr.mxu0 0.0
        %2940 = vmatpush1.msra.mxu0 %v993
        %2941 = vmatprep.subr.mxu0 0.0
        %2942 = vmatpush1.msra.mxu0 %v994
        %2943 = vmatprep.subr.mxu0 0.0
        %2944 = vmatpush1.msra.mxu0 0.0
        %2945 = vmatprep.subr.mxu0 0.0
        %2946 = vmatpush1.msra.mxu0 0.0
        %2947 = vmatprep.subr.mxu0 0.0
        %2948 = vmatpush1.msra.mxu0 0.0
        %2949 = vmatprep.subr.mxu0 0.0
        %2950 = vmatpush1.msra.mxu0 0.0
        %2951 = vmatprep.subr.mxu0 0.0
        %2952 = vmatpush1.msra.mxu0 0.0
        %2953 = vmatprep.subr.mxu0 0.0
        %2954 = vmatpush1.msra.mxu0 0.0
        %2955 = vmatprep.subr.mxu0 0.0
        %2956 = vmatpush1.msra.mxu0 0.0
        %2957 = vmatprep.subr.mxu0 0.0
        %2958 = vmatpush1.msra.mxu0 0.0
        %2959 = vmatprep.subr.mxu0 0.0
        %2960 = vmatpush1.msra.mxu0 0.0
        %2961 = vmatprep.subr.mxu0 0.0
        %2962 = vmatpush1.msra.mxu0 0.0
        %2963 = vmatprep.subr.mxu0 0.0
        %2964 = vmatpush1.msra.mxu0 0.0
        %2965 = vmatprep.subr.mxu0 0.0
        %2966 = vmatpush1.msra.mxu0 0.0
        %2967 = vmatprep.subr.mxu0 0.0
        %2968 = vmatpush1.msra.mxu0 0.0
        %2969 = vmatprep.subr.mxu0 0.0
        %2970 = vmatpush1.msra.mxu0 0.0
        %2971 = vmatprep.subr.mxu0 0.0
        %2972 = vmatpush1.msra.mxu0 0.0
        %2973 = vmatprep.subr.mxu0 0.0
        %2974 = vmatpush1.msra.mxu0 0.0
        %2975 = vmatprep.subr.mxu0 0.0
        %2976 = vmatpush1.msra.mxu0 0.0
        %2977 = vmatprep.subr.mxu0 0.0
        %2978 = vmatpush1.msra.mxu0 0.0
        %2979 = vmatprep.subr.mxu0 0.0
        %2980 = vmatpush1.msra.mxu0 0.0
        %2981 = vmatprep.subr.mxu0 0.0
        %2982 = vmatpush1.msra.mxu0 0.0
        %2983 = vmatprep.subr.mxu0 0.0
        %2984 = vmatpush1.msra.mxu0 0.0
        %2985 = vmatprep.subr.mxu0 0.0
        %2986 = vmatpush1.msra.mxu0 0.0
        %2987 = vmatprep.subr.mxu0 0.0
        %2988 = vmatpush1.msra.mxu0 0.0
        %2989 = vmatprep.subr.mxu0 0.0
        %2990 = vmatpush1.msra.mxu0 0.0
        %2991 = vmatprep.subr.mxu0 0.0
        %2992 = vmatpush1.msra.mxu0 0.0
        %2993 = vmatprep.subr.mxu0 0.0
        %2994 = vmatpush1.msra.mxu0 0.0
        %2995 = vmatprep.subr.mxu0 0.0
        %2996 = vmatpush1.msra.mxu0 0.0
        %2997 = vmatprep.subr.mxu0 0.0
        %2998 = vmatpush1.msra.mxu0 0.0
        %2999 = vmatprep.subr.mxu0 0.0
        %3000 = vmatpush1.msra.mxu0 0.0
        %3001 = vmatprep.subr.mxu0 0.0
        %3002 = vmatpush1.msra.mxu0 0.0
        %3003 = vmatprep.mubr.f32.mxu0 0.0
        %3004 = vmatmul.mubr.f32.gmra.mrb[0].mxu0 %v2723
        %v3005 = vpop.f32.mrb[0].mxu0
        %v3006 = vadd.f32 0.0, %v3005
        %v3007 = vpop.f32.mrb[0].mxu0
        %3008 = vdwg.mxu0
        %v3010 = vsel %vm995, %v3006, 0
        %3012 = vmatprep.subr.mxu0 0.0
        %3013 = vmatpush1.msra.mxu0 %v2024
        %3014 = vmatprep.subr.mxu0 0.0
        %3015 = vmatpush1.msra.mxu0 %v2026
        %3016 = vmatprep.subr.mxu0 0.0
        %3017 = vmatpush1.msra.mxu0 0.0
        %3018 = vmatprep.subr.mxu0 0.0
        %3019 = vmatpush1.msra.mxu0 0.0
        %3020 = vmatprep.subr.mxu0 0.0
        %3021 = vmatpush1.msra.mxu0 0.0
        %3022 = vmatprep.subr.mxu0 0.0
        %3023 = vmatpush1.msra.mxu0 0.0
        %3024 = vmatprep.subr.mxu0 0.0
        %3025 = vmatpush1.msra.mxu0 0.0
        %3026 = vmatprep.subr.mxu0 0.0
        %3027 = vmatpush1.msra.mxu0 0.0
        %3028 = vmatprep.subr.mxu0 0.0
        %3029 = vmatpush1.msra.mxu0 0.0
        %3030 = vmatprep.subr.mxu0 0.0
        %3031 = vmatpush1.msra.mxu0 0.0
        %3032 = vmatprep.subr.mxu0 0.0
        %3033 = vmatpush1.msra.mxu0 0.0
        %3034 = vmatprep.subr.mxu0 0.0
        %3035 = vmatpush1.msra.mxu0 0.0
        %3036 = vmatprep.subr.mxu0 0.0
        %3037 = vmatpush1.msra.mxu0 0.0
        %3038 = vmatprep.subr.mxu0 0.0
        %3039 = vmatpush1.msra.mxu0 0.0
        %3040 = vmatprep.subr.mxu0 0.0
        %3041 = vmatpush1.msra.mxu0 0.0
        %3042 = vmatprep.subr.mxu0 0.0
        %3043 = vmatpush1.msra.mxu0 0.0
        %3044 = vmatprep.subr.mxu0 0.0
        %3045 = vmatpush1.msra.mxu0 0.0
        %3046 = vmatprep.subr.mxu0 0.0
        %3047 = vmatpush1.msra.mxu0 0.0
        %3048 = vmatprep.subr.mxu0 0.0
        %3049 = vmatpush1.msra.mxu0 0.0
        %3050 = vmatprep.subr.mxu0 0.0
        %3051 = vmatpush1.msra.mxu0 0.0
        %3052 = vmatprep.subr.mxu0 0.0
        %3053 = vmatpush1.msra.mxu0 0.0
        %3054 = vmatprep.subr.mxu0 0.0
        %3055 = vmatpush1.msra.mxu0 0.0
        %3056 = vmatprep.subr.mxu0 0.0
        %3057 = vmatpush1.msra.mxu0 0.0
        %3058 = vmatprep.subr.mxu0 0.0
        %3059 = vmatpush1.msra.mxu0 0.0
        %3060 = vmatprep.subr.mxu0 0.0
        %3061 = vmatpush1.msra.mxu0 0.0
        %3062 = vmatprep.subr.mxu0 0.0
        %3063 = vmatpush1.msra.mxu0 0.0
        %3064 = vmatprep.subr.mxu0 0.0
        %3065 = vmatpush1.msra.mxu0 0.0
        %3066 = vmatprep.subr.mxu0 0.0
        %3067 = vmatpush1.msra.mxu0 0.0
        %3068 = vmatprep.subr.mxu0 0.0
        %3069 = vmatpush1.msra.mxu0 0.0
        %3070 = vmatprep.subr.mxu0 0.0
        %3071 = vmatpush1.msra.mxu0 0.0
        %3072 = vmatprep.subr.mxu0 0.0
        %3073 = vmatpush1.msra.mxu0 0.0
        %3074 = vmatprep.subr.mxu0 0.0
        %3075 = vmatpush1.msra.mxu0 0.0
        %3076 = vmatprep.mubr.f32.mxu0 0.0
        %3077 = vmatmul.mubr.f32.gmra.mrb[0].mxu0 %v3010
        %v3078 = vpop.f32.mrb[0].mxu0
        %v3079 = vadd.f32 0.0, %v3078
        %v3080 = vpop.f32.mrb[0].mxu0
        %3081 = vdwg.mxu0
        %vm3082 = vcmask 27648
        %3083 = vst.msk [vmem:[%s964] sm:$0xf] %vm3082, %v3079
        %3084 = vmatprep.subr.mxu0 0.0
        %3085 = vmatpush1.msra.mxu0 %v2024
        %3086 = vmatprep.subr.mxu0 0.0
        %3087 = vmatpush1.msra.mxu0 %v2026
        %3088 = vmatprep.subr.mxu0 0.0
        %3089 = vmatpush1.msra.mxu0 0.0
        %3090 = vmatprep.subr.mxu0 0.0
        %3091 = vmatpush1.msra.mxu0 0.0
        %3092 = vmatprep.subr.mxu0 0.0
        %3093 = vmatpush1.msra.mxu0 0.0
        %3094 = vmatprep.subr.mxu0 0.0
        %3095 = vmatpush1.msra.mxu0 0.0
        %3096 = vmatprep.subr.mxu0 0.0
        %3097 = vmatpush1.msra.mxu0 0.0
        %3098 = vmatprep.subr.mxu0 0.0
        %3099 = vmatpush1.msra.mxu0 0.0
        %3100 = vmatprep.subr.mxu0 0.0
        %3101 = vmatpush1.msra.mxu0 0.0
        %3102 = vmatprep.subr.mxu0 0.0
        %3103 = vmatpush1.msra.mxu0 0.0
        %3104 = vmatprep.subr.mxu0 0.0
        %3105 = vmatpush1.msra.mxu0 0.0
        %3106 = vmatprep.subr.mxu0 0.0
        %3107 = vmatpush1.msra.mxu0 0.0
        %3108 = vmatprep.subr.mxu0 0.0
        %3109 = vmatpush1.msra.mxu0 0.0
        %3110 = vmatprep.subr.mxu0 0.0
        %3111 = vmatpush1.msra.mxu0 0.0
        %3112 = vmatprep.subr.mxu0 0.0
        %3113 = vmatpush1.msra.mxu0 0.0
        %3114 = vmatprep.subr.mxu0 0.0
        %3115 = vmatpush1.msra.mxu0 0.0
        %3116 = vmatprep.subr.mxu0 0.0
        %3117 = vmatpush1.msra.mxu0 0.0
        %3118 = vmatprep.subr.mxu0 0.0
        %3119 = vmatpush1.msra.mxu0 0.0
        %3120 = vmatprep.subr.mxu0 0.0
        %3121 = vmatpush1.msra.mxu0 0.0
        %3122 = vmatprep.subr.mxu0 0.0
        %3123 = vmatpush1.msra.mxu0 0.0
        %3124 = vmatprep.subr.mxu0 0.0
        %3125 = vmatpush1.msra.mxu0 0.0
        %3126 = vmatprep.subr.mxu0 0.0
        %3127 = vmatpush1.msra.mxu0 0.0
        %3128 = vmatprep.subr.mxu0 0.0
        %3129 = vmatpush1.msra.mxu0 0.0
        %3130 = vmatprep.subr.mxu0 0.0
        %3131 = vmatpush1.msra.mxu0 0.0
        %3132 = vmatprep.subr.mxu0 0.0
        %3133 = vmatpush1.msra.mxu0 0.0
        %3134 = vmatprep.subr.mxu0 0.0
        %3135 = vmatpush1.msra.mxu0 0.0
        %3136 = vmatprep.subr.mxu0 0.0
        %3137 = vmatpush1.msra.mxu0 0.0
        %3138 = vmatprep.subr.mxu0 0.0
        %3139 = vmatpush1.msra.mxu0 0.0
        %3140 = vmatprep.subr.mxu0 0.0
        %3141 = vmatpush1.msra.mxu0 0.0
        %3142 = vmatprep.subr.mxu0 0.0
        %3143 = vmatpush1.msra.mxu0 0.0
        %3144 = vmatprep.subr.mxu0 0.0
        %3145 = vmatpush1.msra.mxu0 0.0
        %3146 = vmatprep.subr.mxu0 0.0
        %3147 = vmatpush1.msra.mxu0 0.0
        %3148 = vmatprep.mubr.f32.mxu0 0.0
        %3149 = vmatmul.mubr.f32.gmra.mrb[0].mxu0 %v2723
        %v3150 = vpop.f32.mrb[0].mxu0
        %v3151 = vadd.f32 0.0, %v3150
        %v3152 = vpop.f32.mrb[0].mxu0
        %3153 = vdwg.mxu0
        %v3154 = vlaneseq
        %v3155 = vshrl.u32 %v3154, 7
        %v3156 = vlaneseq
        %v3157 = vand.u32 %v3156, 127
        %vm3158 = vcmp.eq.s32.totalorder %v3155, %v3157
        %v3159 = vsel %vm3158, %v3079, 0.0
        %v3160 = vsel %vm3082, %v3159, 0.0
        %3161 = vadd.xlane.f32.xlu0 %v3160
        %v3162 = vpop.xlane.xlu0 %3161
        %v3163 = vrot.slane %v3162, 4
        %v3164 = vadd.f32 %v3162, %v3163
        %v3165 = vrot.slane %v3164, 2
        %v3166 = vadd.f32 %v3164, %v3165
        %v3167 = vrot.slane %v3166, 1
        %v3168 = vadd.f32 %v3166, %v3167
        %s3169 = vtos %v3168
        %v3170 = vstv %s3169
        %v3171 = vmul.f32 %v993, %v993
        %v3172 = vmul.f32 %v994, %v994
        %v3173 = vsel %vm995, %v3171, 0.0
        %v3174 = vsel %vm995, %v3172, 0.0
        %v3175 = vadd.f32 %v3173, %v3174
        %3176 = vadd.xlane.f32.xlu0 %v3175
        %v3177 = vpop.xlane.xlu0 %3176
        %v3178 = vrot.slane %v3177, 4
        %v3179 = vadd.f32 %v3177, %v3178
        %v3180 = vrot.slane %v3179, 2
        %v3181 = vadd.f32 %v3179, %v3180
        %v3182 = vrot.slane %v3181, 1
        %v3183 = vadd.f32 %v3181, %v3182
        %s3184 = vtos %v3183
        %v3185 = vstv %s3184
        %v3186 = vmul.f32 %v3151, %v3151
        %v3187 = vsel %vm3082, %v3186, 0.0
        %3188 = vadd.xlane.f32.xlu0 %v3187
        %v3189 = vpop.xlane.xlu0 %3188
        %v3190 = vrot.slane %v3189, 4
        %v3191 = vadd.f32 %v3189, %v3190
        %v3192 = vrot.slane %v3191, 2
        %v3193 = vadd.f32 %v3191, %v3192
        %v3194 = vrot.slane %v3193, 1
        %v3195 = vadd.f32 %v3193, %v3194
        %s3196 = vtos %v3195
        %v3197 = vstv %s3196
        %v3198 = vmul.f32 %v3170, 2.0
        %v3199 = vsub.f32 %v3185, %v3198
        %v3200 = vadd.f32 %v3199, %v3197
        %vm3201 = vcmask 0
        %3202 = vst.msk [vmem:[%s987] sm:$0x1] %vm3201, %v3200
        %v3203 = vsub.f32 0.0, %v2024
        %v3204 = vsub.f32 0.0, %v2026
        %v3205 = vadd.f32 %v2024, 1e-15
        %v3206 = vadd.f32 %v2026, 1e-15
        %v3207 = vlog2.pop %v3205
        %v3208 = vmul.f32 %v3207, 0.6931472
        %v3209 = vlog2.pop %v3206
        %v3210 = vmul.f32 %v3209, 0.6931472
        %v3211 = vmul.f32 %v3203, %v3208
        %v3212 = vmul.f32 %v3204, %v3210
        %v3213 = vsel %vm1915, %v3211, 0.0
        %v3214 = vsel %vm1915, %v3212, 0.0
        %v3215 = vadd.f32 %v3213, %v3214
        %3216 = vadd.xlane.f32.xlu0 %v3215
        %v3217 = vpop.xlane.xlu0 %3216
        %v3218 = vrot.slane %v3217, 4
        %v3219 = vadd.f32 %v3217, %v3218
        %v3220 = vrot.slane %v3219, 2
        %v3221 = vadd.f32 %v3219, %v3220
        %v3222 = vrot.slane %v3221, 1
        %v3223 = vadd.f32 %v3221, %v3222
        %s3224 = vtos %v3223
        %v3225 = vstv %s3224
        %3226 = vst.msk [vmem:[%s990] sm:$0x1] %vm3201, %v3225
        %s3227 = sand.u32 %s604, 1
        %s3228 = scalar_lea.sflag [#allocation4], %s3227
        %s3229 = sand.u32 %s604, 1
        %s3230 = smul.addr %s3229, 4
        %s3231 = scalar_lea.vmem [#allocation7], %s3230
        %s3232 = sand.u32 %s82, 1
        %s3233 = scalar_lea.sflag [#allocation9], %s3232
        %s3234 = sand.u32 %s630, 1
        %s3235 = smul.addr %s3234, 4
        %s3236 = scalar_lea.vmem [#allocation8], %s3235
        %s3237 = sand.u32 %s82, 1
        %s3238 = scalar_lea.sflag [#allocation9], %s3237
        %s3239 = sand.u32 %s656, 1
        %s3240 = smul.addr %s3239, 4
        %s3241 = scalar_lea.vmem [#allocation10], %s3240
        %s3242 = sand.u32 %s682, 1
        %s3243 = scalar_lea.sflag [#allocation12], %s3242
        %s3244 = sand.u32 %s682, 1
        %s3245 = smul.addr %s3244, 4
        %s3246 = scalar_lea.vmem [#allocation11], %s3245
        %p3247 = scmp.lt.s32.totalorder %s82, 1
        %s3248 = scalar_select %p3247, %s82, 1
        %s3249 = scalar_lea.vmem %s57, %s3248
        %p3250 = scmp.lt.s32.totalorder %s82, 1
        %s3251 = scalar_select %p3250, %s82, 1
        %s3252 = scalar_lea.vmem %s59, %s3251
        // Predicated region
        $region125: #{tpu_custom_call.1} parent=115 // pred_check
          %p3253 = pneg %p614
        $region126: #{tpu_custom_call.1} parent=115 // pred_check_branch
          %3255 = sbr.rel (%p3253) target = $region128
        $region127: #{tpu_custom_call.1} parent=115 // pred_region
          %s3257 = ssub.s32 64, 64
          %3258 = vsyncadd %s3228, %s3257
          %s3259 = smul.addr %s82, 64
          %s3260 = scalar_lea.hbm %s49, %s3259
          %s3262 = sshll.u32 %s3231, 4
          %s3263 = int_to_ptr.vmem [resolvable:$true] %s3262
          %3265 = dma.vmem_to_hbm [thread:$0]  %s3263, 64, %s3260, %s3228
        $region128: #{tpu_custom_call.1} parent=115 // pred_fallthru
          _
        // Predicated region
        $region129: #{tpu_custom_call.1} parent=115 // pred_check
          %p3266 = pneg %p640
        $region130: #{tpu_custom_call.1} parent=115 // pred_check_branch
          %3268 = sbr.rel (%p3266) target = $region132
        $region131: #{tpu_custom_call.1} parent=115 // pred_region
          %s3270 = ssub.s32 64, 64
          %3271 = vsyncadd %s3233, %s3270
          %s3272 = smul.addr %s82, 64
          %s3273 = scalar_lea.hbm %s51, %s3272
          %s3275 = sshll.u32 %s3236, 4
          %s3276 = int_to_ptr.vmem [resolvable:$true] %s3275
          %3278 = dma.vmem_to_hbm [thread:$0]  %s3276, 64, %s3273, %s3233
        $region132: #{tpu_custom_call.1} parent=115 // pred_fallthru
          _
        // Predicated region
        $region133: #{tpu_custom_call.1} parent=115 // pred_check
          %p3279 = pneg %p666
        $region134: #{tpu_custom_call.1} parent=115 // pred_check_branch
          %3281 = sbr.rel (%p3279) target = $region136
        $region135: #{tpu_custom_call.1} parent=115 // pred_region
          %s3283 = ssub.s32 64, 64
          %3284 = vsyncadd %s3238, %s3283
          %s3285 = smul.addr %s82, 64
          %s3286 = scalar_lea.hbm %s53, %s3285
          %s3288 = sshll.u32 %s3241, 4
          %s3289 = int_to_ptr.vmem [resolvable:$true] %s3288
          %3291 = dma.vmem_to_hbm [thread:$0]  %s3289, 64, %s3286, %s3238
        $region136: #{tpu_custom_call.1} parent=115 // pred_fallthru
          _
        // Predicated region
        $region137: #{tpu_custom_call.1} parent=115 // pred_check
          %p3292 = pneg %p692
        $region138: #{tpu_custom_call.1} parent=115 // pred_check_branch
          %3294 = sbr.rel (%p3292) target = $region140
        $region139: #{tpu_custom_call.1} parent=115 // pred_region
          %s3296 = ssub.s32 64, 64
          %3297 = vsyncadd %s3243, %s3296
          %s3298 = smul.addr %s82, 64
          %s3299 = scalar_lea.hbm %s55, %s3298
          %s3301 = sshll.u32 %s3246, 4
          %s3302 = int_to_ptr.vmem [resolvable:$true] %s3301
          %3304 = dma.vmem_to_hbm [thread:$0]  %s3302, 64, %s3299, %s3243
        $region140: #{tpu_custom_call.1} parent=115 // pred_fallthru
          _
        // Predicated region
        $region141: #{tpu_custom_call.1} parent=115 // pred_check
          %p3305 = pneg %p718
        $region142: #{tpu_custom_call.1} parent=115 // pred_check_branch
          %3307 = sbr.rel (%p3305) target = $region144
        $region143: #{tpu_custom_call.1} parent=115 // pred_region
          _
        $region144: #{tpu_custom_call.1} parent=115 // pred_fallthru
          _
        // Predicated region
        $region145: #{tpu_custom_call.1} parent=115 // pred_check
          %p3308 = pneg %p744
        $region146: #{tpu_custom_call.1} parent=115 // pred_check_branch
          %3310 = sbr.rel (%p3308) target = $region148
        $region147: #{tpu_custom_call.1} parent=115 // pred_region
          _
        $region148: #{tpu_custom_call.1} parent=115 // pred_fallthru
          _
      $region116: #{tpu_custom_call.1} parent=5 // pred_fallthru
        _
      %p3311 = scmp.le.s32.totalorder 2, %s77
      // Predicated region
      $region149: #{tpu_custom_call.1} parent=5 // pred_check
        %p3312 = pneg %p3311
      $region150: #{tpu_custom_call.1} parent=5 // pred_check_branch
        %3314 = sbr.rel (%p3312) target = $region152
      $region151: #{tpu_custom_call.1} parent=5 // pred_region
        %s3315 = ssub.s32 %s77, 2
        // Predicated region
        $region153: #{tpu_custom_call.1} parent=151 // pred_check
          %p3316 = pneg %p620
        $region154: #{tpu_custom_call.1} parent=151 // pred_check_branch
          %3318 = sbr.rel (%p3316) target = $region156
        $region155: #{tpu_custom_call.1} parent=151 // pred_region
          %s3319 = sand.u32 %s605, 1
          %s3320 = scalar_lea.sflag [#allocation4], %s3319
          %s3321 = sand.u32 %s605, 1
          %s3322 = smul.addr %s3321, 4
          %s3323 = scalar_lea.vmem [#allocation7], %s3322
          %3324 = dma.done %s3320, 64
        $region156: #{tpu_custom_call.1} parent=151 // pred_fallthru
          _
        // Predicated region
        $region157: #{tpu_custom_call.1} parent=151 // pred_check
          %p3325 = pneg %p646
        $region158: #{tpu_custom_call.1} parent=151 // pred_check_branch
          %3327 = sbr.rel (%p3325) target = $region160
        $region159: #{tpu_custom_call.1} parent=151 // pred_region
          %s3328 = sand.u32 %s83, 1
          %s3329 = scalar_lea.sflag [#allocation9], %s3328
          %s3330 = sand.u32 %s631, 1
          %s3331 = smul.addr %s3330, 4
          %s3332 = scalar_lea.vmem [#allocation8], %s3331
          %3333 = dma.done %s3329, 64
        $region160: #{tpu_custom_call.1} parent=151 // pred_fallthru
          _
        // Predicated region
        $region161: #{tpu_custom_call.1} parent=151 // pred_check
          %p3334 = pneg %p672
        $region162: #{tpu_custom_call.1} parent=151 // pred_check_branch
          %3336 = sbr.rel (%p3334) target = $region164
        $region163: #{tpu_custom_call.1} parent=151 // pred_region
          %s3337 = sand.u32 %s83, 1
          %s3338 = scalar_lea.sflag [#allocation9], %s3337
          %s3339 = sand.u32 %s657, 1
          %s3340 = smul.addr %s3339, 4
          %s3341 = scalar_lea.vmem [#allocation10], %s3340
          %3342 = dma.done %s3338, 64
        $region164: #{tpu_custom_call.1} parent=151 // pred_fallthru
          _
        // Predicated region
        $region165: #{tpu_custom_call.1} parent=151 // pred_check
          %p3343 = pneg %p698
        $region166: #{tpu_custom_call.1} parent=151 // pred_check_branch
          %3345 = sbr.rel (%p3343) target = $region168
        $region167: #{tpu_custom_call.1} parent=151 // pred_region
          %s3346 = sand.u32 %s683, 1
          %s3347 = scalar_lea.sflag [#allocation12], %s3346
          %s3348 = sand.u32 %s683, 1
          %s3349 = smul.addr %s3348, 4
          %s3350 = scalar_lea.vmem [#allocation11], %s3349
          %3351 = dma.done %s3347, 64
        $region168: #{tpu_custom_call.1} parent=151 // pred_fallthru
          _
        // Predicated region
        $region169: #{tpu_custom_call.1} parent=151 // pred_check
          %p3352 = pneg %p724
        $region170: #{tpu_custom_call.1} parent=151 // pred_check_branch
          %3354 = sbr.rel (%p3352) target = $region172
        $region171: #{tpu_custom_call.1} parent=151 // pred_region
          %p3355 = scmp.lt.s32.totalorder %s83, 1
          %s3356 = scalar_select %p3355, %s83, 1
          %s3357 = scalar_lea.vmem %s57, %s3356
        $region172: #{tpu_custom_call.1} parent=151 // pred_fallthru
          _
        // Predicated region
        $region173: #{tpu_custom_call.1} parent=151 // pred_check
          %p3358 = pneg %p750
        $region174: #{tpu_custom_call.1} parent=151 // pred_check_branch
          %3360 = sbr.rel (%p3358) target = $region176
        $region175: #{tpu_custom_call.1} parent=151 // pred_region
          %p3361 = scmp.lt.s32.totalorder %s83, 1
          %s3362 = scalar_select %p3361, %s83, 1
          %s3363 = scalar_lea.vmem %s59, %s3362
        $region176: #{tpu_custom_call.1} parent=151 // pred_fallthru
          _
      $region152: #{tpu_custom_call.1} parent=5 // pred_fallthru
        _
    $region6: #{tpu_custom_call.1} parent=1 // loop_footer
      %s81 = sadd.s32 1, %s77
    $region7: #{tpu_custom_call.1} parent=1 // loop_footer_branch
      %76 = sbr.rel target = $region3
    $region8: #{tpu_custom_call.1} parent=1 // loop_exit
      _
    %3364 = vsyncpa [#allocation3], 1
    %s3365 = scalar_lea.sflag [#allocation3], 1
    %3366 = vsyncpa %s3365, 1
    %3367 = vsyncpa [#allocation6], 1
    %3368 = vsyncpa [#allocation4], 1
    %s3369 = scalar_lea.sflag [#allocation4], 1
    %3370 = vsyncpa %s3369, 1
    %3371 = vsyncpa [#allocation9], 1
    %s3372 = scalar_lea.sflag [#allocation9], 1
    %3373 = vsyncpa %s3372, 1
    %3374 = vsyncpa [#allocation12], 1
    %s3375 = scalar_lea.sflag [#allocation12], 1
    %3376 = vsyncpa %s3375, 1

</llo_original>
